<compile_context>
chip_gen: v7x
topology: tpu7x:2x2x1
jax: 0.10.0
libtpu: 0.0.40
codegen_flags: <defaults>
</compile_context>

<pallas_src>
import functools

import jax
import jax.numpy as jnp
from jax.experimental import pallas as pl
from jax.experimental.pallas import tpu as pltpu


# ---------------------------------------------------------------------------
# Kernel 1: serial LSTM recurrence (single invocation, fully unrolled).
# ---------------------------------------------------------------------------
def lstm_recurrence_kernel(emb_ref,      # ((T-1)*B, E) bf16  embeddings, (t, b) row order
                           feat_ref,     # (B, E)       f32   image features -> c_0
                           wih_ref,      # (E, 4E)      bf16  W_ih^T
                           whh_ref,      # (E, 4E)      bf16  W_hh^T
                           b_ref,        # (1, 4E)      f32   b_ih + b_hh
                           states_ref,   # (B, T*E)     bf16  out: [x_0 | h_1 | ... | h_{T-1}]
                           xg_sc):       # scratch ((T-1)*B, 4E) f32
    B, E = feat_ref.shape
    T = emb_ref.shape[0] // B + 1

    # Prologue: input-gate contribution for every consumed step in one MXU matmul.
    xg_sc[...] = (
        jnp.dot(emb_ref[...], wih_ref[...], preferred_element_type=jnp.float32)
        + b_ref[...]
    )

    # Lane-block 0 of the states is x_0, because out[0] = Linear(emb(captions[:, 0])).
    states_ref[:, 0:E] = emb_ref[0:B, :]

    # Serial recurrence, fully unrolled (T static => Python loop unrolls at trace time).
    # Only h @ W_hh^T remains on the critical path.
    h = jnp.zeros((B, E), jnp.float32)
    c = feat_ref[...]                                      # c_0 = features, h_0 = 0
    for t in range(1, T):
        gates = xg_sc[(t - 1) * B:t * B, :] + jnp.dot(
            h.astype(jnp.bfloat16), whh_ref[...],
            preferred_element_type=jnp.float32)            # (B, 4E), gate order i,f,g,o
        i_g = jax.nn.sigmoid(gates[:, 0 * E:1 * E])
        f_g = jax.nn.sigmoid(gates[:, 1 * E:2 * E])
        g_g = jnp.tanh(gates[:, 2 * E:3 * E])
        o_g = jax.nn.sigmoid(gates[:, 3 * E:4 * E])
        c = f_g * c + i_g * g_g
        h = o_g * jnp.tanh(c)
        # bf16 store: states are only ever consumed in bf16 by the projection kernel,
        # so this is free precision-wise and halves the buffer traffic.
        states_ref[:, t * E:(t + 1) * E] = h.astype(jnp.bfloat16)


# ---------------------------------------------------------------------------
# Kernel 2: vocab projection, tiled over V (parallel grid -> both TCs on v7x).
# ---------------------------------------------------------------------------
def vocab_projection_kernel(states_ref,   # (B*T, E)     bf16  batch-major states
                            wout_ref,     # (E, v_tile)  bf16  W_out^T tile
                            bout_ref,     # (1, v_tile)  f32   b_out tile
                            out_ref):     # (B*T, v_tile) f32  logits tile (batch-major)
    out_ref[...] = (
        jnp.dot(states_ref[...], wout_ref[...], preferred_element_type=jnp.float32)
        + bout_ref[...]
    )


# ---------------------------------------------------------------------------
# Wrapper: embedding gather + bf16 packing (XLA glue), two pallas_calls.
# ---------------------------------------------------------------------------
@functools.partial(jax.jit, static_argnames=("sentence_max_length",))
def decoder_forward(params, features, captions, sentence_max_length):
    emb_table = params["emb_table"]     # (V, E)
    w_ih = params["w_ih"]               # (4E, E)  torch convention
    w_hh = params["w_hh"]               # (4E, E)
    b_ih = params["b_ih"]               # (4E,)
    b_hh = params["b_hh"]               # (4E,)
    w_out = params["w_out"]             # (V, E)
    b_out = params["b_out"]             # (V,)

    B, T = captions.shape
    assert T == sentence_max_length and T >= 2
    V, E = emb_table.shape

    # Embedding gather in (t, b) row order, only for the T-1 consumed steps
    # (the last caption token's embedding is never used by the reference forward).
    ids_tb = captions[:, :T - 1].T.reshape(-1)                            # ((T-1)*B,)
    emb_flat = jnp.take(emb_table, ids_tb, axis=0).astype(jnp.bfloat16)   # ((T-1)*B, E)

    # Weights in bf16 (MXU-native); biases / state stay f32.
    wih_t = w_ih.T.astype(jnp.bfloat16)                                   # (E, 4E)
    whh_t = w_hh.T.astype(jnp.bfloat16)                                   # (E, 4E)
    wout_t = w_out.T.astype(jnp.bfloat16)                                 # (E, V)
    b_gates = (b_ih + b_hh).reshape(1, 4 * E).astype(jnp.float32)         # (1, 4E)
    bout = b_out.reshape(1, V).astype(jnp.float32)                        # (1, V)
    feats = features.astype(jnp.float32)                                  # (B, E)

    # ---- Kernel 1: serial LSTM recurrence (everything resident in VMEM) ----
    states = pl.pallas_call(
        lstm_recurrence_kernel,
        out_shape=jax.ShapeDtypeStruct((B, T * E), jnp.bfloat16),
        grid_spec=pltpu.PrefetchScalarGridSpec(
            num_scalar_prefetch=0,
            grid=(1,),
            in_specs=[
                pl.BlockSpec(((T - 1) * B, E), lambda i: (0, 0)),   # embeddings (bf16)
                pl.BlockSpec((B, E), lambda i: (0, 0)),             # features (c_0)
                pl.BlockSpec((E, 4 * E), lambda i: (0, 0)),         # W_ih^T
                pl.BlockSpec((E, 4 * E), lambda i: (0, 0)),         # W_hh^T
                pl.BlockSpec((1, 4 * E), lambda i: (0, 0)),         # gate bias
            ],
            out_specs=pl.BlockSpec((B, T * E), lambda i: (0, 0)),   # batch-major states
            scratch_shapes=[
                pltpu.VMEM(((T - 1) * B, 4 * E), jnp.float32),      # precomputed x@W_ih
            ],
        ),
        compiler_params=pltpu.CompilerParams(
            dimension_semantics=("arbitrary",),
        ),
    )(emb_flat, feats, wih_t, whh_t, b_gates)

    # (B, T*E) -> (B*T, E): row-major-compatible reshape, rows are batch-major (b, t).
    states_bt = states.reshape(B * T, E)

    # ---- Kernel 2: vocab projection, tiled over V, megacore-parallel ----
    # v_tile of 128 at toy vocab; raise toward 512-1024 lanes at production vocab
    # (and optionally tile B*T as well) so W_out / output tiles stay within VMEM.
    v_tile = 128 if V % 128 == 0 else V
    num_v = V // v_tile

    out_flat = pl.pallas_call(
        vocab_projection_kernel,
        out_shape=jax.ShapeDtypeStruct((B * T, V), jnp.float32),
        grid_spec=pltpu.PrefetchScalarGridSpec(
            num_scalar_prefetch=0,
            grid=(num_v,),
            in_specs=[
                pl.BlockSpec((B * T, E), lambda j: (0, 0)),         # states (resident)
                pl.BlockSpec((E, v_tile), lambda j: (0, j)),        # W_out^T tile
                pl.BlockSpec((1, v_tile), lambda j: (0, j)),        # b_out tile
            ],
            out_specs=pl.BlockSpec((B * T, v_tile), lambda j: (0, j)),
        ),
        compiler_params=pltpu.CompilerParams(
            dimension_semantics=("parallel",),
            vmem_limit_bytes=32 * 1024 * 1024,
        ),
    )(states_bt, wout_t, bout)

    # Rows are already batch-major -> free reshape, no transpose, no extra HBM pass.
    return out_flat.reshape(B, T, V)


# ---------------------------------------------------------------------------
# Pure-JAX f32 reference of the PyTorch forward() for validation.
# ---------------------------------------------------------------------------
def decoder_forward_reference(params, features, captions, sentence_max_length):
    emb_table = params["emb_table"]
    w_ih, w_hh = params["w_ih"], params["w_hh"]
    b_ih, b_hh = params["b_ih"], params["b_hh"]
    w_out, b_out = params["w_out"], params["b_out"]
    B, T = captions.shape
    E = emb_table.shape[1]

    emb = jnp.take(emb_table, captions, axis=0)               # (B, T, E)
    h = jnp.zeros((B, E), jnp.float32)
    c = features.astype(jnp.float32)
    outs = [emb[:, 0] @ w_out.T + b_out]
    for t in range(1, sentence_max_length):
        x = emb[:, t - 1]
        gates = x @ w_ih.T + b_ih + h @ w_hh.T + b_hh
        i_g = jax.nn.sigmoid(gates[:, 0 * E:1 * E])
        f_g = jax.nn.sigmoid(gates[:, 1 * E:2 * E])
        g_g = jnp.tanh(gates[:, 2 * E:3 * E])
        o_g = jax.nn.sigmoid(gates[:, 3 * E:4 * E])
        c = f_g * c + i_g * g_g
        h = o_g * jnp.tanh(c)
        outs.append(h @ w_out.T + b_out)
    return jnp.stack(outs, 1)                                 # (B, T, V)


# ---------------------------------------------------------------------------
# Deterministic parameter init (mimics the module's __init__ scheme).
# ---------------------------------------------------------------------------
def init_params(key, vocab_size, embedding_dim):
    E, V = embedding_dim, vocab_size
    k_emb, k_ih, k_hh, k_wout, k_bout = jax.random.split(key, 5)

    emb_table = jax.random.normal(k_emb, (V, E), jnp.float32)           # nn.Embedding: N(0,1)

    # weight_ih: xavier normal, shape (4E, E)
    std_ih = (2.0 / (4 * E + E)) ** 0.5
    w_ih = std_ih * jax.random.normal(k_ih, (4 * E, E), jnp.float32)

    # weight_hh: orthogonal (columns orthonormal), shape (4E, E)
    a = jax.random.normal(k_hh, (4 * E, E), jnp.float32)
    q, r = jnp.linalg.qr(a)
    w_hh = q * jnp.sign(jnp.diagonal(r))[None, :]

    # LSTM biases: zero (per the module's init loop)
    b_ih = jnp.zeros((4 * E,), jnp.float32)
    b_hh = jnp.zeros((4 * E,), jnp.float32)

    # inv_word_embeddings: nn.Linear default uniform(-1/sqrt(E), 1/sqrt(E))
    bound = 1.0 / (E ** 0.5)
    w_out = jax.random.uniform(k_wout, (V, E), jnp.float32, -bound, bound)
    b_out = jax.random.uniform(k_bout, (V,), jnp.float32, -bound, bound)

    return {
        "emb_table": emb_table,
        "w_ih": w_ih, "w_hh": w_hh, "b_ih": b_ih, "b_hh": b_hh,
        "w_out": w_out, "b_out": b_out,
    }


if __name__ == "__main__":
    # Small model config consistent with the module.
    model_param = {
        "sentence_max_length": 8,
        "TOKEN_START": 1,
        "vocab_size": 256,
        "embedding_dim": 128,
    }
    B = 8
    T = model_param["sentence_max_length"]
    V = model_param["vocab_size"]
    E = model_param["embedding_dim"]

    key = jax.random.PRNGKey(0)
    k_params, k_feat, k_cap = jax.random.split(key, 3)

    params = init_params(k_params, V, E)
    features = jax.random.normal(k_feat, (B, E), jnp.float32)
    captions = jax.random.randint(k_cap, (B, T), 0, V, jnp.int32)

    out = decoder_forward(params, features, captions, T)
    out = jax.block_until_ready(out)
    assert out.shape == (B, T, V), out.shape

    # f32 reference; tolerance relaxed because kernel uses bf16 weights/embeddings
    # (state and accumulation stay f32).
    ref = decoder_forward_reference(params, features, captions, T)
    max_err = float(jnp.max(jnp.abs(out - ref)))
    assert jnp.allclose(out, ref, atol=5e-2, rtol=5e-2), max_err

    print("KERNEL_OK")
</pallas_src>

<mosaic_0001>
module attributes {stable_mosaic.version = 11 : i64} {
  func.func @vocab_projection_kernel(%arg0: i32, %arg1: memref<64x128xbf16, #tpu.memory_space<vmem>>, %arg2: memref<128x128xbf16, #tpu.memory_space<vmem>>, %arg3: memref<1x128xf32, #tpu.memory_space<vmem>>, %arg4: memref<64x128xf32, #tpu.memory_space<vmem>>) attributes {dimension_semantics = [#tpu.dimension_semantics<parallel>], iteration_bounds = array<i64: 2>, scalar_prefetch = 0 : i64, scratch_operands = 0 : i64, tpu.core_type = #tpu.core_type<tc>, window_params = [{pipeline_mode = #tpu.pipeline_mode<synchronous>, transform_indices = @transform_0, window_bounds = array<i64: 64, 128>}, {transform_indices = @transform_1, window_bounds = array<i64: 128, 128>}, {transform_indices = @transform_2, window_bounds = array<i64: 1, 128>}, {transform_indices = @transform_3, window_bounds = array<i64: 64, 128>}]} {
    %c0 = arith.constant 0 : index
    %c0_0 = arith.constant 0 : index
    %0 = vector.load %arg1[%c0, %c0_0] : memref<64x128xbf16, #tpu.memory_space<vmem>>, vector<64x128xbf16>
    %c0_1 = arith.constant 0 : index
    %c0_2 = arith.constant 0 : index
    %1 = vector.load %arg2[%c0_1, %c0_2] : memref<128x128xbf16, #tpu.memory_space<vmem>>, vector<128x128xbf16>
    %cst = arith.constant dense<0.000000e+00> : vector<64x128xf32>
    %2 = tpu.matmul %0, %1, %cst {dimension_numbers = #tpu.dot_dimension_numbers<[1], [0], [0], [1], [0, 0, 1, 1], [], []>} : vector<64x128xbf16>, vector<128x128xbf16>, vector<64x128xf32> -> vector<64x128xf32>
    %c0_3 = arith.constant 0 : index
    %c0_4 = arith.constant 0 : index
    %3 = vector.load %arg3[%c0_3, %c0_4] : memref<1x128xf32, #tpu.memory_space<vmem>>, vector<1x128xf32>
    %4 = vector.broadcast %3 : vector<1x128xf32> to vector<64x128xf32>
    %5 = arith.addf %2, %4 : vector<64x128xf32>
    %c0_5 = arith.constant 0 : index
    %c0_6 = arith.constant 0 : index
    %6 = vector.load %arg4[%c0_5, %c0_6] : memref<64x128xf32, #tpu.memory_space<vmem>>, vector<64x128xf32>
    tpu.vector_store %arg4[%c0_5, %c0_6], %5 {strides = array<i32>} : memref<64x128xf32, #tpu.memory_space<vmem>>, vector<64x128xf32>,
    return
  }
  func.func @transform_0(%arg0: i32) -> (i32, i32) {
    %c0_i32 = arith.constant 0 : i32
    %c0_i32_0 = arith.constant 0 : i32
    %c0_i32_1 = arith.constant 0 : i32
    return %c0_i32, %c0_i32_0 : i32, i32
  }
  func.func @transform_1(%arg0: i32) -> (i32, i32) {
    %c0_i32 = arith.constant 0 : i32
    %c0_i32_0 = arith.constant 0 : i32
    return %c0_i32, %arg0 : i32, i32
  }
  func.func @transform_2(%arg0: i32) -> (i32, i32) {
    %c0_i32 = arith.constant 0 : i32
    %c0_i32_0 = arith.constant 0 : i32
    return %c0_i32, %arg0 : i32, i32
  }
  func.func @transform_3(%arg0: i32) -> (i32, i32) {
    %c0_i32 = arith.constant 0 : i32
    %c0_i32_0 = arith.constant 0 : i32
    return %c0_i32, %arg0 : i32, i32
  }
}

module attributes {stable_mosaic.version = 11 : i64} {
  func.func @lstm_recurrence_kernel(%arg0: i32, %arg1: memref<56x128xbf16, #tpu.memory_space<vmem>>, %arg2: memref<8x128xf32, #tpu.memory_space<vmem>>, %arg3: memref<128x512xbf16, #tpu.memory_space<vmem>>, %arg4: memref<128x512xbf16, #tpu.memory_space<vmem>>, %arg5: memref<1x512xf32, #tpu.memory_space<vmem>>, %arg6: memref<8x1024xbf16, #tpu.memory_space<vmem>>, %arg7: memref<56x512xf32, #tpu.memory_space<vmem>>) attributes {dimension_semantics = [#tpu.dimension_semantics<arbitrary>], iteration_bounds = array<i64: 1>, scalar_prefetch = 0 : i64, scratch_operands = 1 : i64, tpu.core_type = #tpu.core_type<tc>, window_params = [{pipeline_mode = #tpu.pipeline_mode<synchronous>, transform_indices = @transform_0, window_bounds = array<i64: 56, 128>}, {pipeline_mode = #tpu.pipeline_mode<synchronous>, transform_indices = @transform_1, window_bounds = array<i64: 8, 128>}, {pipeline_mode = #tpu.pipeline_mode<synchronous>, transform_indices = @transform_2, window_bounds = array<i64: 128, 512>}, {pipeline_mode = #tpu.pipeline_mode<synchronous>, transform_indices = @transform_3, window_bounds = array<i64: 128, 512>}, {pipeline_mode = #tpu.pipeline_mode<synchronous>, transform_indices = @transform_4, window_bounds = array<i64: 1, 512>}, {pipeline_mode = #tpu.pipeline_mode<synchronous>, transform_indices = @transform_5, window_bounds = array<i64: 8, 1024>}]} {
    %c0 = arith.constant 0 : index
    %c0_0 = arith.constant 0 : index
    %0 = vector.load %arg1[%c0, %c0_0] : memref<56x128xbf16, #tpu.memory_space<vmem>>, vector<56x128xbf16>
    %c0_1 = arith.constant 0 : index
    %c0_2 = arith.constant 0 : index
    %1 = vector.load %arg3[%c0_1, %c0_2] : memref<128x512xbf16, #tpu.memory_space<vmem>>, vector<128x512xbf16>
    %cst = arith.constant dense<0.000000e+00> : vector<56x512xf32>
    %2 = tpu.matmul %0, %1, %cst {dimension_numbers = #tpu.dot_dimension_numbers<[1], [0], [0], [1], [0, 0, 1, 1], [], []>} : vector<56x128xbf16>, vector<128x512xbf16>, vector<56x512xf32> -> vector<56x512xf32>
    %c0_3 = arith.constant 0 : index
    %c0_4 = arith.constant 0 : index
    %3 = vector.load %arg5[%c0_3, %c0_4] : memref<1x512xf32, #tpu.memory_space<vmem>>, vector<1x512xf32>
    %4 = vector.broadcast %3 : vector<1x512xf32> to vector<56x512xf32>
    %5 = arith.addf %2, %4 : vector<56x512xf32>
    %c0_5 = arith.constant 0 : index
    %c0_6 = arith.constant 0 : index
    %6 = vector.load %arg7[%c0_5, %c0_6] : memref<56x512xf32, #tpu.memory_space<vmem>>, vector<56x512xf32>
    tpu.vector_store %arg7[%c0_5, %c0_6], %5 {strides = array<i32>} : memref<56x512xf32, #tpu.memory_space<vmem>>, vector<56x512xf32>,
    %c0_7 = arith.constant 0 : index
    %c0_8 = arith.constant 0 : index
    %7 = vector.load %arg1[%c0_7, %c0_8] : memref<56x128xbf16, #tpu.memory_space<vmem>>, vector<8x128xbf16>
    %c0_9 = arith.constant 0 : index
    %c0_10 = arith.constant 0 : index
    %8 = vector.load %arg6[%c0_9, %c0_10] : memref<8x1024xbf16, #tpu.memory_space<vmem>>, vector<8x128xbf16>
    tpu.vector_store %arg6[%c0_9, %c0_10], %7 {strides = array<i32>} : memref<8x1024xbf16, #tpu.memory_space<vmem>>, vector<8x128xbf16>,
    %cst_11 = arith.constant 0.000000e+00 : f32
    %9 = vector.broadcast %cst_11 : f32 to vector<8x128xf32>
    %c0_12 = arith.constant 0 : index
    %c0_13 = arith.constant 0 : index
    %10 = vector.load %arg2[%c0_12, %c0_13] : memref<8x128xf32, #tpu.memory_space<vmem>>, vector<8x128xf32>
    %c0_14 = arith.constant 0 : index
    %c0_15 = arith.constant 0 : index
    %11 = vector.load %arg7[%c0_14, %c0_15] : memref<56x512xf32, #tpu.memory_space<vmem>>, vector<8x512xf32>
    %12 = arith.truncf %9 : vector<8x128xf32> to vector<8x128xbf16>
    %c0_16 = arith.constant 0 : index
    %c0_17 = arith.constant 0 : index
    %13 = vector.load %arg4[%c0_16, %c0_17] : memref<128x512xbf16, #tpu.memory_space<vmem>>, vector<128x512xbf16>
    %cst_18 = arith.constant dense<0.000000e+00> : vector<8x512xf32>
    %14 = tpu.matmul %12, %13, %cst_18 {dimension_numbers = #tpu.dot_dimension_numbers<[1], [0], [0], [1], [0, 0, 1, 1], [], []>} : vector<8x128xbf16>, vector<128x512xbf16>, vector<8x512xf32> -> vector<8x512xf32>
    %15 = arith.addf %11, %14 : vector<8x512xf32>
    %16 = vector.extract_strided_slice %15 {offsets = [0, 0], sizes = [8, 128], strides = [1, 1]} : vector<8x512xf32> to vector<8x128xf32>
    %17 = arith.negf %16 : vector<8x128xf32>
    %18 = math.exp %17 : vector<8x128xf32>
    %cst_19 = arith.constant 1.000000e+00 : f32
    %19 = vector.broadcast %cst_19 : f32 to vector<8x128xf32>
    %20 = arith.addf %19, %18 : vector<8x128xf32>
    %21 = arith.divf %19, %20 : vector<8x128xf32>
    %22 = vector.extract_strided_slice %15 {offsets = [0, 128], sizes = [8, 128], strides = [1, 1]} : vector<8x512xf32> to vector<8x128xf32>
    %23 = arith.negf %22 : vector<8x128xf32>
    %24 = math.exp %23 : vector<8x128xf32>
    %cst_20 = arith.constant 1.000000e+00 : f32
    %25 = vector.broadcast %cst_20 : f32 to vector<8x128xf32>
    %26 = arith.addf %25, %24 : vector<8x128xf32>
    %27 = arith.divf %25, %26 : vector<8x128xf32>
    %28 = vector.extract_strided_slice %15 {offsets = [0, 256], sizes = [8, 128], strides = [1, 1]} : vector<8x512xf32> to vector<8x128xf32>
    %29 = math.tanh %28 : vector<8x128xf32>
    %30 = vector.extract_strided_slice %15 {offsets = [0, 384], sizes = [8, 128], strides = [1, 1]} : vector<8x512xf32> to vector<8x128xf32>
    %31 = arith.negf %30 : vector<8x128xf32>
    %32 = math.exp %31 : vector<8x128xf32>
    %cst_21 = arith.constant 1.000000e+00 : f32
    %33 = vector.broadcast %cst_21 : f32 to vector<8x128xf32>
    %34 = arith.addf %33, %32 : vector<8x128xf32>
    %35 = arith.divf %33, %34 : vector<8x128xf32>
    %36 = arith.mulf %27, %10 : vector<8x128xf32>
    %37 = arith.mulf %21, %29 : vector<8x128xf32>
    %38 = arith.addf %36, %37 : vector<8x128xf32>
    %39 = math.tanh %38 : vector<8x128xf32>
    %40 = arith.mulf %35, %39 : vector<8x128xf32>
    %41 = arith.truncf %40 : vector<8x128xf32> to vector<8x128xbf16>
    %c0_22 = arith.constant 0 : index
    %c128 = arith.constant 128 : index
    %42 = vector.load %arg6[%c0_22, %c128] : memref<8x1024xbf16, #tpu.memory_space<vmem>>, vector<8x128xbf16>
    tpu.vector_store %arg6[%c0_22, %c128], %41 {strides = array<i32>} : memref<8x1024xbf16, #tpu.memory_space<vmem>>, vector<8x128xbf16>,
    %c8 = arith.constant 8 : index
    %c0_23 = arith.constant 0 : index
    %43 = vector.load %arg7[%c8, %c0_23] : memref<56x512xf32, #tpu.memory_space<vmem>>, vector<8x512xf32>
    %44 = arith.truncf %40 : vector<8x128xf32> to vector<8x128xbf16>
    %c0_24 = arith.constant 0 : index
    %c0_25 = arith.constant 0 : index
    %45 = vector.load %arg4[%c0_24, %c0_25] : memref<128x512xbf16, #tpu.memory_space<vmem>>, vector<128x512xbf16>
    %cst_26 = arith.constant dense<0.000000e+00> : vector<8x512xf32>
    %46 = tpu.matmul %44, %45, %cst_26 {dimension_numbers = #tpu.dot_dimension_numbers<[1], [0], [0], [1], [0, 0, 1, 1], [], []>} : vector<8x128xbf16>, vector<128x512xbf16>, vector<8x512xf32> -> vector<8x512xf32>
    %47 = arith.addf %43, %46 : vector<8x512xf32>
    %48 = vector.extract_strided_slice %47 {offsets = [0, 0], sizes = [8, 128], strides = [1, 1]} : vector<8x512xf32> to vector<8x128xf32>
    %49 = arith.negf %48 : vector<8x128xf32>
    %50 = math.exp %49 : vector<8x128xf32>
    %cst_27 = arith.constant 1.000000e+00 : f32
    %51 = vector.broadcast %cst_27 : f32 to vector<8x128xf32>
    %52 = arith.addf %51, %50 : vector<8x128xf32>
    %53 = arith.divf %51, %52 : vector<8x128xf32>
    %54 = vector.extract_strided_slice %47 {offsets = [0, 128], sizes = [8, 128], strides = [1, 1]} : vector<8x512xf32> to vector<8x128xf32>
    %55 = arith.negf %54 : vector<8x128xf32>
    %56 = math.exp %55 : vector<8x128xf32>
    %cst_28 = arith.constant 1.000000e+00 : f32
    %57 = vector.broadcast %cst_28 : f32 to vector<8x128xf32>
    %58 = arith.addf %57, %56 : vector<8x128xf32>
    %59 = arith.divf %57, %58 : vector<8x128xf32>
    %60 = vector.extract_strided_slice %47 {offsets = [0, 256], sizes = [8, 128], strides = [1, 1]} : vector<8x512xf32> to vector<8x128xf32>
    %61 = math.tanh %60 : vector<8x128xf32>
    %62 = vector.extract_strided_slice %47 {offsets = [0, 384], sizes = [8, 128], strides = [1, 1]} : vector<8x512xf32> to vector<8x128xf32>
    %63 = arith.negf %62 : vector<8x128xf32>
    %64 = math.exp %63 : vector<8x128xf32>
    %cst_29 = arith.constant 1.000000e+00 : f32
    %65 = vector.broadcast %cst_29 : f32 to vector<8x128xf32>
    %66 = arith.addf %65, %64 : vector<8x128xf32>
    %67 = arith.divf %65, %66 : vector<8x128xf32>
    %68 = arith.mulf %59, %38 : vector<8x128xf32>
    %69 = arith.mulf %53, %61 : vector<8x128xf32>
    %70 = arith.addf %68, %69 : vector<8x128xf32>
    %71 = math.tanh %70 : vector<8x128xf32>
    %72 = arith.mulf %67, %71 : vector<8x128xf32>
    %73 = arith.truncf %72 : vector<8x128xf32> to vector<8x128xbf16>
    %c0_30 = arith.constant 0 : index
    %c256 = arith.constant 256 : index
    %74 = vector.load %arg6[%c0_30, %c256] : memref<8x1024xbf16, #tpu.memory_space<vmem>>, vector<8x128xbf16>
    tpu.vector_store %arg6[%c0_30, %c256], %73 {strides = array<i32>} : memref<8x1024xbf16, #tpu.memory_space<vmem>>, vector<8x128xbf16>,
    %c16 = arith.constant 16 : index
    %c0_31 = arith.constant 0 : index
    %75 = vector.load %arg7[%c16, %c0_31] : memref<56x512xf32, #tpu.memory_space<vmem>>, vector<8x512xf32>
    %76 = arith.truncf %72 : vector<8x128xf32> to vector<8x128xbf16>
    %c0_32 = arith.constant 0 : index
    %c0_33 = arith.constant 0 : index
    %77 = vector.load %arg4[%c0_32, %c0_33] : memref<128x512xbf16, #tpu.memory_space<vmem>>, vector<128x512xbf16>
    %cst_34 = arith.constant dense<0.000000e+00> : vector<8x512xf32>
    %78 = tpu.matmul %76, %77, %cst_34 {dimension_numbers = #tpu.dot_dimension_numbers<[1], [0], [0], [1], [0, 0, 1, 1], [], []>} : vector<8x128xbf16>, vector<128x512xbf16>, vector<8x512xf32> -> vector<8x512xf32>
    %79 = arith.addf %75, %78 : vector<8x512xf32>
    %80 = vector.extract_strided_slice %79 {offsets = [0, 0], sizes = [8, 128], strides = [1, 1]} : vector<8x512xf32> to vector<8x128xf32>
    %81 = arith.negf %80 : vector<8x128xf32>
    %82 = math.exp %81 : vector<8x128xf32>
    %cst_35 = arith.constant 1.000000e+00 : f32
    %83 = vector.broadcast %cst_35 : f32 to vector<8x128xf32>
    %84 = arith.addf %83, %82 : vector<8x128xf32>
    %85 = arith.divf %83, %84 : vector<8x128xf32>
    %86 = vector.extract_strided_slice %79 {offsets = [0, 128], sizes = [8, 128], strides = [1, 1]} : vector<8x512xf32> to vector<8x128xf32>
    %87 = arith.negf %86 : vector<8x128xf32>
    %88 = math.exp %87 : vector<8x128xf32>
    %cst_36 = arith.constant 1.000000e+00 : f32
    %89 = vector.broadcast %cst_36 : f32 to vector<8x128xf32>
    %90 = arith.addf %89, %88 : vector<8x128xf32>
    %91 = arith.divf %89, %90 : vector<8x128xf32>
    %92 = vector.extract_strided_slice %79 {offsets = [0, 256], sizes = [8, 128], strides = [1, 1]} : vector<8x512xf32> to vector<8x128xf32>
    %93 = math.tanh %92 : vector<8x128xf32>
    %94 = vector.extract_strided_slice %79 {offsets = [0, 384], sizes = [8, 128], strides = [1, 1]} : vector<8x512xf32> to vector<8x128xf32>
    %95 = arith.negf %94 : vector<8x128xf32>
    %96 = math.exp %95 : vector<8x128xf32>
    %cst_37 = arith.constant 1.000000e+00 : f32
    %97 = vector.broadcast %cst_37 : f32 to vector<8x128xf32>
    %98 = arith.addf %97, %96 : vector<8x128xf32>
    %99 = arith.divf %97, %98 : vector<8x128xf32>
    %100 = arith.mulf %91, %70 : vector<8x128xf32>
    %101 = arith.mulf %85, %93 : vector<8x128xf32>
    %102 = arith.addf %100, %101 : vector<8x128xf32>
    %103 = math.tanh %102 : vector<8x128xf32>
    %104 = arith.mulf %99, %103 : vector<8x128xf32>
    %105 = arith.truncf %104 : vector<8x128xf32> to vector<8x128xbf16>
    %c0_38 = arith.constant 0 : index
    %c384 = arith.constant 384 : index
    %106 = vector.load %arg6[%c0_38, %c384] : memref<8x1024xbf16, #tpu.memory_space<vmem>>, vector<8x128xbf16>
    tpu.vector_store %arg6[%c0_38, %c384], %105 {strides = array<i32>} : memref<8x1024xbf16, #tpu.memory_space<vmem>>, vector<8x128xbf16>,
    %c24 = arith.constant 24 : index
    %c0_39 = arith.constant 0 : index
    %107 = vector.load %arg7[%c24, %c0_39] : memref<56x512xf32, #tpu.memory_space<vmem>>, vector<8x512xf32>
    %108 = arith.truncf %104 : vector<8x128xf32> to vector<8x128xbf16>
    %c0_40 = arith.constant 0 : index
    %c0_41 = arith.constant 0 : index
    %109 = vector.load %arg4[%c0_40, %c0_41] : memref<128x512xbf16, #tpu.memory_space<vmem>>, vector<128x512xbf16>
    %cst_42 = arith.constant dense<0.000000e+00> : vector<8x512xf32>
    %110 = tpu.matmul %108, %109, %cst_42 {dimension_numbers = #tpu.dot_dimension_numbers<[1], [0], [0], [1], [0, 0, 1, 1], [], []>} : vector<8x128xbf16>, vector<128x512xbf16>, vector<8x512xf32> -> vector<8x512xf32>
    %111 = arith.addf %107, %110 : vector<8x512xf32>
    %112 = vector.extract_strided_slice %111 {offsets = [0, 0], sizes = [8, 128], strides = [1, 1]} : vector<8x512xf32> to vector<8x128xf32>
    %113 = arith.negf %112 : vector<8x128xf32>
    %114 = math.exp %113 : vector<8x128xf32>
    %cst_43 = arith.constant 1.000000e+00 : f32
    %115 = vector.broadcast %cst_43 : f32 to vector<8x128xf32>
    %116 = arith.addf %115, %114 : vector<8x128xf32>
    %117 = arith.divf %115, %116 : vector<8x128xf32>
    %118 = vector.extract_strided_slice %111 {offsets = [0, 128], sizes = [8, 128], strides = [1, 1]} : vector<8x512xf32> to vector<8x128xf32>
    %119 = arith.negf %118 : vector<8x128xf32>
    %120 = math.exp %119 : vector<8x128xf32>
    %cst_44 = arith.constant 1.000000e+00 : f32
    %121 = vector.broadcast %cst_44 : f32 to vector<8x128xf32>
    %122 = arith.addf %121, %120 : vector<8x128xf32>
    %123 = arith.divf %121, %122 : vector<8x128xf32>
    %124 = vector.extract_strided_slice %111 {offsets = [0, 256], sizes = [8, 128], strides = [1, 1]} : vector<8x512xf32> to vector<8x128xf32>
    %125 = math.tanh %124 : vector<8x128xf32>
    %126 = vector.extract_strided_slice %111 {offsets = [0, 384], sizes = [8, 128], strides = [1, 1]} : vector<8x512xf32> to vector<8x128xf32>
    %127 = arith.negf %126 : vector<8x128xf32>
    %128 = math.exp %127 : vector<8x128xf32>
    %cst_45 = arith.constant 1.000000e+00 : f32
    %129 = vector.broadcast %cst_45 : f32 to vector<8x128xf32>
    %130 = arith.addf %129, %128 : vector<8x128xf32>
    %131 = arith.divf %129, %130 : vector<8x128xf32>
    %132 = arith.mulf %123, %102 : vector<8x128xf32>
    %133 = arith.mulf %117, %125 : vector<8x128xf32>
    %134 = arith.addf %132, %133 : vector<8x128xf32>
    %135 = math.tanh %134 : vector<8x128xf32>
    %136 = arith.mulf %131, %135 : vector<8x128xf32>
    %137 = arith.truncf %136 : vector<8x128xf32> to vector<8x128xbf16>
    %c0_46 = arith.constant 0 : index
    %c512 = arith.constant 512 : index
    %138 = vector.load %arg6[%c0_46, %c512] : memref<8x1024xbf16, #tpu.memory_space<vmem>>, vector<8x128xbf16>
    tpu.vector_store %arg6[%c0_46, %c512], %137 {strides = array<i32>} : memref<8x1024xbf16, #tpu.memory_space<vmem>>, vector<8x128xbf16>,
    %c32 = arith.constant 32 : index
    %c0_47 = arith.constant 0 : index
    %139 = vector.load %arg7[%c32, %c0_47] : memref<56x512xf32, #tpu.memory_space<vmem>>, vector<8x512xf32>
    %140 = arith.truncf %136 : vector<8x128xf32> to vector<8x128xbf16>
    %c0_48 = arith.constant 0 : index
    %c0_49 = arith.constant 0 : index
    %141 = vector.load %arg4[%c0_48, %c0_49] : memref<128x512xbf16, #tpu.memory_space<vmem>>, vector<128x512xbf16>
    %cst_50 = arith.constant dense<0.000000e+00> : vector<8x512xf32>
    %142 = tpu.matmul %140, %141, %cst_50 {dimension_numbers = #tpu.dot_dimension_numbers<[1], [0], [0], [1], [0, 0, 1, 1], [], []>} : vector<8x128xbf16>, vector<128x512xbf16>, vector<8x512xf32> -> vector<8x512xf32>
    %143 = arith.addf %139, %142 : vector<8x512xf32>
    %144 = vector.extract_strided_slice %143 {offsets = [0, 0], sizes = [8, 128], strides = [1, 1]} : vector<8x512xf32> to vector<8x128xf32>
    %145 = arith.negf %144 : vector<8x128xf32>
    %146 = math.exp %145 : vector<8x128xf32>
    %cst_51 = arith.constant 1.000000e+00 : f32
    %147 = vector.broadcast %cst_51 : f32 to vector<8x128xf32>
    %148 = arith.addf %147, %146 : vector<8x128xf32>
    %149 = arith.divf %147, %148 : vector<8x128xf32>
    %150 = vector.extract_strided_slice %143 {offsets = [0, 128], sizes = [8, 128], strides = [1, 1]} : vector<8x512xf32> to vector<8x128xf32>
    %151 = arith.negf %150 : vector<8x128xf32>
    %152 = math.exp %151 : vector<8x128xf32>
    %cst_52 = arith.constant 1.000000e+00 : f32
    %153 = vector.broadcast %cst_52 : f32 to vector<8x128xf32>
    %154 = arith.addf %153, %152 : vector<8x128xf32>
    %155 = arith.divf %153, %154 : vector<8x128xf32>
    %156 = vector.extract_strided_slice %143 {offsets = [0, 256], sizes = [8, 128], strides = [1, 1]} : vector<8x512xf32> to vector<8x128xf32>
    %157 = math.tanh %156 : vector<8x128xf32>
    %158 = vector.extract_strided_slice %143 {offsets = [0, 384], sizes = [8, 128], strides = [1, 1]} : vector<8x512xf32> to vector<8x128xf32>
    %159 = arith.negf %158 : vector<8x128xf32>
    %160 = math.exp %159 : vector<8x128xf32>
    %cst_53 = arith.constant 1.000000e+00 : f32
    %161 = vector.broadcast %cst_53 : f32 to vector<8x128xf32>
    %162 = arith.addf %161, %160 : vector<8x128xf32>
    %163 = arith.divf %161, %162 : vector<8x128xf32>
    %164 = arith.mulf %155, %134 : vector<8x128xf32>
    %165 = arith.mulf %149, %157 : vector<8x128xf32>
    %166 = arith.addf %164, %165 : vector<8x128xf32>
    %167 = math.tanh %166 : vector<8x128xf32>
    %168 = arith.mulf %163, %167 : vector<8x128xf32>
    %169 = arith.truncf %168 : vector<8x128xf32> to vector<8x128xbf16>
    %c0_54 = arith.constant 0 : index
    %c640 = arith.constant 640 : index
    %170 = vector.load %arg6[%c0_54, %c640] : memref<8x1024xbf16, #tpu.memory_space<vmem>>, vector<8x128xbf16>
    tpu.vector_store %arg6[%c0_54, %c640], %169 {strides = array<i32>} : memref<8x1024xbf16, #tpu.memory_space<vmem>>, vector<8x128xbf16>,
    %c40 = arith.constant 40 : index
    %c0_55 = arith.constant 0 : index
    %171 = vector.load %arg7[%c40, %c0_55] : memref<56x512xf32, #tpu.memory_space<vmem>>, vector<8x512xf32>
    %172 = arith.truncf %168 : vector<8x128xf32> to vector<8x128xbf16>
    %c0_56 = arith.constant 0 : index
    %c0_57 = arith.constant 0 : index
    %173 = vector.load %arg4[%c0_56, %c0_57] : memref<128x512xbf16, #tpu.memory_space<vmem>>, vector<128x512xbf16>
    %cst_58 = arith.constant dense<0.000000e+00> : vector<8x512xf32>
    %174 = tpu.matmul %172, %173, %cst_58 {dimension_numbers = #tpu.dot_dimension_numbers<[1], [0], [0], [1], [0, 0, 1, 1], [], []>} : vector<8x128xbf16>, vector<128x512xbf16>, vector<8x512xf32> -> vector<8x512xf32>
    %175 = arith.addf %171, %174 : vector<8x512xf32>
    %176 = vector.extract_strided_slice %175 {offsets = [0, 0], sizes = [8, 128], strides = [1, 1]} : vector<8x512xf32> to vector<8x128xf32>
    %177 = arith.negf %176 : vector<8x128xf32>
    %178 = math.exp %177 : vector<8x128xf32>
    %cst_59 = arith.constant 1.000000e+00 : f32
    %179 = vector.broadcast %cst_59 : f32 to vector<8x128xf32>
    %180 = arith.addf %179, %178 : vector<8x128xf32>
    %181 = arith.divf %179, %180 : vector<8x128xf32>
    %182 = vector.extract_strided_slice %175 {offsets = [0, 128], sizes = [8, 128], strides = [1, 1]} : vector<8x512xf32> to vector<8x128xf32>
    %183 = arith.negf %182 : vector<8x128xf32>
    %184 = math.exp %183 : vector<8x128xf32>
    %cst_60 = arith.constant 1.000000e+00 : f32
    %185 = vector.broadcast %cst_60 : f32 to vector<8x128xf32>
    %186 = arith.addf %185, %184 : vector<8x128xf32>
    %187 = arith.divf %185, %186 : vector<8x128xf32>
    %188 = vector.extract_strided_slice %175 {offsets = [0, 256], sizes = [8, 128], strides = [1, 1]} : vector<8x512xf32> to vector<8x128xf32>
    %189 = math.tanh %188 : vector<8x128xf32>
    %190 = vector.extract_strided_slice %175 {offsets = [0, 384], sizes = [8, 128], strides = [1, 1]} : vector<8x512xf32> to vector<8x128xf32>
    %191 = arith.negf %190 : vector<8x128xf32>
    %192 = math.exp %191 : vector<8x128xf32>
    %cst_61 = arith.constant 1.000000e+00 : f32
    %193 = vector.broadcast %cst_61 : f32 to vector<8x128xf32>
    %194 = arith.addf %193, %192 : vector<8x128xf32>
    %195 = arith.divf %193, %194 : vector<8x128xf32>
    %196 = arith.mulf %187, %166 : vector<8x128xf32>
    %197 = arith.mulf %181, %189 : vector<8x128xf32>
    %198 = arith.addf %196, %197 : vector<8x128xf32>
    %199 = math.tanh %198 : vector<8x128xf32>
    %200 = arith.mulf %195, %199 : vector<8x128xf32>
    %201 = arith.truncf %200 : vector<8x128xf32> to vector<8x128xbf16>
    %c0_62 = arith.constant 0 : index
    %c768 = arith.constant 768 : index
    %202 = vector.load %arg6[%c0_62, %c768] : memref<8x1024xbf16, #tpu.memory_space<vmem>>, vector<8x128xbf16>
    tpu.vector_store %arg6[%c0_62, %c768], %201 {strides = array<i32>} : memref<8x1024xbf16, #tpu.memory_space<vmem>>, vector<8x128xbf16>,
    %c48 = arith.constant 48 : index
    %c0_63 = arith.constant 0 : index
    %203 = vector.load %arg7[%c48, %c0_63] : memref<56x512xf32, #tpu.memory_space<vmem>>, vector<8x512xf32>
    %204 = arith.truncf %200 : vector<8x128xf32> to vector<8x128xbf16>
    %c0_64 = arith.constant 0 : index
    %c0_65 = arith.constant 0 : index
    %205 = vector.load %arg4[%c0_64, %c0_65] : memref<128x512xbf16, #tpu.memory_space<vmem>>, vector<128x512xbf16>
    %cst_66 = arith.constant dense<0.000000e+00> : vector<8x512xf32>
    %206 = tpu.matmul %204, %205, %cst_66 {dimension_numbers = #tpu.dot_dimension_numbers<[1], [0], [0], [1], [0, 0, 1, 1], [], []>} : vector<8x128xbf16>, vector<128x512xbf16>, vector<8x512xf32> -> vector<8x512xf32>
    %207 = arith.addf %203, %206 : vector<8x512xf32>
    %208 = vector.extract_strided_slice %207 {offsets = [0, 0], sizes = [8, 128], strides = [1, 1]} : vector<8x512xf32> to vector<8x128xf32>
    %209 = arith.negf %208 : vector<8x128xf32>
    %210 = math.exp %209 : vector<8x128xf32>
    %cst_67 = arith.constant 1.000000e+00 : f32
    %211 = vector.broadcast %cst_67 : f32 to vector<8x128xf32>
    %212 = arith.addf %211, %210 : vector<8x128xf32>
    %213 = arith.divf %211, %212 : vector<8x128xf32>
    %214 = vector.extract_strided_slice %207 {offsets = [0, 128], sizes = [8, 128], strides = [1, 1]} : vector<8x512xf32> to vector<8x128xf32>
    %215 = arith.negf %214 : vector<8x128xf32>
    %216 = math.exp %215 : vector<8x128xf32>
    %cst_68 = arith.constant 1.000000e+00 : f32
    %217 = vector.broadcast %cst_68 : f32 to vector<8x128xf32>
    %218 = arith.addf %217, %216 : vector<8x128xf32>
    %219 = arith.divf %217, %218 : vector<8x128xf32>
    %220 = vector.extract_strided_slice %207 {offsets = [0, 256], sizes = [8, 128], strides = [1, 1]} : vector<8x512xf32> to vector<8x128xf32>
    %221 = math.tanh %220 : vector<8x128xf32>
    %222 = vector.extract_strided_slice %207 {offsets = [0, 384], sizes = [8, 128], strides = [1, 1]} : vector<8x512xf32> to vector<8x128xf32>
    %223 = arith.negf %222 : vector<8x128xf32>
    %224 = math.exp %223 : vector<8x128xf32>
    %cst_69 = arith.constant 1.000000e+00 : f32
    %225 = vector.broadcast %cst_69 : f32 to vector<8x128xf32>
    %226 = arith.addf %225, %224 : vector<8x128xf32>
    %227 = arith.divf %225, %226 : vector<8x128xf32>
    %228 = arith.mulf %219, %198 : vector<8x128xf32>
    %229 = arith.mulf %213, %221 : vector<8x128xf32>
    %230 = arith.addf %228, %229 : vector<8x128xf32>
    %231 = math.tanh %230 : vector<8x128xf32>
    %232 = arith.mulf %227, %231 : vector<8x128xf32>
    %233 = arith.truncf %232 : vector<8x128xf32> to vector<8x128xbf16>
    %c0_70 = arith.constant 0 : index
    %c896 = arith.constant 896 : index
    %234 = vector.load %arg6[%c0_70, %c896] : memref<8x1024xbf16, #tpu.memory_space<vmem>>, vector<8x128xbf16>
    tpu.vector_store %arg6[%c0_70, %c896], %233 {strides = array<i32>} : memref<8x1024xbf16, #tpu.memory_space<vmem>>, vector<8x128xbf16>,
    return
  }
  func.func @transform_0(%arg0: i32) -> (i32, i32) {
    %c0_i32 = arith.constant 0 : i32
    %c0_i32_0 = arith.constant 0 : i32
    %c0_i32_1 = arith.constant 0 : i32
    return %c0_i32, %c0_i32_0 : i32, i32
  }
  func.func @transform_1(%arg0: i32) -> (i32, i32) {
    %c0_i32 = arith.constant 0 : i32
    %c0_i32_0 = arith.constant 0 : i32
    %c0_i32_1 = arith.constant 0 : i32
    return %c0_i32, %c0_i32_0 : i32, i32
  }
  func.func @transform_2(%arg0: i32) -> (i32, i32) {
    %c0_i32 = arith.constant 0 : i32
    %c0_i32_0 = arith.constant 0 : i32
    %c0_i32_1 = arith.constant 0 : i32
    return %c0_i32, %c0_i32_0 : i32, i32
  }
  func.func @transform_3(%arg0: i32) -> (i32, i32) {
    %c0_i32 = arith.constant 0 : i32
    %c0_i32_0 = arith.constant 0 : i32
    %c0_i32_1 = arith.constant 0 : i32
    return %c0_i32, %c0_i32_0 : i32, i32
  }
  func.func @transform_4(%arg0: i32) -> (i32, i32) {
    %c0_i32 = arith.constant 0 : i32
    %c0_i32_0 = arith.constant 0 : i32
    %c0_i32_1 = arith.constant 0 : i32
    return %c0_i32, %c0_i32_0 : i32, i32
  }
  func.func @transform_5(%arg0: i32) -> (i32, i32) {
    %c0_i32 = arith.constant 0 : i32
    %c0_i32_0 = arith.constant 0 : i32
    %c0_i32_1 = arith.constant 0 : i32
    return %c0_i32, %c0_i32_0 : i32, i32
  }
}

</mosaic_0001>

<llo_original>
// kernel: decoder_forward.3
$region0: #{decoder_forward.3}
  #allocation0 [shape = 'u32[]', space=smem, size = 0x4, offset = 0x4, fixed_abs, tag = 'smem constant byte address 0x4 - core index']
  #allocation1 [shape = 'u32[144,128]{1,0:T(1,128)}', space=vmem, size = 0x12000, scoped, tag = 'internal scratch']
  %s0 = inlined_call_operand.vmem [shape: bf16[64,128], index: 0, kind: input, shape index: {}]
  %s1 = inlined_call_operand.vmem [shape: bf16[128,256], index: 1, kind: input, shape index: {}]
  %s2 = inlined_call_operand.vmem [shape: f32[1,256], index: 2, kind: input, shape index: {}]
  %s3 = inlined_call_operand.hbm [shape: f32[64,256], index: 3, kind: output, shape index: {}]
  %s4 = sld [smem:[#allocation0]]
  $region86: #{decoder_forward.3} parent=0
    _
  %s6 = ssub.s32 1, %s4
  %s7 = scalar_select 0, %s6, %s4
  $region1: #{decoder_forward.3} parent=0
    #allocation2 [shape = 'u8[65536]{0}', space=vmem, size = 0x10000, scoped, tag = 'input window, operand 1']
    #allocation3 [shape = 'u8[65536]{0}', space=vmem, size = 0x10000, scoped, tag = 'output window, operand 0']
    #allocation4 [shape = 's32[2]{0}', space=sflag, size = 0x8, scoped, tag = 'scoped memory for decoder_forward.3']
    %8 = vsyncpa [#allocation4], 0
    %s9 = scalar_lea.sflag [#allocation4], 1
    %10 = vsyncpa %s9, 0
    loop: start=0, step=1, limit=4
    $region2: #{decoder_forward.3} parent=1 // loop_pre_header
      _
    $region3: #{decoder_forward.3} parent=1 // loop_header
      %s12 = sphi 0, %s16
      %p13 = scmp.ge.s32.totalorder %s12, 4
      %s20 = sphi 0, %s20
      %s22 = sphi 0, %s20
      %s23 = sphi 0, %s22
      %s37 = sphi 0, %s23
      %s43 = sphi 0, %s45
      %s46 = sphi 0, %s43
      %s47 = sphi 0, %s46
      %s63 = sphi 0, %s47
      %s69 = sphi 0, %s71
      %s72 = sphi 0, %s69
      %s73 = sphi 0, %s72
      %s89 = sphi 0, %s73
      %s95 = sphi 0, %s97
      %s98 = sphi 0, %s95
      %s99 = sphi 0, %s98
      %s115 = sphi 0, %s99
    $region4: #{decoder_forward.3} parent=1 // loop_header_branch
      %15 = sbr.rel (%p13) target = $region8
    $region5: #{decoder_forward.3} parent=1 // loop_body
      %s17 = ssub.s32 %s12, 1
      %s18 = ssub.s32 %s12, 2
      %s19 = sadd.s32 %s12, 1
      %s21 = sadd.s32 %s20, 1
      %p24 = scmp.eq.s32.totalorder %s12, 1
      %p25 = scmp.ne.s32.totalorder %s20, %s22
      %p26 = scmp.eq.s32.totalorder %s12, 0
      %p27 = por %p25, %p26
      %p28 = scmp.ne.s32.totalorder %s20, %s22
      %p29 = scmp.eq.s32.totalorder %s17, 1
      %p30 = por %p28, %p29
      %p31 = scmp.ne.s32.totalorder %s22, %s23
      %p32 = scmp.eq.s32.totalorder %s17, 0
      %p33 = por %p31, %p32
      %p34 = scmp.ne.s32.totalorder %s22, %s23
      %p35 = scmp.eq.s32.totalorder %s18, 1
      %p36 = por %p34, %p35
      %p38 = scmp.ne.s32.totalorder %s23, %s37
      %p39 = scmp.eq.s32.totalorder %s18, 0
      %p40 = por %p38, %p39
      %s41 = ssub.s32 %s12, %s19
      %p42 = scmp.eq.s32.totalorder %s41, 0
      %s44 = sadd.s32 %s43, 1
      %s45 = scalar_select %p42, %s43, %s44
      %p48 = pneg %p42
      %p49 = scmp.eq.s32.totalorder %s12, 1
      %p50 = por %p48, %p49
      %p51 = scmp.ne.s32.totalorder %s43, %s46
      %p52 = scmp.eq.s32.totalorder %s12, 0
      %p53 = por %p51, %p52
      %p54 = scmp.ne.s32.totalorder %s43, %s46
      %p55 = scmp.eq.s32.totalorder %s17, 1
      %p56 = por %p54, %p55
      %p57 = scmp.ne.s32.totalorder %s46, %s47
      %p58 = scmp.eq.s32.totalorder %s17, 0
      %p59 = por %p57, %p58
      %p60 = scmp.ne.s32.totalorder %s46, %s47
      %p61 = scmp.eq.s32.totalorder %s18, 1
      %p62 = por %p60, %p61
      %p64 = scmp.ne.s32.totalorder %s47, %s63
      %p65 = scmp.eq.s32.totalorder %s18, 0
      %p66 = por %p64, %p65
      %s67 = ssub.s32 %s12, %s19
      %p68 = scmp.eq.s32.totalorder %s67, 0
      %s70 = sadd.s32 %s69, 1
      %s71 = scalar_select %p68, %s69, %s70
      %p74 = pneg %p68
      %p75 = scmp.eq.s32.totalorder %s12, 1
      %p76 = por %p74, %p75
      %p77 = scmp.ne.s32.totalorder %s69, %s72
      %p78 = scmp.eq.s32.totalorder %s12, 0
      %p79 = por %p77, %p78
      %p80 = scmp.ne.s32.totalorder %s69, %s72
      %p81 = scmp.eq.s32.totalorder %s17, 1
      %p82 = por %p80, %p81
      %p83 = scmp.ne.s32.totalorder %s72, %s73
      %p84 = scmp.eq.s32.totalorder %s17, 0
      %p85 = por %p83, %p84
      %p86 = scmp.ne.s32.totalorder %s72, %s73
      %p87 = scmp.eq.s32.totalorder %s18, 1
      %p88 = por %p86, %p87
      %p90 = scmp.ne.s32.totalorder %s73, %s89
      %p91 = scmp.eq.s32.totalorder %s18, 0
      %p92 = por %p90, %p91
      %s93 = ssub.s32 %s12, %s19
      %p94 = scmp.eq.s32.totalorder %s93, 0
      %s96 = sadd.s32 %s95, 1
      %s97 = scalar_select %p94, %s95, %s96
      %p100 = pneg %p94
      %p101 = scmp.eq.s32.totalorder %s12, 1
      %p102 = por %p100, %p101
      %p103 = scmp.ne.s32.totalorder %s95, %s98
      %p104 = scmp.eq.s32.totalorder %s12, 0
      %p105 = por %p103, %p104
      %p106 = scmp.ne.s32.totalorder %s95, %s98
      %p107 = scmp.eq.s32.totalorder %s17, 1
      %p108 = por %p106, %p107
      %p109 = scmp.ne.s32.totalorder %s98, %s99
      %p110 = scmp.eq.s32.totalorder %s17, 0
      %p111 = por %p109, %p110
      %p112 = scmp.ne.s32.totalorder %s98, %s99
      %p113 = scmp.eq.s32.totalorder %s18, 1
      %p114 = por %p112, %p113
      %p116 = scmp.ne.s32.totalorder %s99, %s115
      %p117 = scmp.eq.s32.totalorder %s18, 0
      %p118 = por %p116, %p117
      %p119 = scmp.le.s32.totalorder 1, %s12
      %p120 = scmp.lt.s32.totalorder %s12, 3
      %p121 = pnand %p119, %p120
      %p122 = pneg %p121
      // Predicated region
      $region9: #{decoder_forward.3} parent=5 // pred_check
        _
      $region10: #{decoder_forward.3} parent=5 // pred_check_branch
        %124 = sbr.rel (%p121) target = $region12
      $region11: #{decoder_forward.3} parent=5 // pred_region
        %s125 = ssub.s32 %s12, 1
        // Predicated region
        $region13: #{decoder_forward.3} parent=11 // pred_check
          %p126 = pneg %p33
        $region14: #{decoder_forward.3} parent=11 // pred_check_branch
          %128 = sbr.rel (%p126) target = $region16
        $region15: #{decoder_forward.3} parent=11 // pred_region
          _
        $region16: #{decoder_forward.3} parent=11 // pred_fallthru
          _
      $region12: #{decoder_forward.3} parent=5 // pred_fallthru
        _
      %p129 = scmp.lt.s32.totalorder %s12, 2
      // Predicated region
      $region17: #{decoder_forward.3} parent=5 // pred_check
        %p130 = pneg %p129
      $region18: #{decoder_forward.3} parent=5 // pred_check_branch
        %132 = sbr.rel (%p130) target = $region20
      $region19: #{decoder_forward.3} parent=5 // pred_region
        // Predicated region
        $region21: #{decoder_forward.3} parent=19 // pred_check
          %p133 = pneg %p53
        $region22: #{decoder_forward.3} parent=19 // pred_check_branch
          %135 = sbr.rel (%p133) target = $region24
        $region23: #{decoder_forward.3} parent=19 // pred_region
          %s136 = sand.u32 %s43, 1
          %s137 = sand.u32 %s43, 1
          %s138 = smul.addr %s137, 64
          %s139 = scalar_lea.vmem [#allocation2], %s138
          %s140 = smul.addr %s12, 4
          %s141 = scalar_lea.vmem %s1, %s140
          // Predicated region
          $region25: #{decoder_forward.3} parent=23 // pred_check
            _
          $region26: #{decoder_forward.3} parent=23 // pred_check_branch
            %143 = sbr.rel (0) target = $region28
          $region27: #{decoder_forward.3} parent=23 // pred_region
            // Predicated region
            $region29: #{decoder_forward.3} parent=27 // pred_check
              _
            $region30: #{decoder_forward.3} parent=27 // pred_check_branch
              %145 = sbr.rel target = $region32
            $region31: #{decoder_forward.3} parent=27 // pred_region
              // Predicated region
              $region44: #{decoder_forward.3} parent=31 // pred_check
                _
              $region45: #{decoder_forward.3} parent=31 // pred_check_branch
                %190 = sbr.rel (0) target = $region47
              $region46: #{decoder_forward.3} parent=31 // pred_region
                loop: start=0, step=1, limit=1
                $region48: #{decoder_forward.3} parent=46 // loop_pre_header
                  _
                $region49: #{decoder_forward.3} parent=46 // loop_header
                  %s192 = sphi 0, %s196
                  %p193 = scmp.ge.s32.totalorder %s192, 1
                  %s197 = sphi %s141, %s141
                  %s198 = sphi %s139, %s139
                $region50: #{decoder_forward.3} parent=46 // loop_header_branch
                  %195 = sbr.rel (%p193) target = $region54
                $region51: #{decoder_forward.3} parent=46 // loop_body
                  _
                $region52: #{decoder_forward.3} parent=46 // loop_footer
                  %s196 = sadd.s32 1, %s192
                $region53: #{decoder_forward.3} parent=46 // loop_footer_branch
                  %191 = sbr.rel target = $region49
                $region54: #{decoder_forward.3} parent=46 // loop_exit
                  _
                loop: start=0, step=1, limit=1
                $region55: #{decoder_forward.3} parent=46 // loop_pre_header
                  _
                $region56: #{decoder_forward.3} parent=46 // loop_header
                  %s201 = sphi 0, %s205
                  %p202 = scmp.ge.s32.totalorder %s201, 1
                  %s206 = sphi %s141, %s141
                  %s207 = sphi %s139, %s139
                $region57: #{decoder_forward.3} parent=46 // loop_header_branch
                  %204 = sbr.rel (%p202) target = $region61
                $region58: #{decoder_forward.3} parent=46 // loop_body
                  %v208 = vld [vmem:[%s206] sm:$0xf]
                  %209 = vst [vmem:[%s207] sm:$0xf] %v208
                  %v210 = vld [vmem:[%s206 + $0x8] sm:$0xf]
                  %211 = vst [vmem:[%s207 + $0x4] sm:$0xf] %v210
                  %v212 = vld [vmem:[%s206 + $0x10] sm:$0xf]
                  %213 = vst [vmem:[%s207 + $0x8] sm:$0xf] %v212
                  %v214 = vld [vmem:[%s206 + $0x18] sm:$0xf]
                  %215 = vst [vmem:[%s207 + $0xc] sm:$0xf] %v214
                  %v216 = vld [vmem:[%s206 + $0x20] sm:$0xf]
                  %217 = vst [vmem:[%s207 + $0x10] sm:$0xf] %v216
                  %v218 = vld [vmem:[%s206 + $0x28] sm:$0xf]
                  %219 = vst [vmem:[%s207 + $0x14] sm:$0xf] %v218
                  %v220 = vld [vmem:[%s206 + $0x30] sm:$0xf]
                  %221 = vst [vmem:[%s207 + $0x18] sm:$0xf] %v220
                  %v222 = vld [vmem:[%s206 + $0x38] sm:$0xf]
                  %223 = vst [vmem:[%s207 + $0x1c] sm:$0xf] %v222
                  %v224 = vld [vmem:[%s206 + $0x40] sm:$0xf]
                  %225 = vst [vmem:[%s207 + $0x20] sm:$0xf] %v224
                  %v226 = vld [vmem:[%s206 + $0x48] sm:$0xf]
                  %227 = vst [vmem:[%s207 + $0x24] sm:$0xf] %v226
                  %v228 = vld [vmem:[%s206 + $0x50] sm:$0xf]
                  %229 = vst [vmem:[%s207 + $0x28] sm:$0xf] %v228
                  %v230 = vld [vmem:[%s206 + $0x58] sm:$0xf]
                  %231 = vst [vmem:[%s207 + $0x2c] sm:$0xf] %v230
                  %v232 = vld [vmem:[%s206 + $0x60] sm:$0xf]
                  %233 = vst [vmem:[%s207 + $0x30] sm:$0xf] %v232
                  %v234 = vld [vmem:[%s206 + $0x68] sm:$0xf]
                  %235 = vst [vmem:[%s207 + $0x34] sm:$0xf] %v234
                  %v236 = vld [vmem:[%s206 + $0x70] sm:$0xf]
                  %237 = vst [vmem:[%s207 + $0x38] sm:$0xf] %v236
                  %v238 = vld [vmem:[%s206 + $0x78] sm:$0xf]
                  %239 = vst [vmem:[%s207 + $0x3c] sm:$0xf] %v238
                $region59: #{decoder_forward.3} parent=46 // loop_footer
                  %s205 = sadd.s32 1, %s201
                $region60: #{decoder_forward.3} parent=46 // loop_footer_branch
                  %200 = sbr.rel target = $region56
                $region61: #{decoder_forward.3} parent=46 // loop_exit
                  _
              $region47: #{decoder_forward.3} parent=31 // pred_fallthru
                _
            $region32: #{decoder_forward.3} parent=27 // pred_fallthru
              _
            // Predicated region
            $region33: #{decoder_forward.3} parent=27 // pred_check
              _
            $region34: #{decoder_forward.3} parent=27 // pred_check_branch
              %147 = sbr.rel (0) target = $region36
            $region35: #{decoder_forward.3} parent=27 // pred_region
              loop: start=0, step=1, limit=1
              $region37: #{decoder_forward.3} parent=35 // loop_pre_header
                _
              $region38: #{decoder_forward.3} parent=35 // loop_header
                %s150 = sphi 0, %s154
                %p151 = scmp.ge.s32.totalorder %s150, 1
                %s155 = sphi %s141, %s141
                %s156 = sphi %s139, %s139
              $region39: #{decoder_forward.3} parent=35 // loop_header_branch
                %153 = sbr.rel (%p151) target = $region43
              $region40: #{decoder_forward.3} parent=35 // loop_body
                %v157 = vld [vmem:[%s155] sm:$0xf]
                %158 = vst [vmem:[%s156] sm:$0xf] %v157
                %v159 = vld [vmem:[%s155 + $0x8] sm:$0xf]
                %160 = vst [vmem:[%s156 + $0x4] sm:$0xf] %v159
                %v161 = vld [vmem:[%s155 + $0x10] sm:$0xf]
                %162 = vst [vmem:[%s156 + $0x8] sm:$0xf] %v161
                %v163 = vld [vmem:[%s155 + $0x18] sm:$0xf]
                %164 = vst [vmem:[%s156 + $0xc] sm:$0xf] %v163
                %v165 = vld [vmem:[%s155 + $0x20] sm:$0xf]
                %166 = vst [vmem:[%s156 + $0x10] sm:$0xf] %v165
                %v167 = vld [vmem:[%s155 + $0x28] sm:$0xf]
                %168 = vst [vmem:[%s156 + $0x14] sm:$0xf] %v167
                %v169 = vld [vmem:[%s155 + $0x30] sm:$0xf]
                %170 = vst [vmem:[%s156 + $0x18] sm:$0xf] %v169
                %v171 = vld [vmem:[%s155 + $0x38] sm:$0xf]
                %172 = vst [vmem:[%s156 + $0x1c] sm:$0xf] %v171
                %v173 = vld [vmem:[%s155 + $0x40] sm:$0xf]
                %174 = vst [vmem:[%s156 + $0x20] sm:$0xf] %v173
                %v175 = vld [vmem:[%s155 + $0x48] sm:$0xf]
                %176 = vst [vmem:[%s156 + $0x24] sm:$0xf] %v175
                %v177 = vld [vmem:[%s155 + $0x50] sm:$0xf]
                %178 = vst [vmem:[%s156 + $0x28] sm:$0xf] %v177
                %v179 = vld [vmem:[%s155 + $0x58] sm:$0xf]
                %180 = vst [vmem:[%s156 + $0x2c] sm:$0xf] %v179
                %v181 = vld [vmem:[%s155 + $0x60] sm:$0xf]
                %182 = vst [vmem:[%s156 + $0x30] sm:$0xf] %v181
                %v183 = vld [vmem:[%s155 + $0x68] sm:$0xf]
                %184 = vst [vmem:[%s156 + $0x34] sm:$0xf] %v183
                %v185 = vld [vmem:[%s155 + $0x70] sm:$0xf]
                %186 = vst [vmem:[%s156 + $0x38] sm:$0xf] %v185
                %v187 = vld [vmem:[%s155 + $0x78] sm:$0xf]
                %188 = vst [vmem:[%s156 + $0x3c] sm:$0xf] %v187
              $region41: #{decoder_forward.3} parent=35 // loop_footer
                %s154 = sadd.s32 1, %s150
              $region42: #{decoder_forward.3} parent=35 // loop_footer_branch
                %149 = sbr.rel target = $region38
              $region43: #{decoder_forward.3} parent=35 // loop_exit
                _
            $region36: #{decoder_forward.3} parent=27 // pred_fallthru
              _
          $region28: #{decoder_forward.3} parent=23 // pred_fallthru
            _
          %240 = vnop
        $region24: #{decoder_forward.3} parent=19 // pred_fallthru
          _
        // Predicated region
        $region62: #{decoder_forward.3} parent=19 // pred_check
          %p241 = pneg %p79
        $region63: #{decoder_forward.3} parent=19 // pred_check_branch
          %243 = sbr.rel (%p241) target = $region65
        $region64: #{decoder_forward.3} parent=19 // pred_region
          %p244 = scmp.lt.s32.totalorder %s12, 1
          %s245 = scalar_select %p244, %s12, 1
          %s246 = scalar_lea.vmem %s2, %s245
        $region65: #{decoder_forward.3} parent=19 // pred_fallthru
          _
      $region20: #{decoder_forward.3} parent=5 // pred_fallthru
        _
      %p247 = scmp.le.s32.totalorder 1, %s12
      %p248 = scmp.lt.s32.totalorder %s12, 3
      %p249 = pnand %p247, %p248
      %p250 = pneg %p249
      // Predicated region
      $region66: #{decoder_forward.3} parent=5 // pred_check
        _
      $region67: #{decoder_forward.3} parent=5 // pred_check_branch
        %252 = sbr.rel (%p249) target = $region69
      $region68: #{decoder_forward.3} parent=5 // pred_region
        %s253 = ssub.s32 %s12, 1
        %s254 = sand.u32 %s46, 1
        %s255 = sand.u32 %s46, 1
        %s256 = smul.addr %s255, 64
        %s257 = scalar_lea.vmem [#allocation2], %s256
        // Predicated region
        $region70: #{decoder_forward.3} parent=68 // pred_check
          %p258 = pneg %p59
        $region71: #{decoder_forward.3} parent=68 // pred_check_branch
          %260 = sbr.rel (%p258) target = $region73
        $region72: #{decoder_forward.3} parent=68 // pred_region
          _
        $region73: #{decoder_forward.3} parent=68 // pred_fallthru
          _
        %p261 = pneg %p33
        %p262 = pneg %p30
        %s263 = sand.u32 %s46, 1
        %s264 = sand.u32 %s46, 1
        %s265 = smul.addr %s264, 64
        %s266 = scalar_lea.vmem [#allocation2], %s265
        %p267 = pneg %p59
        %p268 = pneg %p56
        %p269 = scmp.lt.s32.totalorder %s17, 1
        %s270 = scalar_select %p269, %s17, 1
        %s271 = scalar_lea.vmem %s2, %s270
        %p272 = pneg %p85
        %p273 = pneg %p82
        %p274 = pneg %p111
        %p275 = pneg %p108
        %s276 = sand.u32 %s98, 1
        %s277 = scalar_lea.sflag [#allocation4], %s276
        %s278 = sand.u32 %s98, 1
        %s279 = smul.addr %s278, 64
        %s280 = scalar_lea.vmem [#allocation3], %s279
        %p281 = scmp.lt.s32.totalorder %s17, 1
        %s282 = scalar_select %p281, %s17, 1
        %s283 = scalar_lea.vmem %s2, %s282
        %v285 = vld [vmem:[%s0] sm:$0xf]
        %v286 = vld [vmem:[%s0 + $0x4] sm:$0xf]
        %v287 = vld [vmem:[%s0 + $0x8] sm:$0xf]
        %v288 = vld [vmem:[%s0 + $0xc] sm:$0xf]
        %v289 = vld [vmem:[%s0 + $0x10] sm:$0xf]
        %v290 = vld [vmem:[%s0 + $0x14] sm:$0xf]
        %v291 = vld [vmem:[%s0 + $0x18] sm:$0xf]
        %v292 = vld [vmem:[%s0 + $0x1c] sm:$0xf]
        %v293 = vld [vmem:[%s257] sm:$0xf]
        %v294 = vld [vmem:[%s257 + $0x4] sm:$0xf]
        %v295 = vld [vmem:[%s257 + $0x8] sm:$0xf]
        %v296 = vld [vmem:[%s257 + $0xc] sm:$0xf]
        %v297 = vld [vmem:[%s257 + $0x10] sm:$0xf]
        %v298 = vld [vmem:[%s257 + $0x14] sm:$0xf]
        %v299 = vld [vmem:[%s257 + $0x18] sm:$0xf]
        %v300 = vld [vmem:[%s257 + $0x1c] sm:$0xf]
        %v301 = vld [vmem:[%s257 + $0x20] sm:$0xf]
        %v302 = vld [vmem:[%s257 + $0x24] sm:$0xf]
        %v303 = vld [vmem:[%s257 + $0x28] sm:$0xf]
        %v304 = vld [vmem:[%s257 + $0x2c] sm:$0xf]
        %v305 = vld [vmem:[%s257 + $0x30] sm:$0xf]
        %v306 = vld [vmem:[%s257 + $0x34] sm:$0xf]
        %v307 = vld [vmem:[%s257 + $0x38] sm:$0xf]
        %v308 = vld [vmem:[%s257 + $0x3c] sm:$0xf]
        %v309 = vld [vmem:[%s283] sm:$0x1]
        %v311 = vlaneseq
        %v312 = vshrl.u32 %v311, 7
        %v313 = vsub.s32 0, %v312
        %v314 = vrot.slane %v309, %v313
        %v324 = vunpack.c.l.b16 %v285
        %v325 = vunpack.c.l.b16 %v286
        %v326 = vunpack.c.l.b16 %v287
        %v327 = vunpack.c.l.b16 %v288
        %v328 = vunpack.c.l.b16 %v289
        %v329 = vunpack.c.l.b16 %v290
        %v330 = vunpack.c.l.b16 %v291
        %v331 = vunpack.c.l.b16 %v292
        %v332 = vpack.c.b16 %v325, %v324
        %v333 = vpack.c.b16 %v327, %v326
        %v334 = vpack.c.b16 %v329, %v328
        %v335 = vpack.c.b16 %v331, %v330
        %v356 = vunpack.c.l.b16 %v293
        %v357 = vunpack.c.l.b16 %v294
        %v358 = vunpack.c.l.b16 %v295
        %v359 = vunpack.c.l.b16 %v296
        %v360 = vunpack.c.l.b16 %v297
        %v361 = vunpack.c.l.b16 %v298
        %v362 = vunpack.c.l.b16 %v299
        %v363 = vunpack.c.l.b16 %v300
        %v364 = vunpack.c.l.b16 %v301
        %v365 = vunpack.c.l.b16 %v302
        %v366 = vunpack.c.l.b16 %v303
        %v367 = vunpack.c.l.b16 %v304
        %v368 = vunpack.c.l.b16 %v305
        %v369 = vunpack.c.l.b16 %v306
        %v370 = vunpack.c.l.b16 %v307
        %v371 = vunpack.c.l.b16 %v308
        %v372 = vpack.c.b16 %v357, %v356
        %v373 = vpack.c.b16 %v359, %v358
        %v374 = vpack.c.b16 %v361, %v360
        %v375 = vpack.c.b16 %v363, %v362
        %v376 = vpack.c.b16 %v365, %v364
        %v377 = vpack.c.b16 %v367, %v366
        %v378 = vpack.c.b16 %v369, %v368
        %v379 = vpack.c.b16 %v371, %v370
        %388 = vmatprep.subr.bf16.mxu0 0
        %389 = vmatpush1.bf16.msra.mxu0 %v372
        %390 = vmatprep.subr.bf16.mxu0 0
        %391 = vmatpush1.bf16.msra.mxu0 %v373
        %392 = vmatprep.subr.bf16.mxu0 0
        %393 = vmatpush1.bf16.msra.mxu0 %v374
        %394 = vmatprep.subr.bf16.mxu0 0
        %395 = vmatpush1.bf16.msra.mxu0 %v375
        %396 = vmatprep.subr.bf16.mxu0 0
        %397 = vmatpush1.bf16.msra.mxu0 %v376
        %398 = vmatprep.subr.bf16.mxu0 0
        %399 = vmatpush1.bf16.msra.mxu0 %v377
        %400 = vmatprep.subr.bf16.mxu0 0
        %401 = vmatpush1.bf16.msra.mxu0 %v378
        %402 = vmatprep.subr.bf16.mxu0 0
        %403 = vmatpush1.bf16.msra.mxu0 %v379
        %404 = vmatprep.subr.bf16.mxu0 0
        %405 = vmatpush1.bf16.msra.mxu0 0
        %406 = vmatprep.subr.bf16.mxu0 0
        %407 = vmatpush1.bf16.msra.mxu0 0
        %408 = vmatprep.subr.bf16.mxu0 0
        %409 = vmatpush1.bf16.msra.mxu0 0
        %410 = vmatprep.subr.bf16.mxu0 0
        %411 = vmatpush1.bf16.msra.mxu0 0
        %412 = vmatprep.subr.bf16.mxu0 0
        %413 = vmatpush1.bf16.msra.mxu0 0
        %414 = vmatprep.subr.bf16.mxu0 0
        %415 = vmatpush1.bf16.msra.mxu0 0
        %416 = vmatprep.subr.bf16.mxu0 0
        %417 = vmatpush1.bf16.msra.mxu0 0
        %418 = vmatprep.subr.bf16.mxu0 0
        %419 = vmatpush1.bf16.msra.mxu0 0
        %420 = vmatprep.mubr.bf16.mxu0 0
        %421 = vmatmul.mubr.bf16.gmra.mrb[0].mxu0 %v332
        %v422 = vpop.f32.mrb[0].mxu0
        %v423 = vadd.f32 %v314, %v422
        %v424 = vpop.f32.mrb[0].mxu0
        %v425 = vpop.f32.mrb[0].mxu0
        %v426 = vadd.f32 %v314, %v425
        %v427 = vpop.f32.mrb[0].mxu0
        %428 = vmatprep.mubr.bf16.mxu0 0
        %429 = vmatmul.mubr.bf16.gmra.mrb[0].mxu0 %v333
        %v430 = vpop.f32.mrb[0].mxu0
        %v431 = vadd.f32 %v314, %v430
        %v432 = vpop.f32.mrb[0].mxu0
        %v433 = vpop.f32.mrb[0].mxu0
        %v434 = vadd.f32 %v314, %v433
        %v435 = vpop.f32.mrb[0].mxu0
        %436 = vmatprep.mubr.bf16.mxu0 0
        %437 = vmatmul.mubr.bf16.gmra.mrb[0].mxu0 %v334
        %v438 = vpop.f32.mrb[0].mxu0
        %v439 = vadd.f32 %v314, %v438
        %v440 = vpop.f32.mrb[0].mxu0
        %v441 = vpop.f32.mrb[0].mxu0
        %v442 = vadd.f32 %v314, %v441
        %v443 = vpop.f32.mrb[0].mxu0
        %444 = vmatprep.mubr.bf16.mxu0 0
        %445 = vmatmul.mubr.bf16.gmra.mrb[0].mxu0 %v335
        %v446 = vpop.f32.mrb[0].mxu0
        %v447 = vadd.f32 %v314, %v446
        %v448 = vpop.f32.mrb[0].mxu0
        %v449 = vpop.f32.mrb[0].mxu0
        %v450 = vadd.f32 %v314, %v449
        %v451 = vpop.f32.mrb[0].mxu0
        %452 = vdwg.mxu0
        %453 = vst [vmem:[%s280] sm:$0xff] %v423
        %454 = vst [vmem:[%s280 + $0x8] sm:$0xff] %v426
        %455 = vst [vmem:[%s280 + $0x10] sm:$0xff] %v431
        %456 = vst [vmem:[%s280 + $0x18] sm:$0xff] %v434
        %457 = vst [vmem:[%s280 + $0x20] sm:$0xff] %v439
        %458 = vst [vmem:[%s280 + $0x28] sm:$0xff] %v442
        %459 = vst [vmem:[%s280 + $0x30] sm:$0xff] %v447
        %460 = vst [vmem:[%s280 + $0x38] sm:$0xff] %v450
        %s461 = sand.u32 %s98, 1
        %s462 = scalar_lea.sflag [#allocation4], %s461
        %s463 = sand.u32 %s98, 1
        %s464 = smul.addr %s463, 64
        %s465 = scalar_lea.vmem [#allocation3], %s464
        // Predicated region
        $region74: #{decoder_forward.3} parent=68 // pred_check
          %p466 = pneg %p108
        $region75: #{decoder_forward.3} parent=68 // pred_check_branch
          %468 = sbr.rel (%p466) target = $region77
        $region76: #{decoder_forward.3} parent=68 // pred_region
          %s470 = ssub.s32 1024, 1024
          %471 = vsyncadd %s462, %s470
          %s472 = smul.addr %s17, 128
          %s473 = scalar_lea.hbm %s3, %s472
          %s474 = sshll.u32 %s465, 4
          %s475 = int_to_ptr.vmem [resolvable:$true] %s474
          %480 = dma.vmem_to_hbm [thread:$0]  %s475, 1024, %s473, %s462, 128, 256, 8
        $region77: #{decoder_forward.3} parent=68 // pred_fallthru
          _
      $region69: #{decoder_forward.3} parent=5 // pred_fallthru
        _
      %p481 = scmp.le.s32.totalorder 2, %s12
      // Predicated region
      $region78: #{decoder_forward.3} parent=5 // pred_check
        %p482 = pneg %p481
      $region79: #{decoder_forward.3} parent=5 // pred_check_branch
        %484 = sbr.rel (%p482) target = $region81
      $region80: #{decoder_forward.3} parent=5 // pred_region
        %s485 = ssub.s32 %s12, 2
        // Predicated region
        $region82: #{decoder_forward.3} parent=80 // pred_check
          %p486 = pneg %p114
        $region83: #{decoder_forward.3} parent=80 // pred_check_branch
          %488 = sbr.rel (%p486) target = $region85
        $region84: #{decoder_forward.3} parent=80 // pred_region
          %s489 = sand.u32 %s99, 1
          %s490 = scalar_lea.sflag [#allocation4], %s489
          %s491 = sand.u32 %s99, 1
          %s492 = smul.addr %s491, 64
          %s493 = scalar_lea.vmem [#allocation3], %s492
          %494 = dma.done %s490, 1024
        $region85: #{decoder_forward.3} parent=80 // pred_fallthru
          _
      $region81: #{decoder_forward.3} parent=5 // pred_fallthru
        _
    $region6: #{decoder_forward.3} parent=1 // loop_footer
      %s16 = sadd.s32 1, %s12
    $region7: #{decoder_forward.3} parent=1 // loop_footer_branch
      %11 = sbr.rel target = $region3
    $region8: #{decoder_forward.3} parent=1 // loop_exit
      _
    %495 = vsyncpa [#allocation4], 1
    %s496 = scalar_lea.sflag [#allocation4], 1
    %497 = vsyncpa %s496, 1

// kernel: decoder_forward.2
$region0: #{decoder_forward.2}
  #allocation0 [shape = 'u32[]', space=smem, size = 0x4, offset = 0x4, fixed_abs, tag = 'smem constant byte address 0x4 - core index']
  #allocation1 [shape = 'u32[144,128]{1,0:T(1,128)}', space=vmem, size = 0x12000, scoped, tag = 'internal scratch']
  #allocation2 [shape = 'f32[56,512]{1,0:T(8,128)}', space=vmem, size = 0x1c000, scoped, tag = 'scratch operand']
  %s0 = inlined_call_operand.vmem [shape: bf16[56,128], index: 0, kind: input, shape index: {}]
  %s1 = inlined_call_operand.vmem [shape: f32[8,128], index: 1, kind: input, shape index: {}]
  %s2 = inlined_call_operand.vmem [shape: bf16[128,512], index: 2, kind: input, shape index: {}]
  %s3 = inlined_call_operand.vmem [shape: bf16[128,512], index: 3, kind: input, shape index: {}]
  %s4 = inlined_call_operand.vmem [shape: f32[1,512], index: 4, kind: input, shape index: {}]
  %s5 = inlined_call_operand.vmem [shape: bf16[8,1024], index: 5, kind: output, shape index: {}]
  %s6 = sld [smem:[#allocation0]]
  $region30: #{decoder_forward.2} parent=0
    _
  %s8 = ssub.s32 1, %s6
  %s9 = scalar_select 0, %s8, %s6
  // Predicated region
  $region2: #{decoder_forward.2} parent=0 // pred_check
    _
  $region3: #{decoder_forward.2} parent=0 // pred_check_branch
    %11 = sbr.rel (0) target = $region5
  $region4: #{decoder_forward.2} parent=0 // pred_region
    _
  $region5: #{decoder_forward.2} parent=0 // pred_fallthru
    _
  // Predicated region
  $region6: #{decoder_forward.2} parent=0 // pred_check
    _
  $region7: #{decoder_forward.2} parent=0 // pred_check_branch
    %13 = sbr.rel (0) target = $region9
  $region8: #{decoder_forward.2} parent=0 // pred_region
    _
  $region9: #{decoder_forward.2} parent=0 // pred_fallthru
    _
  // Predicated region
  $region10: #{decoder_forward.2} parent=0 // pred_check
    _
  $region11: #{decoder_forward.2} parent=0 // pred_check_branch
    %15 = sbr.rel (0) target = $region13
  $region12: #{decoder_forward.2} parent=0 // pred_region
    _
  $region13: #{decoder_forward.2} parent=0 // pred_fallthru
    _
  // Predicated region
  $region14: #{decoder_forward.2} parent=0 // pred_check
    _
  $region15: #{decoder_forward.2} parent=0 // pred_check_branch
    %17 = sbr.rel (0) target = $region17
  $region16: #{decoder_forward.2} parent=0 // pred_region
    _
  $region17: #{decoder_forward.2} parent=0 // pred_fallthru
    _
  // Predicated region
  $region18: #{decoder_forward.2} parent=0 // pred_check
    _
  $region19: #{decoder_forward.2} parent=0 // pred_check_branch
    %19 = sbr.rel (0) target = $region21
  $region20: #{decoder_forward.2} parent=0 // pred_region
    _
  $region21: #{decoder_forward.2} parent=0 // pred_fallthru
    _
  %v21 = vld [vmem:[%s0] sm:$0xf]
  %v22 = vld [vmem:[%s0 + $0x4] sm:$0xf]
  %v23 = vld [vmem:[%s0 + $0x8] sm:$0xf]
  %v24 = vld [vmem:[%s0 + $0xc] sm:$0xf]
  %v25 = vld [vmem:[%s0 + $0x10] sm:$0xf]
  %v26 = vld [vmem:[%s0 + $0x14] sm:$0xf]
  %v27 = vld [vmem:[%s0 + $0x18] sm:$0xf]
  %v28 = vld [vmem:[%s2] sm:$0xff]
  %v29 = vld [vmem:[%s2 + $0x8] sm:$0xff]
  %v30 = vld [vmem:[%s2 + $0x10] sm:$0xff]
  %v31 = vld [vmem:[%s2 + $0x18] sm:$0xff]
  %v32 = vld [vmem:[%s2 + $0x20] sm:$0xff]
  %v33 = vld [vmem:[%s2 + $0x28] sm:$0xff]
  %v34 = vld [vmem:[%s2 + $0x30] sm:$0xff]
  %v35 = vld [vmem:[%s2 + $0x38] sm:$0xff]
  %v36 = vld [vmem:[%s2 + $0x40] sm:$0xff]
  %v37 = vld [vmem:[%s2 + $0x48] sm:$0xff]
  %v38 = vld [vmem:[%s2 + $0x50] sm:$0xff]
  %v39 = vld [vmem:[%s2 + $0x58] sm:$0xff]
  %v40 = vld [vmem:[%s2 + $0x60] sm:$0xff]
  %v41 = vld [vmem:[%s2 + $0x68] sm:$0xff]
  %v42 = vld [vmem:[%s2 + $0x70] sm:$0xff]
  %v43 = vld [vmem:[%s2 + $0x78] sm:$0xff]
  %v44 = vld [vmem:[%s2 + $0x80] sm:$0xff]
  %v45 = vld [vmem:[%s2 + $0x88] sm:$0xff]
  %v46 = vld [vmem:[%s2 + $0x90] sm:$0xff]
  %v47 = vld [vmem:[%s2 + $0x98] sm:$0xff]
  %v48 = vld [vmem:[%s2 + $0xa0] sm:$0xff]
  %v49 = vld [vmem:[%s2 + $0xa8] sm:$0xff]
  %v50 = vld [vmem:[%s2 + $0xb0] sm:$0xff]
  %v51 = vld [vmem:[%s2 + $0xb8] sm:$0xff]
  %v52 = vld [vmem:[%s2 + $0xc0] sm:$0xff]
  %v53 = vld [vmem:[%s2 + $0xc8] sm:$0xff]
  %v54 = vld [vmem:[%s2 + $0xd0] sm:$0xff]
  %v55 = vld [vmem:[%s2 + $0xd8] sm:$0xff]
  %v56 = vld [vmem:[%s2 + $0xe0] sm:$0xff]
  %v57 = vld [vmem:[%s2 + $0xe8] sm:$0xff]
  %v58 = vld [vmem:[%s2 + $0xf0] sm:$0xff]
  %v59 = vld [vmem:[%s2 + $0xf8] sm:$0xff]
  %v60 = vld [vmem:[%s4] sm:$0xf]
  %v62 = vlaneseq
  %v63 = vshrl.u32 %v62, 7
  %v64 = vsub.s32 0, %v63
  %v65 = vrot.slane %v60, %v64
  %v66 = vlaneseq
  %v67 = vshrl.u32 %v66, 7
  %v68 = vsub.s32 1, %v67
  %v69 = vrot.slane %v60, %v68
  %v70 = vlaneseq
  %v71 = vshrl.u32 %v70, 7
  %v72 = vsub.s32 2, %v71
  %v73 = vrot.slane %v60, %v72
  %v74 = vlaneseq
  %v75 = vshrl.u32 %v74, 7
  %v76 = vsub.s32 3, %v75
  %v77 = vrot.slane %v60, %v76
  %v89 = vunpack.c.l.b16 %v21
  %v90 = vunpack.c.l.b16 %v22
  %v91 = vunpack.c.l.b16 %v23
  %v92 = vunpack.c.l.b16 %v24
  %v93 = vunpack.c.l.b16 %v25
  %v94 = vunpack.c.l.b16 %v26
  %v95 = vunpack.c.l.b16 %v27
  %v96 = vpack.c.b16 %v90, %v89
  %v97 = vpack.c.b16 %v92, %v91
  %v98 = vpack.c.b16 %v94, %v93
  %v99 = vpack.c.b16 %v95, %v95
  %v136 = vunpack.c.l.b16 %v28
  %v137 = vunpack.c.h.b16 %v28
  %v138 = vunpack.c.l.b16 %v29
  %v139 = vunpack.c.h.b16 %v29
  %v140 = vunpack.c.l.b16 %v30
  %v141 = vunpack.c.h.b16 %v30
  %v142 = vunpack.c.l.b16 %v31
  %v143 = vunpack.c.h.b16 %v31
  %v144 = vunpack.c.l.b16 %v32
  %v145 = vunpack.c.h.b16 %v32
  %v146 = vunpack.c.l.b16 %v33
  %v147 = vunpack.c.h.b16 %v33
  %v148 = vunpack.c.l.b16 %v34
  %v149 = vunpack.c.h.b16 %v34
  %v150 = vunpack.c.l.b16 %v35
  %v151 = vunpack.c.h.b16 %v35
  %v152 = vunpack.c.l.b16 %v36
  %v153 = vunpack.c.h.b16 %v36
  %v154 = vunpack.c.l.b16 %v37
  %v155 = vunpack.c.h.b16 %v37
  %v156 = vunpack.c.l.b16 %v38
  %v157 = vunpack.c.h.b16 %v38
  %v158 = vunpack.c.l.b16 %v39
  %v159 = vunpack.c.h.b16 %v39
  %v160 = vunpack.c.l.b16 %v40
  %v161 = vunpack.c.h.b16 %v40
  %v162 = vunpack.c.l.b16 %v41
  %v163 = vunpack.c.h.b16 %v41
  %v164 = vunpack.c.l.b16 %v42
  %v165 = vunpack.c.h.b16 %v42
  %v166 = vunpack.c.l.b16 %v43
  %v167 = vunpack.c.h.b16 %v43
  %v168 = vunpack.c.l.b16 %v44
  %v169 = vunpack.c.h.b16 %v44
  %v170 = vunpack.c.l.b16 %v45
  %v171 = vunpack.c.h.b16 %v45
  %v172 = vunpack.c.l.b16 %v46
  %v173 = vunpack.c.h.b16 %v46
  %v174 = vunpack.c.l.b16 %v47
  %v175 = vunpack.c.h.b16 %v47
  %v176 = vunpack.c.l.b16 %v48
  %v177 = vunpack.c.h.b16 %v48
  %v178 = vunpack.c.l.b16 %v49
  %v179 = vunpack.c.h.b16 %v49
  %v180 = vunpack.c.l.b16 %v50
  %v181 = vunpack.c.h.b16 %v50
  %v182 = vunpack.c.l.b16 %v51
  %v183 = vunpack.c.h.b16 %v51
  %v184 = vunpack.c.l.b16 %v52
  %v185 = vunpack.c.h.b16 %v52
  %v186 = vunpack.c.l.b16 %v53
  %v187 = vunpack.c.h.b16 %v53
  %v188 = vunpack.c.l.b16 %v54
  %v189 = vunpack.c.h.b16 %v54
  %v190 = vunpack.c.l.b16 %v55
  %v191 = vunpack.c.h.b16 %v55
  %v192 = vunpack.c.l.b16 %v56
  %v193 = vunpack.c.h.b16 %v56
  %v194 = vunpack.c.l.b16 %v57
  %v195 = vunpack.c.h.b16 %v57
  %v196 = vunpack.c.l.b16 %v58
  %v197 = vunpack.c.h.b16 %v58
  %v198 = vunpack.c.l.b16 %v59
  %v199 = vunpack.c.h.b16 %v59
  %v200 = vpack.c.b16 %v140, %v136
  %v201 = vpack.c.b16 %v141, %v137
  %v202 = vpack.c.b16 %v142, %v138
  %v203 = vpack.c.b16 %v143, %v139
  %v204 = vpack.c.b16 %v148, %v144
  %v205 = vpack.c.b16 %v149, %v145
  %v206 = vpack.c.b16 %v150, %v146
  %v207 = vpack.c.b16 %v151, %v147
  %v208 = vpack.c.b16 %v156, %v152
  %v209 = vpack.c.b16 %v157, %v153
  %v210 = vpack.c.b16 %v158, %v154
  %v211 = vpack.c.b16 %v159, %v155
  %v212 = vpack.c.b16 %v164, %v160
  %v213 = vpack.c.b16 %v165, %v161
  %v214 = vpack.c.b16 %v166, %v162
  %v215 = vpack.c.b16 %v167, %v163
  %v216 = vpack.c.b16 %v172, %v168
  %v217 = vpack.c.b16 %v173, %v169
  %v218 = vpack.c.b16 %v174, %v170
  %v219 = vpack.c.b16 %v175, %v171
  %v220 = vpack.c.b16 %v180, %v176
  %v221 = vpack.c.b16 %v181, %v177
  %v222 = vpack.c.b16 %v182, %v178
  %v223 = vpack.c.b16 %v183, %v179
  %v224 = vpack.c.b16 %v188, %v184
  %v225 = vpack.c.b16 %v189, %v185
  %v226 = vpack.c.b16 %v190, %v186
  %v227 = vpack.c.b16 %v191, %v187
  %v228 = vpack.c.b16 %v196, %v192
  %v229 = vpack.c.b16 %v197, %v193
  %v230 = vpack.c.b16 %v198, %v194
  %v231 = vpack.c.b16 %v199, %v195
  %264 = vmatprep.subr.bf16.mxu0 %v201
  %265 = vmatpush1.bf16.msra.mxu0 %v200
  %266 = vmatprep.subr.bf16.mxu0 %v205
  %267 = vmatpush1.bf16.msra.mxu0 %v204
  %268 = vmatprep.subr.bf16.mxu0 %v209
  %269 = vmatpush1.bf16.msra.mxu0 %v208
  %270 = vmatprep.subr.bf16.mxu0 %v213
  %271 = vmatpush1.bf16.msra.mxu0 %v212
  %272 = vmatprep.subr.bf16.mxu0 %v217
  %273 = vmatpush1.bf16.msra.mxu0 %v216
  %274 = vmatprep.subr.bf16.mxu0 %v221
  %275 = vmatpush1.bf16.msra.mxu0 %v220
  %276 = vmatprep.subr.bf16.mxu0 %v225
  %277 = vmatpush1.bf16.msra.mxu0 %v224
  %278 = vmatprep.subr.bf16.mxu0 %v229
  %279 = vmatpush1.bf16.msra.mxu0 %v228
  %280 = vmatprep.subr.bf16.mxu0 0
  %281 = vmatpush1.bf16.msra.mxu0 0
  %282 = vmatprep.subr.bf16.mxu0 0
  %283 = vmatpush1.bf16.msra.mxu0 0
  %284 = vmatprep.subr.bf16.mxu0 0
  %285 = vmatpush1.bf16.msra.mxu0 0
  %286 = vmatprep.subr.bf16.mxu0 0
  %287 = vmatpush1.bf16.msra.mxu0 0
  %288 = vmatprep.subr.bf16.mxu0 0
  %289 = vmatpush1.bf16.msra.mxu0 0
  %290 = vmatprep.subr.bf16.mxu0 0
  %291 = vmatpush1.bf16.msra.mxu0 0
  %292 = vmatprep.subr.bf16.mxu0 0
  %293 = vmatpush1.bf16.msra.mxu0 0
  %294 = vmatprep.subr.bf16.mxu0 0
  %295 = vmatpush1.bf16.msra.mxu0 0
  %296 = vmatprep.mubr.bf16.mxu0 0
  %297 = vmatmul.mubr.bf16.gmra.mrb[0].mxu0 %v96
  %v298 = vpop.f32.mrb[0].mxu0
  %v299 = vadd.f32 %v65, %v298
  %v300 = vpop.f32.mrb[0].mxu0
  %v301 = vadd.f32 %v69, %v300
  %v302 = vpop.f32.mrb[0].mxu0
  %v303 = vadd.f32 %v65, %v302
  %v304 = vpop.f32.mrb[0].mxu0
  %v305 = vadd.f32 %v69, %v304
  %306 = vmatprep.mubr.bf16.mxu0 0
  %307 = vmatmul.mubr.bf16.gmra.mrb[0].mxu0 %v97
  %v308 = vpop.f32.mrb[0].mxu0
  %v309 = vadd.f32 %v65, %v308
  %v310 = vpop.f32.mrb[0].mxu0
  %v311 = vadd.f32 %v69, %v310
  %v312 = vpop.f32.mrb[0].mxu0
  %v313 = vadd.f32 %v65, %v312
  %v314 = vpop.f32.mrb[0].mxu0
  %v315 = vadd.f32 %v69, %v314
  %316 = vmatprep.mubr.bf16.mxu0 0
  %317 = vmatmul.mubr.bf16.gmra.mrb[0].mxu0 %v98
  %v318 = vpop.f32.mrb[0].mxu0
  %v319 = vadd.f32 %v65, %v318
  %v320 = vpop.f32.mrb[0].mxu0
  %v321 = vadd.f32 %v69, %v320
  %v322 = vpop.f32.mrb[0].mxu0
  %v323 = vadd.f32 %v65, %v322
  %v324 = vpop.f32.mrb[0].mxu0
  %v325 = vadd.f32 %v69, %v324
  %326 = vmatprep.mubr.bf16.mxu0 0
  %327 = vmatmul.mubr.bf16.gmra.mrb[0].mxu0 %v99
  %v328 = vpop.f32.mrb[0].mxu0
  %v329 = vadd.f32 %v65, %v328
  %v330 = vpop.f32.mrb[0].mxu0
  %v331 = vadd.f32 %v69, %v330
  %v332 = vpop.f32.mrb[0].mxu0
  %v333 = vpop.f32.mrb[0].mxu0
  %334 = vdwg.mxu0
  %335 = vmatprep.subr.bf16.mxu0 %v203
  %336 = vmatpush1.bf16.msra.mxu0 %v202
  %337 = vmatprep.subr.bf16.mxu0 %v207
  %338 = vmatpush1.bf16.msra.mxu0 %v206
  %339 = vmatprep.subr.bf16.mxu0 %v211
  %340 = vmatpush1.bf16.msra.mxu0 %v210
  %341 = vmatprep.subr.bf16.mxu0 %v215
  %342 = vmatpush1.bf16.msra.mxu0 %v214
  %343 = vmatprep.subr.bf16.mxu0 %v219
  %344 = vmatpush1.bf16.msra.mxu0 %v218
  %345 = vmatprep.subr.bf16.mxu0 %v223
  %346 = vmatpush1.bf16.msra.mxu0 %v222
  %347 = vmatprep.subr.bf16.mxu0 %v227
  %348 = vmatpush1.bf16.msra.mxu0 %v226
  %349 = vmatprep.subr.bf16.mxu0 %v231
  %350 = vmatpush1.bf16.msra.mxu0 %v230
  %351 = vmatprep.subr.bf16.mxu0 0
  %352 = vmatpush1.bf16.msra.mxu0 0
  %353 = vmatprep.subr.bf16.mxu0 0
  %354 = vmatpush1.bf16.msra.mxu0 0
  %355 = vmatprep.subr.bf16.mxu0 0
  %356 = vmatpush1.bf16.msra.mxu0 0
  %357 = vmatprep.subr.bf16.mxu0 0
  %358 = vmatpush1.bf16.msra.mxu0 0
  %359 = vmatprep.subr.bf16.mxu0 0
  %360 = vmatpush1.bf16.msra.mxu0 0
  %361 = vmatprep.subr.bf16.mxu0 0
  %362 = vmatpush1.bf16.msra.mxu0 0
  %363 = vmatprep.subr.bf16.mxu0 0
  %364 = vmatpush1.bf16.msra.mxu0 0
  %365 = vmatprep.subr.bf16.mxu0 0
  %366 = vmatpush1.bf16.msra.mxu0 0
  %367 = vmatprep.mubr.bf16.mxu0 0
  %368 = vmatmul.mubr.bf16.gmra.mrb[0].mxu0 %v96
  %v369 = vpop.f32.mrb[0].mxu0
  %v370 = vadd.f32 %v73, %v369
  %v371 = vpop.f32.mrb[0].mxu0
  %v372 = vadd.f32 %v77, %v371
  %v373 = vpop.f32.mrb[0].mxu0
  %v374 = vadd.f32 %v73, %v373
  %v375 = vpop.f32.mrb[0].mxu0
  %v376 = vadd.f32 %v77, %v375
  %377 = vmatprep.mubr.bf16.mxu0 0
  %378 = vmatmul.mubr.bf16.gmra.mrb[0].mxu0 %v97
  %v379 = vpop.f32.mrb[0].mxu0
  %v380 = vadd.f32 %v73, %v379
  %v381 = vpop.f32.mrb[0].mxu0
  %v382 = vadd.f32 %v77, %v381
  %v383 = vpop.f32.mrb[0].mxu0
  %v384 = vadd.f32 %v73, %v383
  %v385 = vpop.f32.mrb[0].mxu0
  %v386 = vadd.f32 %v77, %v385
  %387 = vmatprep.mubr.bf16.mxu0 0
  %388 = vmatmul.mubr.bf16.gmra.mrb[0].mxu0 %v98
  %v389 = vpop.f32.mrb[0].mxu0
  %v390 = vadd.f32 %v73, %v389
  %v391 = vpop.f32.mrb[0].mxu0
  %v392 = vadd.f32 %v77, %v391
  %v393 = vpop.f32.mrb[0].mxu0
  %v394 = vadd.f32 %v73, %v393
  %v395 = vpop.f32.mrb[0].mxu0
  %v396 = vadd.f32 %v77, %v395
  %397 = vmatprep.mubr.bf16.mxu0 0
  %398 = vmatmul.mubr.bf16.gmra.mrb[0].mxu0 %v99
  %v399 = vpop.f32.mrb[0].mxu0
  %v400 = vadd.f32 %v73, %v399
  %v401 = vpop.f32.mrb[0].mxu0
  %v402 = vadd.f32 %v77, %v401
  %v403 = vpop.f32.mrb[0].mxu0
  %v404 = vpop.f32.mrb[0].mxu0
  %405 = vdwg.mxu0
  %406 = vst [vmem:[#allocation2] sm:$0xff] %v299
  %407 = vst [vmem:[#allocation2 + $0x8] sm:$0xff] %v301
  %408 = vst [vmem:[#allocation2 + $0x10] sm:$0xff] %v370
  %409 = vst [vmem:[#allocation2 + $0x18] sm:$0xff] %v372
  %410 = vst [vmem:[#allocation2 + $0x20] sm:$0xff] %v303
  %411 = vst [vmem:[#allocation2 + $0x28] sm:$0xff] %v305
  %412 = vst [vmem:[#allocation2 + $0x30] sm:$0xff] %v374
  %413 = vst [vmem:[#allocation2 + $0x38] sm:$0xff] %v376
  %414 = vst [vmem:[#allocation2 + $0x40] sm:$0xff] %v309
  %415 = vst [vmem:[#allocation2 + $0x48] sm:$0xff] %v311
  %416 = vst [vmem:[#allocation2 + $0x50] sm:$0xff] %v380
  %417 = vst [vmem:[#allocation2 + $0x58] sm:$0xff] %v382
  %418 = vst [vmem:[#allocation2 + $0x60] sm:$0xff] %v313
  %419 = vst [vmem:[#allocation2 + $0x68] sm:$0xff] %v315
  %420 = vst [vmem:[#allocation2 + $0x70] sm:$0xff] %v384
  %421 = vst [vmem:[#allocation2 + $0x78] sm:$0xff] %v386
  %422 = vst [vmem:[#allocation2 + $0x80] sm:$0xff] %v319
  %423 = vst [vmem:[#allocation2 + $0x88] sm:$0xff] %v321
  %424 = vst [vmem:[#allocation2 + $0x90] sm:$0xff] %v390
  %425 = vst [vmem:[#allocation2 + $0x98] sm:$0xff] %v392
  %426 = vst [vmem:[#allocation2 + $0xa0] sm:$0xff] %v323
  %427 = vst [vmem:[#allocation2 + $0xa8] sm:$0xff] %v325
  %428 = vst [vmem:[#allocation2 + $0xb0] sm:$0xff] %v394
  %429 = vst [vmem:[#allocation2 + $0xb8] sm:$0xff] %v396
  %430 = vst [vmem:[#allocation2 + $0xc0] sm:$0xff] %v329
  %431 = vst [vmem:[#allocation2 + $0xc8] sm:$0xff] %v331
  %432 = vst [vmem:[#allocation2 + $0xd0] sm:$0xff] %v400
  %433 = vst [vmem:[#allocation2 + $0xd8] sm:$0xff] %v402
  %v434 = vld [vmem:[%s0] sm:$0xf]
  %435 = vst [vmem:[%s5] sm:$0xf] %v434
  %v436 = vld [vmem:[%s1] sm:$0xff]
  %v437 = vld [vmem:[#allocation2] sm:$0xff]
  %v438 = vld [vmem:[#allocation2 + $0x8] sm:$0xff]
  %v439 = vld [vmem:[#allocation2 + $0x10] sm:$0xff]
  %v440 = vld [vmem:[#allocation2 + $0x18] sm:$0xff]
  %v441 = vld [vmem:[%s3] sm:$0xff]
  %v442 = vld [vmem:[%s3 + $0x8] sm:$0xff]
  %v443 = vld [vmem:[%s3 + $0x10] sm:$0xff]
  %v444 = vld [vmem:[%s3 + $0x18] sm:$0xff]
  %v445 = vld [vmem:[%s3 + $0x20] sm:$0xff]
  %v446 = vld [vmem:[%s3 + $0x28] sm:$0xff]
  %v447 = vld [vmem:[%s3 + $0x30] sm:$0xff]
  %v448 = vld [vmem:[%s3 + $0x38] sm:$0xff]
  %v449 = vld [vmem:[%s3 + $0x40] sm:$0xff]
  %v450 = vld [vmem:[%s3 + $0x48] sm:$0xff]
  %v451 = vld [vmem:[%s3 + $0x50] sm:$0xff]
  %v452 = vld [vmem:[%s3 + $0x58] sm:$0xff]
  %v453 = vld [vmem:[%s3 + $0x60] sm:$0xff]
  %v454 = vld [vmem:[%s3 + $0x68] sm:$0xff]
  %v455 = vld [vmem:[%s3 + $0x70] sm:$0xff]
  %v456 = vld [vmem:[%s3 + $0x78] sm:$0xff]
  %v457 = vld [vmem:[%s3 + $0x80] sm:$0xff]
  %v458 = vld [vmem:[%s3 + $0x88] sm:$0xff]
  %v459 = vld [vmem:[%s3 + $0x90] sm:$0xff]
  %v460 = vld [vmem:[%s3 + $0x98] sm:$0xff]
  %v461 = vld [vmem:[%s3 + $0xa0] sm:$0xff]
  %v462 = vld [vmem:[%s3 + $0xa8] sm:$0xff]
  %v463 = vld [vmem:[%s3 + $0xb0] sm:$0xff]
  %v464 = vld [vmem:[%s3 + $0xb8] sm:$0xff]
  %v465 = vld [vmem:[%s3 + $0xc0] sm:$0xff]
  %v466 = vld [vmem:[%s3 + $0xc8] sm:$0xff]
  %v467 = vld [vmem:[%s3 + $0xd0] sm:$0xff]
  %v468 = vld [vmem:[%s3 + $0xd8] sm:$0xff]
  %v469 = vld [vmem:[%s3 + $0xe0] sm:$0xff]
  %v470 = vld [vmem:[%s3 + $0xe8] sm:$0xff]
  %v471 = vld [vmem:[%s3 + $0xf0] sm:$0xff]
  %v472 = vld [vmem:[%s3 + $0xf8] sm:$0xff]
  %v505 = vunpack.c.l.b16 %v441
  %v506 = vunpack.c.h.b16 %v441
  %v507 = vunpack.c.l.b16 %v442
  %v508 = vunpack.c.h.b16 %v442
  %v509 = vunpack.c.l.b16 %v443
  %v510 = vunpack.c.h.b16 %v443
  %v511 = vunpack.c.l.b16 %v444
  %v512 = vunpack.c.h.b16 %v444
  %v513 = vunpack.c.l.b16 %v445
  %v514 = vunpack.c.h.b16 %v445
  %v515 = vunpack.c.l.b16 %v446
  %v516 = vunpack.c.h.b16 %v446
  %v517 = vunpack.c.l.b16 %v447
  %v518 = vunpack.c.h.b16 %v447
  %v519 = vunpack.c.l.b16 %v448
  %v520 = vunpack.c.h.b16 %v448
  %v521 = vunpack.c.l.b16 %v449
  %v522 = vunpack.c.h.b16 %v449
  %v523 = vunpack.c.l.b16 %v450
  %v524 = vunpack.c.h.b16 %v450
  %v525 = vunpack.c.l.b16 %v451
  %v526 = vunpack.c.h.b16 %v451
  %v527 = vunpack.c.l.b16 %v452
  %v528 = vunpack.c.h.b16 %v452
  %v529 = vunpack.c.l.b16 %v453
  %v530 = vunpack.c.h.b16 %v453
  %v531 = vunpack.c.l.b16 %v454
  %v532 = vunpack.c.h.b16 %v454
  %v533 = vunpack.c.l.b16 %v455
  %v534 = vunpack.c.h.b16 %v455
  %v535 = vunpack.c.l.b16 %v456
  %v536 = vunpack.c.h.b16 %v456
  %v537 = vunpack.c.l.b16 %v457
  %v538 = vunpack.c.h.b16 %v457
  %v539 = vunpack.c.l.b16 %v458
  %v540 = vunpack.c.h.b16 %v458
  %v541 = vunpack.c.l.b16 %v459
  %v542 = vunpack.c.h.b16 %v459
  %v543 = vunpack.c.l.b16 %v460
  %v544 = vunpack.c.h.b16 %v460
  %v545 = vunpack.c.l.b16 %v461
  %v546 = vunpack.c.h.b16 %v461
  %v547 = vunpack.c.l.b16 %v462
  %v548 = vunpack.c.h.b16 %v462
  %v549 = vunpack.c.l.b16 %v463
  %v550 = vunpack.c.h.b16 %v463
  %v551 = vunpack.c.l.b16 %v464
  %v552 = vunpack.c.h.b16 %v464
  %v553 = vunpack.c.l.b16 %v465
  %v554 = vunpack.c.h.b16 %v465
  %v555 = vunpack.c.l.b16 %v466
  %v556 = vunpack.c.h.b16 %v466
  %v557 = vunpack.c.l.b16 %v467
  %v558 = vunpack.c.h.b16 %v467
  %v559 = vunpack.c.l.b16 %v468
  %v560 = vunpack.c.h.b16 %v468
  %v561 = vunpack.c.l.b16 %v469
  %v562 = vunpack.c.h.b16 %v469
  %v563 = vunpack.c.l.b16 %v470
  %v564 = vunpack.c.h.b16 %v470
  %v565 = vunpack.c.l.b16 %v471
  %v566 = vunpack.c.h.b16 %v471
  %v567 = vunpack.c.l.b16 %v472
  %v568 = vunpack.c.h.b16 %v472
  %v569 = vpack.c.b16 %v509, %v505
  %v570 = vpack.c.b16 %v510, %v506
  %v571 = vpack.c.b16 %v511, %v507
  %v572 = vpack.c.b16 %v512, %v508
  %v573 = vpack.c.b16 %v517, %v513
  %v574 = vpack.c.b16 %v518, %v514
  %v575 = vpack.c.b16 %v519, %v515
  %v576 = vpack.c.b16 %v520, %v516
  %v577 = vpack.c.b16 %v525, %v521
  %v578 = vpack.c.b16 %v526, %v522
  %v579 = vpack.c.b16 %v527, %v523
  %v580 = vpack.c.b16 %v528, %v524
  %v581 = vpack.c.b16 %v533, %v529
  %v582 = vpack.c.b16 %v534, %v530
  %v583 = vpack.c.b16 %v535, %v531
  %v584 = vpack.c.b16 %v536, %v532
  %v585 = vpack.c.b16 %v541, %v537
  %v586 = vpack.c.b16 %v542, %v538
  %v587 = vpack.c.b16 %v543, %v539
  %v588 = vpack.c.b16 %v544, %v540
  %v589 = vpack.c.b16 %v549, %v545
  %v590 = vpack.c.b16 %v550, %v546
  %v591 = vpack.c.b16 %v551, %v547
  %v592 = vpack.c.b16 %v552, %v548
  %v593 = vpack.c.b16 %v557, %v553
  %v594 = vpack.c.b16 %v558, %v554
  %v595 = vpack.c.b16 %v559, %v555
  %v596 = vpack.c.b16 %v560, %v556
  %v597 = vpack.c.b16 %v565, %v561
  %v598 = vpack.c.b16 %v566, %v562
  %v599 = vpack.c.b16 %v567, %v563
  %v600 = vpack.c.b16 %v568, %v564
  %633 = vmatprep.subr.bf16.mxu0 %v570
  %634 = vmatpush1.bf16.msra.mxu0 %v569
  %635 = vmatprep.subr.bf16.mxu0 %v574
  %636 = vmatpush1.bf16.msra.mxu0 %v573
  %637 = vmatprep.subr.bf16.mxu0 %v578
  %638 = vmatpush1.bf16.msra.mxu0 %v577
  %639 = vmatprep.subr.bf16.mxu0 %v582
  %640 = vmatpush1.bf16.msra.mxu0 %v581
  %641 = vmatprep.subr.bf16.mxu0 %v586
  %642 = vmatpush1.bf16.msra.mxu0 %v585
  %643 = vmatprep.subr.bf16.mxu0 %v590
  %644 = vmatpush1.bf16.msra.mxu0 %v589
  %645 = vmatprep.subr.bf16.mxu0 %v594
  %646 = vmatpush1.bf16.msra.mxu0 %v593
  %647 = vmatprep.subr.bf16.mxu0 %v598
  %648 = vmatpush1.bf16.msra.mxu0 %v597
  %649 = vmatprep.subr.bf16.mxu0 0
  %650 = vmatpush1.bf16.msra.mxu0 0
  %651 = vmatprep.subr.bf16.mxu0 0
  %652 = vmatpush1.bf16.msra.mxu0 0
  %653 = vmatprep.subr.bf16.mxu0 0
  %654 = vmatpush1.bf16.msra.mxu0 0
  %655 = vmatprep.subr.bf16.mxu0 0
  %656 = vmatpush1.bf16.msra.mxu0 0
  %657 = vmatprep.subr.bf16.mxu0 0
  %658 = vmatpush1.bf16.msra.mxu0 0
  %659 = vmatprep.subr.bf16.mxu0 0
  %660 = vmatpush1.bf16.msra.mxu0 0
  %661 = vmatprep.subr.bf16.mxu0 0
  %662 = vmatpush1.bf16.msra.mxu0 0
  %663 = vmatprep.subr.bf16.mxu0 0
  %664 = vmatpush1.bf16.msra.mxu0 0
  %665 = vmatprep.mubr.bf16.mxu0 0
  %666 = vmatmul.mubr.bf16.gmra.mrb[0].mxu0 0
  %v667 = vpop.f32.mrb[0].mxu0
  %v668 = vadd.f32 0.0, %v667
  %v669 = vpop.f32.mrb[0].mxu0
  %v670 = vadd.f32 0.0, %v669
  %v671 = vpop.f32.mrb[0].mxu0
  %v672 = vpop.f32.mrb[0].mxu0
  %673 = vdwg.mxu0
  %674 = vmatprep.subr.bf16.mxu0 %v572
  %675 = vmatpush1.bf16.msra.mxu0 %v571
  %676 = vmatprep.subr.bf16.mxu0 %v576
  %677 = vmatpush1.bf16.msra.mxu0 %v575
  %678 = vmatprep.subr.bf16.mxu0 %v580
  %679 = vmatpush1.bf16.msra.mxu0 %v579
  %680 = vmatprep.subr.bf16.mxu0 %v584
  %681 = vmatpush1.bf16.msra.mxu0 %v583
  %682 = vmatprep.subr.bf16.mxu0 %v588
  %683 = vmatpush1.bf16.msra.mxu0 %v587
  %684 = vmatprep.subr.bf16.mxu0 %v592
  %685 = vmatpush1.bf16.msra.mxu0 %v591
  %686 = vmatprep.subr.bf16.mxu0 %v596
  %687 = vmatpush1.bf16.msra.mxu0 %v595
  %688 = vmatprep.subr.bf16.mxu0 %v600
  %689 = vmatpush1.bf16.msra.mxu0 %v599
  %690 = vmatprep.subr.bf16.mxu0 0
  %691 = vmatpush1.bf16.msra.mxu0 0
  %692 = vmatprep.subr.bf16.mxu0 0
  %693 = vmatpush1.bf16.msra.mxu0 0
  %694 = vmatprep.subr.bf16.mxu0 0
  %695 = vmatpush1.bf16.msra.mxu0 0
  %696 = vmatprep.subr.bf16.mxu0 0
  %697 = vmatpush1.bf16.msra.mxu0 0
  %698 = vmatprep.subr.bf16.mxu0 0
  %699 = vmatpush1.bf16.msra.mxu0 0
  %700 = vmatprep.subr.bf16.mxu0 0
  %701 = vmatpush1.bf16.msra.mxu0 0
  %702 = vmatprep.subr.bf16.mxu0 0
  %703 = vmatpush1.bf16.msra.mxu0 0
  %704 = vmatprep.subr.bf16.mxu0 0
  %705 = vmatpush1.bf16.msra.mxu0 0
  %706 = vmatprep.mubr.bf16.mxu0 0
  %707 = vmatmul.mubr.bf16.gmra.mrb[0].mxu0 0
  %v708 = vpop.f32.mrb[0].mxu0
  %v709 = vadd.f32 0.0, %v708
  %v710 = vpop.f32.mrb[0].mxu0
  %v711 = vadd.f32 0.0, %v710
  %v712 = vpop.f32.mrb[0].mxu0
  %v713 = vpop.f32.mrb[0].mxu0
  %714 = vdwg.mxu0
  %v715 = vadd.f32 %v437, %v668
  %v716 = vadd.f32 %v438, %v670
  %v717 = vadd.f32 %v439, %v709
  %v718 = vadd.f32 %v440, %v711
  %v719 = vxor.u32 %v715, 2147483648
  %v720 = vmul.f32 %v719, 1.442695
  %v721 = vpow.pop %v720
  %v722 = vadd.f32 %v721, 1.0
  %v723 = vrcp.pop %v722
  %v724 = vmul.f32 1.0, %v723
  %v725 = vxor.u32 %v716, 2147483648
  %v726 = vmul.f32 %v725, 1.442695
  %v727 = vpow.pop %v726
  %v728 = vadd.f32 %v727, 1.0
  %v729 = vrcp.pop %v728
  %v730 = vmul.f32 1.0, %v729
  %v731 = vtanh.pop %v717
  %v732 = vxor.u32 %v718, 2147483648
  %v733 = vmul.f32 %v732, 1.442695
  %v734 = vpow.pop %v733
  %v735 = vadd.f32 %v734, 1.0
  %v736 = vrcp.pop %v735
  %v737 = vmul.f32 1.0, %v736
  %v738 = vmul.f32 %v730, %v436
  %v739 = vmul.f32 %v724, %v731
  %v740 = vadd.f32 %v738, %v739
  %v741 = vtanh.pop %v740
  %v742 = vmul.f32 %v737, %v741
  %v743 = vpack.c.bf16 %v742, %v742
  %744 = vst [vmem:[%s5 + $0x4] sm:$0xf] %v743
  %v745 = vld [vmem:[#allocation2 + $0x20] sm:$0xff]
  %v746 = vld [vmem:[#allocation2 + $0x28] sm:$0xff]
  %v747 = vld [vmem:[#allocation2 + $0x30] sm:$0xff]
  %v748 = vld [vmem:[#allocation2 + $0x38] sm:$0xff]
  %v749 = vld [vmem:[%s3] sm:$0xff]
  %v750 = vld [vmem:[%s3 + $0x8] sm:$0xff]
  %v751 = vld [vmem:[%s3 + $0x10] sm:$0xff]
  %v752 = vld [vmem:[%s3 + $0x18] sm:$0xff]
  %v753 = vld [vmem:[%s3 + $0x20] sm:$0xff]
  %v754 = vld [vmem:[%s3 + $0x28] sm:$0xff]
  %v755 = vld [vmem:[%s3 + $0x30] sm:$0xff]
  %v756 = vld [vmem:[%s3 + $0x38] sm:$0xff]
  %v757 = vld [vmem:[%s3 + $0x40] sm:$0xff]
  %v758 = vld [vmem:[%s3 + $0x48] sm:$0xff]
  %v759 = vld [vmem:[%s3 + $0x50] sm:$0xff]
  %v760 = vld [vmem:[%s3 + $0x58] sm:$0xff]
  %v761 = vld [vmem:[%s3 + $0x60] sm:$0xff]
  %v762 = vld [vmem:[%s3 + $0x68] sm:$0xff]
  %v763 = vld [vmem:[%s3 + $0x70] sm:$0xff]
  %v764 = vld [vmem:[%s3 + $0x78] sm:$0xff]
  %v765 = vld [vmem:[%s3 + $0x80] sm:$0xff]
  %v766 = vld [vmem:[%s3 + $0x88] sm:$0xff]
  %v767 = vld [vmem:[%s3 + $0x90] sm:$0xff]
  %v768 = vld [vmem:[%s3 + $0x98] sm:$0xff]
  %v769 = vld [vmem:[%s3 + $0xa0] sm:$0xff]
  %v770 = vld [vmem:[%s3 + $0xa8] sm:$0xff]
  %v771 = vld [vmem:[%s3 + $0xb0] sm:$0xff]
  %v772 = vld [vmem:[%s3 + $0xb8] sm:$0xff]
  %v773 = vld [vmem:[%s3 + $0xc0] sm:$0xff]
  %v774 = vld [vmem:[%s3 + $0xc8] sm:$0xff]
  %v775 = vld [vmem:[%s3 + $0xd0] sm:$0xff]
  %v776 = vld [vmem:[%s3 + $0xd8] sm:$0xff]
  %v777 = vld [vmem:[%s3 + $0xe0] sm:$0xff]
  %v778 = vld [vmem:[%s3 + $0xe8] sm:$0xff]
  %v779 = vld [vmem:[%s3 + $0xf0] sm:$0xff]
  %v780 = vld [vmem:[%s3 + $0xf8] sm:$0xff]
  %v813 = vunpack.c.l.b16 %v749
  %v814 = vunpack.c.h.b16 %v749
  %v815 = vunpack.c.l.b16 %v750
  %v816 = vunpack.c.h.b16 %v750
  %v817 = vunpack.c.l.b16 %v751
  %v818 = vunpack.c.h.b16 %v751
  %v819 = vunpack.c.l.b16 %v752
  %v820 = vunpack.c.h.b16 %v752
  %v821 = vunpack.c.l.b16 %v753
  %v822 = vunpack.c.h.b16 %v753
  %v823 = vunpack.c.l.b16 %v754
  %v824 = vunpack.c.h.b16 %v754
  %v825 = vunpack.c.l.b16 %v755
  %v826 = vunpack.c.h.b16 %v755
  %v827 = vunpack.c.l.b16 %v756
  %v828 = vunpack.c.h.b16 %v756
  %v829 = vunpack.c.l.b16 %v757
  %v830 = vunpack.c.h.b16 %v757
  %v831 = vunpack.c.l.b16 %v758
  %v832 = vunpack.c.h.b16 %v758
  %v833 = vunpack.c.l.b16 %v759
  %v834 = vunpack.c.h.b16 %v759
  %v835 = vunpack.c.l.b16 %v760
  %v836 = vunpack.c.h.b16 %v760
  %v837 = vunpack.c.l.b16 %v761
  %v838 = vunpack.c.h.b16 %v761
  %v839 = vunpack.c.l.b16 %v762
  %v840 = vunpack.c.h.b16 %v762
  %v841 = vunpack.c.l.b16 %v763
  %v842 = vunpack.c.h.b16 %v763
  %v843 = vunpack.c.l.b16 %v764
  %v844 = vunpack.c.h.b16 %v764
  %v845 = vunpack.c.l.b16 %v765
  %v846 = vunpack.c.h.b16 %v765
  %v847 = vunpack.c.l.b16 %v766
  %v848 = vunpack.c.h.b16 %v766
  %v849 = vunpack.c.l.b16 %v767
  %v850 = vunpack.c.h.b16 %v767
  %v851 = vunpack.c.l.b16 %v768
  %v852 = vunpack.c.h.b16 %v768
  %v853 = vunpack.c.l.b16 %v769
  %v854 = vunpack.c.h.b16 %v769
  %v855 = vunpack.c.l.b16 %v770
  %v856 = vunpack.c.h.b16 %v770
  %v857 = vunpack.c.l.b16 %v771
  %v858 = vunpack.c.h.b16 %v771
  %v859 = vunpack.c.l.b16 %v772
  %v860 = vunpack.c.h.b16 %v772
  %v861 = vunpack.c.l.b16 %v773
  %v862 = vunpack.c.h.b16 %v773
  %v863 = vunpack.c.l.b16 %v774
  %v864 = vunpack.c.h.b16 %v774
  %v865 = vunpack.c.l.b16 %v775
  %v866 = vunpack.c.h.b16 %v775
  %v867 = vunpack.c.l.b16 %v776
  %v868 = vunpack.c.h.b16 %v776
  %v869 = vunpack.c.l.b16 %v777
  %v870 = vunpack.c.h.b16 %v777
  %v871 = vunpack.c.l.b16 %v778
  %v872 = vunpack.c.h.b16 %v778
  %v873 = vunpack.c.l.b16 %v779
  %v874 = vunpack.c.h.b16 %v779
  %v875 = vunpack.c.l.b16 %v780
  %v876 = vunpack.c.h.b16 %v780
  %v877 = vpack.c.b16 %v817, %v813
  %v878 = vpack.c.b16 %v818, %v814
  %v879 = vpack.c.b16 %v819, %v815
  %v880 = vpack.c.b16 %v820, %v816
  %v881 = vpack.c.b16 %v825, %v821
  %v882 = vpack.c.b16 %v826, %v822
  %v883 = vpack.c.b16 %v827, %v823
  %v884 = vpack.c.b16 %v828, %v824
  %v885 = vpack.c.b16 %v833, %v829
  %v886 = vpack.c.b16 %v834, %v830
  %v887 = vpack.c.b16 %v835, %v831
  %v888 = vpack.c.b16 %v836, %v832
  %v889 = vpack.c.b16 %v841, %v837
  %v890 = vpack.c.b16 %v842, %v838
  %v891 = vpack.c.b16 %v843, %v839
  %v892 = vpack.c.b16 %v844, %v840
  %v893 = vpack.c.b16 %v849, %v845
  %v894 = vpack.c.b16 %v850, %v846
  %v895 = vpack.c.b16 %v851, %v847
  %v896 = vpack.c.b16 %v852, %v848
  %v897 = vpack.c.b16 %v857, %v853
  %v898 = vpack.c.b16 %v858, %v854
  %v899 = vpack.c.b16 %v859, %v855
  %v900 = vpack.c.b16 %v860, %v856
  %v901 = vpack.c.b16 %v865, %v861
  %v902 = vpack.c.b16 %v866, %v862
  %v903 = vpack.c.b16 %v867, %v863
  %v904 = vpack.c.b16 %v868, %v864
  %v905 = vpack.c.b16 %v873, %v869
  %v906 = vpack.c.b16 %v874, %v870
  %v907 = vpack.c.b16 %v875, %v871
  %v908 = vpack.c.b16 %v876, %v872
  %941 = vmatprep.subr.bf16.mxu0 %v878
  %942 = vmatpush1.bf16.msra.mxu0 %v877
  %943 = vmatprep.subr.bf16.mxu0 %v882
  %944 = vmatpush1.bf16.msra.mxu0 %v881
  %945 = vmatprep.subr.bf16.mxu0 %v886
  %946 = vmatpush1.bf16.msra.mxu0 %v885
  %947 = vmatprep.subr.bf16.mxu0 %v890
  %948 = vmatpush1.bf16.msra.mxu0 %v889
  %949 = vmatprep.subr.bf16.mxu0 %v894
  %950 = vmatpush1.bf16.msra.mxu0 %v893
  %951 = vmatprep.subr.bf16.mxu0 %v898
  %952 = vmatpush1.bf16.msra.mxu0 %v897
  %953 = vmatprep.subr.bf16.mxu0 %v902
  %954 = vmatpush1.bf16.msra.mxu0 %v901
  %955 = vmatprep.subr.bf16.mxu0 %v906
  %956 = vmatpush1.bf16.msra.mxu0 %v905
  %957 = vmatprep.subr.bf16.mxu0 0
  %958 = vmatpush1.bf16.msra.mxu0 0
  %959 = vmatprep.subr.bf16.mxu0 0
  %960 = vmatpush1.bf16.msra.mxu0 0
  %961 = vmatprep.subr.bf16.mxu0 0
  %962 = vmatpush1.bf16.msra.mxu0 0
  %963 = vmatprep.subr.bf16.mxu0 0
  %964 = vmatpush1.bf16.msra.mxu0 0
  %965 = vmatprep.subr.bf16.mxu0 0
  %966 = vmatpush1.bf16.msra.mxu0 0
  %967 = vmatprep.subr.bf16.mxu0 0
  %968 = vmatpush1.bf16.msra.mxu0 0
  %969 = vmatprep.subr.bf16.mxu0 0
  %970 = vmatpush1.bf16.msra.mxu0 0
  %971 = vmatprep.subr.bf16.mxu0 0
  %972 = vmatpush1.bf16.msra.mxu0 0
  %973 = vmatprep.mubr.bf16.mxu0 0
  %974 = vmatmul.mubr.bf16.gmra.mrb[0].mxu0 %v743
  %v975 = vpop.f32.mrb[0].mxu0
  %v976 = vadd.f32 0.0, %v975
  %v977 = vpop.f32.mrb[0].mxu0
  %v978 = vadd.f32 0.0, %v977
  %v979 = vpop.f32.mrb[0].mxu0
  %v980 = vpop.f32.mrb[0].mxu0
  %981 = vdwg.mxu0
  %982 = vmatprep.subr.bf16.mxu0 %v880
  %983 = vmatpush1.bf16.msra.mxu0 %v879
  %984 = vmatprep.subr.bf16.mxu0 %v884
  %985 = vmatpush1.bf16.msra.mxu0 %v883
  %986 = vmatprep.subr.bf16.mxu0 %v888
  %987 = vmatpush1.bf16.msra.mxu0 %v887
  %988 = vmatprep.subr.bf16.mxu0 %v892
  %989 = vmatpush1.bf16.msra.mxu0 %v891
  %990 = vmatprep.subr.bf16.mxu0 %v896
  %991 = vmatpush1.bf16.msra.mxu0 %v895
  %992 = vmatprep.subr.bf16.mxu0 %v900
  %993 = vmatpush1.bf16.msra.mxu0 %v899
  %994 = vmatprep.subr.bf16.mxu0 %v904
  %995 = vmatpush1.bf16.msra.mxu0 %v903
  %996 = vmatprep.subr.bf16.mxu0 %v908
  %997 = vmatpush1.bf16.msra.mxu0 %v907
  %998 = vmatprep.subr.bf16.mxu0 0
  %999 = vmatpush1.bf16.msra.mxu0 0
  %1000 = vmatprep.subr.bf16.mxu0 0
  %1001 = vmatpush1.bf16.msra.mxu0 0
  %1002 = vmatprep.subr.bf16.mxu0 0
  %1003 = vmatpush1.bf16.msra.mxu0 0
  %1004 = vmatprep.subr.bf16.mxu0 0
  %1005 = vmatpush1.bf16.msra.mxu0 0
  %1006 = vmatprep.subr.bf16.mxu0 0
  %1007 = vmatpush1.bf16.msra.mxu0 0
  %1008 = vmatprep.subr.bf16.mxu0 0
  %1009 = vmatpush1.bf16.msra.mxu0 0
  %1010 = vmatprep.subr.bf16.mxu0 0
  %1011 = vmatpush1.bf16.msra.mxu0 0
  %1012 = vmatprep.subr.bf16.mxu0 0
  %1013 = vmatpush1.bf16.msra.mxu0 0
  %1014 = vmatprep.mubr.bf16.mxu0 0
  %1015 = vmatmul.mubr.bf16.gmra.mrb[0].mxu0 %v743
  %v1016 = vpop.f32.mrb[0].mxu0
  %v1017 = vadd.f32 0.0, %v1016
  %v1018 = vpop.f32.mrb[0].mxu0
  %v1019 = vadd.f32 0.0, %v1018
  %v1020 = vpop.f32.mrb[0].mxu0
  %v1021 = vpop.f32.mrb[0].mxu0
  %1022 = vdwg.mxu0
  %v1023 = vadd.f32 %v745, %v976
  %v1024 = vadd.f32 %v746, %v978
  %v1025 = vadd.f32 %v747, %v1017
  %v1026 = vadd.f32 %v748, %v1019
  %v1027 = vxor.u32 %v1023, 2147483648
  %v1028 = vmul.f32 %v1027, 1.442695
  %v1029 = vpow.pop %v1028
  %v1030 = vadd.f32 %v1029, 1.0
  %v1031 = vrcp.pop %v1030
  %v1032 = vmul.f32 1.0, %v1031
  %v1033 = vxor.u32 %v1024, 2147483648
  %v1034 = vmul.f32 %v1033, 1.442695
  %v1035 = vpow.pop %v1034
  %v1036 = vadd.f32 %v1035, 1.0
  %v1037 = vrcp.pop %v1036
  %v1038 = vmul.f32 1.0, %v1037
  %v1039 = vtanh.pop %v1025
  %v1040 = vxor.u32 %v1026, 2147483648
  %v1041 = vmul.f32 %v1040, 1.442695
  %v1042 = vpow.pop %v1041
  %v1043 = vadd.f32 %v1042, 1.0
  %v1044 = vrcp.pop %v1043
  %v1045 = vmul.f32 1.0, %v1044
  %v1046 = vmul.f32 %v1038, %v740
  %v1047 = vmul.f32 %v1032, %v1039
  %v1048 = vadd.f32 %v1046, %v1047
  %v1049 = vtanh.pop %v1048
  %v1050 = vmul.f32 %v1045, %v1049
  %v1051 = vpack.c.bf16 %v1050, %v1050
  %1052 = vst [vmem:[%s5 + $0x8] sm:$0xf] %v1051
  %v1053 = vld [vmem:[#allocation2 + $0x40] sm:$0xff]
  %v1054 = vld [vmem:[#allocation2 + $0x48] sm:$0xff]
  %v1055 = vld [vmem:[#allocation2 + $0x50] sm:$0xff]
  %v1056 = vld [vmem:[#allocation2 + $0x58] sm:$0xff]
  %v1057 = vld [vmem:[%s3] sm:$0xff]
  %v1058 = vld [vmem:[%s3 + $0x8] sm:$0xff]
  %v1059 = vld [vmem:[%s3 + $0x10] sm:$0xff]
  %v1060 = vld [vmem:[%s3 + $0x18] sm:$0xff]
  %v1061 = vld [vmem:[%s3 + $0x20] sm:$0xff]
  %v1062 = vld [vmem:[%s3 + $0x28] sm:$0xff]
  %v1063 = vld [vmem:[%s3 + $0x30] sm:$0xff]
  %v1064 = vld [vmem:[%s3 + $0x38] sm:$0xff]
  %v1065 = vld [vmem:[%s3 + $0x40] sm:$0xff]
  %v1066 = vld [vmem:[%s3 + $0x48] sm:$0xff]
  %v1067 = vld [vmem:[%s3 + $0x50] sm:$0xff]
  %v1068 = vld [vmem:[%s3 + $0x58] sm:$0xff]
  %v1069 = vld [vmem:[%s3 + $0x60] sm:$0xff]
  %v1070 = vld [vmem:[%s3 + $0x68] sm:$0xff]
  %v1071 = vld [vmem:[%s3 + $0x70] sm:$0xff]
  %v1072 = vld [vmem:[%s3 + $0x78] sm:$0xff]
  %v1073 = vld [vmem:[%s3 + $0x80] sm:$0xff]
  %v1074 = vld [vmem:[%s3 + $0x88] sm:$0xff]
  %v1075 = vld [vmem:[%s3 + $0x90] sm:$0xff]
  %v1076 = vld [vmem:[%s3 + $0x98] sm:$0xff]
  %v1077 = vld [vmem:[%s3 + $0xa0] sm:$0xff]
  %v1078 = vld [vmem:[%s3 + $0xa8] sm:$0xff]
  %v1079 = vld [vmem:[%s3 + $0xb0] sm:$0xff]
  %v1080 = vld [vmem:[%s3 + $0xb8] sm:$0xff]
  %v1081 = vld [vmem:[%s3 + $0xc0] sm:$0xff]
  %v1082 = vld [vmem:[%s3 + $0xc8] sm:$0xff]
  %v1083 = vld [vmem:[%s3 + $0xd0] sm:$0xff]
  %v1084 = vld [vmem:[%s3 + $0xd8] sm:$0xff]
  %v1085 = vld [vmem:[%s3 + $0xe0] sm:$0xff]
  %v1086 = vld [vmem:[%s3 + $0xe8] sm:$0xff]
  %v1087 = vld [vmem:[%s3 + $0xf0] sm:$0xff]
  %v1088 = vld [vmem:[%s3 + $0xf8] sm:$0xff]
  %v1121 = vunpack.c.l.b16 %v1057
  %v1122 = vunpack.c.h.b16 %v1057
  %v1123 = vunpack.c.l.b16 %v1058
  %v1124 = vunpack.c.h.b16 %v1058
  %v1125 = vunpack.c.l.b16 %v1059
  %v1126 = vunpack.c.h.b16 %v1059
  %v1127 = vunpack.c.l.b16 %v1060
  %v1128 = vunpack.c.h.b16 %v1060
  %v1129 = vunpack.c.l.b16 %v1061
  %v1130 = vunpack.c.h.b16 %v1061
  %v1131 = vunpack.c.l.b16 %v1062
  %v1132 = vunpack.c.h.b16 %v1062
  %v1133 = vunpack.c.l.b16 %v1063
  %v1134 = vunpack.c.h.b16 %v1063
  %v1135 = vunpack.c.l.b16 %v1064
  %v1136 = vunpack.c.h.b16 %v1064
  %v1137 = vunpack.c.l.b16 %v1065
  %v1138 = vunpack.c.h.b16 %v1065
  %v1139 = vunpack.c.l.b16 %v1066
  %v1140 = vunpack.c.h.b16 %v1066
  %v1141 = vunpack.c.l.b16 %v1067
  %v1142 = vunpack.c.h.b16 %v1067
  %v1143 = vunpack.c.l.b16 %v1068
  %v1144 = vunpack.c.h.b16 %v1068
  %v1145 = vunpack.c.l.b16 %v1069
  %v1146 = vunpack.c.h.b16 %v1069
  %v1147 = vunpack.c.l.b16 %v1070
  %v1148 = vunpack.c.h.b16 %v1070
  %v1149 = vunpack.c.l.b16 %v1071
  %v1150 = vunpack.c.h.b16 %v1071
  %v1151 = vunpack.c.l.b16 %v1072
  %v1152 = vunpack.c.h.b16 %v1072
  %v1153 = vunpack.c.l.b16 %v1073
  %v1154 = vunpack.c.h.b16 %v1073
  %v1155 = vunpack.c.l.b16 %v1074
  %v1156 = vunpack.c.h.b16 %v1074
  %v1157 = vunpack.c.l.b16 %v1075
  %v1158 = vunpack.c.h.b16 %v1075
  %v1159 = vunpack.c.l.b16 %v1076
  %v1160 = vunpack.c.h.b16 %v1076
  %v1161 = vunpack.c.l.b16 %v1077
  %v1162 = vunpack.c.h.b16 %v1077
  %v1163 = vunpack.c.l.b16 %v1078
  %v1164 = vunpack.c.h.b16 %v1078
  %v1165 = vunpack.c.l.b16 %v1079
  %v1166 = vunpack.c.h.b16 %v1079
  %v1167 = vunpack.c.l.b16 %v1080
  %v1168 = vunpack.c.h.b16 %v1080
  %v1169 = vunpack.c.l.b16 %v1081
  %v1170 = vunpack.c.h.b16 %v1081
  %v1171 = vunpack.c.l.b16 %v1082
  %v1172 = vunpack.c.h.b16 %v1082
  %v1173 = vunpack.c.l.b16 %v1083
  %v1174 = vunpack.c.h.b16 %v1083
  %v1175 = vunpack.c.l.b16 %v1084
  %v1176 = vunpack.c.h.b16 %v1084
  %v1177 = vunpack.c.l.b16 %v1085
  %v1178 = vunpack.c.h.b16 %v1085
  %v1179 = vunpack.c.l.b16 %v1086
  %v1180 = vunpack.c.h.b16 %v1086
  %v1181 = vunpack.c.l.b16 %v1087
  %v1182 = vunpack.c.h.b16 %v1087
  %v1183 = vunpack.c.l.b16 %v1088
  %v1184 = vunpack.c.h.b16 %v1088
  %v1185 = vpack.c.b16 %v1125, %v1121
  %v1186 = vpack.c.b16 %v1126, %v1122
  %v1187 = vpack.c.b16 %v1127, %v1123
  %v1188 = vpack.c.b16 %v1128, %v1124
  %v1189 = vpack.c.b16 %v1133, %v1129
  %v1190 = vpack.c.b16 %v1134, %v1130
  %v1191 = vpack.c.b16 %v1135, %v1131
  %v1192 = vpack.c.b16 %v1136, %v1132
  %v1193 = vpack.c.b16 %v1141, %v1137
  %v1194 = vpack.c.b16 %v1142, %v1138
  %v1195 = vpack.c.b16 %v1143, %v1139
  %v1196 = vpack.c.b16 %v1144, %v1140
  %v1197 = vpack.c.b16 %v1149, %v1145
  %v1198 = vpack.c.b16 %v1150, %v1146
  %v1199 = vpack.c.b16 %v1151, %v1147
  %v1200 = vpack.c.b16 %v1152, %v1148
  %v1201 = vpack.c.b16 %v1157, %v1153
  %v1202 = vpack.c.b16 %v1158, %v1154
  %v1203 = vpack.c.b16 %v1159, %v1155
  %v1204 = vpack.c.b16 %v1160, %v1156
  %v1205 = vpack.c.b16 %v1165, %v1161
  %v1206 = vpack.c.b16 %v1166, %v1162
  %v1207 = vpack.c.b16 %v1167, %v1163
  %v1208 = vpack.c.b16 %v1168, %v1164
  %v1209 = vpack.c.b16 %v1173, %v1169
  %v1210 = vpack.c.b16 %v1174, %v1170
  %v1211 = vpack.c.b16 %v1175, %v1171
  %v1212 = vpack.c.b16 %v1176, %v1172
  %v1213 = vpack.c.b16 %v1181, %v1177
  %v1214 = vpack.c.b16 %v1182, %v1178
  %v1215 = vpack.c.b16 %v1183, %v1179
  %v1216 = vpack.c.b16 %v1184, %v1180
  %1249 = vmatprep.subr.bf16.mxu0 %v1186
  %1250 = vmatpush1.bf16.msra.mxu0 %v1185
  %1251 = vmatprep.subr.bf16.mxu0 %v1190
  %1252 = vmatpush1.bf16.msra.mxu0 %v1189
  %1253 = vmatprep.subr.bf16.mxu0 %v1194
  %1254 = vmatpush1.bf16.msra.mxu0 %v1193
  %1255 = vmatprep.subr.bf16.mxu0 %v1198
  %1256 = vmatpush1.bf16.msra.mxu0 %v1197
  %1257 = vmatprep.subr.bf16.mxu0 %v1202
  %1258 = vmatpush1.bf16.msra.mxu0 %v1201
  %1259 = vmatprep.subr.bf16.mxu0 %v1206
  %1260 = vmatpush1.bf16.msra.mxu0 %v1205
  %1261 = vmatprep.subr.bf16.mxu0 %v1210
  %1262 = vmatpush1.bf16.msra.mxu0 %v1209
  %1263 = vmatprep.subr.bf16.mxu0 %v1214
  %1264 = vmatpush1.bf16.msra.mxu0 %v1213
  %1265 = vmatprep.subr.bf16.mxu0 0
  %1266 = vmatpush1.bf16.msra.mxu0 0
  %1267 = vmatprep.subr.bf16.mxu0 0
  %1268 = vmatpush1.bf16.msra.mxu0 0
  %1269 = vmatprep.subr.bf16.mxu0 0
  %1270 = vmatpush1.bf16.msra.mxu0 0
  %1271 = vmatprep.subr.bf16.mxu0 0
  %1272 = vmatpush1.bf16.msra.mxu0 0
  %1273 = vmatprep.subr.bf16.mxu0 0
  %1274 = vmatpush1.bf16.msra.mxu0 0
  %1275 = vmatprep.subr.bf16.mxu0 0
  %1276 = vmatpush1.bf16.msra.mxu0 0
  %1277 = vmatprep.subr.bf16.mxu0 0
  %1278 = vmatpush1.bf16.msra.mxu0 0
  %1279 = vmatprep.subr.bf16.mxu0 0
  %1280 = vmatpush1.bf16.msra.mxu0 0
  %1281 = vmatprep.mubr.bf16.mxu0 0
  %1282 = vmatmul.mubr.bf16.gmra.mrb[0].mxu0 %v1051
  %v1283 = vpop.f32.mrb[0].mxu0
  %v1284 = vadd.f32 0.0, %v1283
  %v1285 = vpop.f32.mrb[0].mxu0
  %v1286 = vadd.f32 0.0, %v1285
  %v1287 = vpop.f32.mrb[0].mxu0
  %v1288 = vpop.f32.mrb[0].mxu0
  %1289 = vdwg.mxu0
  %1290 = vmatprep.subr.bf16.mxu0 %v1188
  %1291 = vmatpush1.bf16.msra.mxu0 %v1187
  %1292 = vmatprep.subr.bf16.mxu0 %v1192
  %1293 = vmatpush1.bf16.msra.mxu0 %v1191
  %1294 = vmatprep.subr.bf16.mxu0 %v1196
  %1295 = vmatpush1.bf16.msra.mxu0 %v1195
  %1296 = vmatprep.subr.bf16.mxu0 %v1200
  %1297 = vmatpush1.bf16.msra.mxu0 %v1199
  %1298 = vmatprep.subr.bf16.mxu0 %v1204
  %1299 = vmatpush1.bf16.msra.mxu0 %v1203
  %1300 = vmatprep.subr.bf16.mxu0 %v1208
  %1301 = vmatpush1.bf16.msra.mxu0 %v1207
  %1302 = vmatprep.subr.bf16.mxu0 %v1212
  %1303 = vmatpush1.bf16.msra.mxu0 %v1211
  %1304 = vmatprep.subr.bf16.mxu0 %v1216
  %1305 = vmatpush1.bf16.msra.mxu0 %v1215
  %1306 = vmatprep.subr.bf16.mxu0 0
  %1307 = vmatpush1.bf16.msra.mxu0 0
  %1308 = vmatprep.subr.bf16.mxu0 0
  %1309 = vmatpush1.bf16.msra.mxu0 0
  %1310 = vmatprep.subr.bf16.mxu0 0
  %1311 = vmatpush1.bf16.msra.mxu0 0
  %1312 = vmatprep.subr.bf16.mxu0 0
  %1313 = vmatpush1.bf16.msra.mxu0 0
  %1314 = vmatprep.subr.bf16.mxu0 0
  %1315 = vmatpush1.bf16.msra.mxu0 0
  %1316 = vmatprep.subr.bf16.mxu0 0
  %1317 = vmatpush1.bf16.msra.mxu0 0
  %1318 = vmatprep.subr.bf16.mxu0 0
  %1319 = vmatpush1.bf16.msra.mxu0 0
  %1320 = vmatprep.subr.bf16.mxu0 0
  %1321 = vmatpush1.bf16.msra.mxu0 0
  %1322 = vmatprep.mubr.bf16.mxu0 0
  %1323 = vmatmul.mubr.bf16.gmra.mrb[0].mxu0 %v1051
  %v1324 = vpop.f32.mrb[0].mxu0
  %v1325 = vadd.f32 0.0, %v1324
  %v1326 = vpop.f32.mrb[0].mxu0
  %v1327 = vadd.f32 0.0, %v1326
  %v1328 = vpop.f32.mrb[0].mxu0
  %v1329 = vpop.f32.mrb[0].mxu0
  %1330 = vdwg.mxu0
  %v1331 = vadd.f32 %v1053, %v1284
  %v1332 = vadd.f32 %v1054, %v1286
  %v1333 = vadd.f32 %v1055, %v1325
  %v1334 = vadd.f32 %v1056, %v1327
  %v1335 = vxor.u32 %v1331, 2147483648
  %v1336 = vmul.f32 %v1335, 1.442695
  %v1337 = vpow.pop %v1336
  %v1338 = vadd.f32 %v1337, 1.0
  %v1339 = vrcp.pop %v1338
  %v1340 = vmul.f32 1.0, %v1339
  %v1341 = vxor.u32 %v1332, 2147483648
  %v1342 = vmul.f32 %v1341, 1.442695
  %v1343 = vpow.pop %v1342
  %v1344 = vadd.f32 %v1343, 1.0
  %v1345 = vrcp.pop %v1344
  %v1346 = vmul.f32 1.0, %v1345
  %v1347 = vtanh.pop %v1333
  %v1348 = vxor.u32 %v1334, 2147483648
  %v1349 = vmul.f32 %v1348, 1.442695
  %v1350 = vpow.pop %v1349
  %v1351 = vadd.f32 %v1350, 1.0
  %v1352 = vrcp.pop %v1351
  %v1353 = vmul.f32 1.0, %v1352
  %v1354 = vmul.f32 %v1346, %v1048
  %v1355 = vmul.f32 %v1340, %v1347
  %v1356 = vadd.f32 %v1354, %v1355
  %v1357 = vtanh.pop %v1356
  %v1358 = vmul.f32 %v1353, %v1357
  %v1359 = vpack.c.bf16 %v1358, %v1358
  %1360 = vst [vmem:[%s5 + $0xc] sm:$0xf] %v1359
  %v1361 = vld [vmem:[#allocation2 + $0x60] sm:$0xff]
  %v1362 = vld [vmem:[#allocation2 + $0x68] sm:$0xff]
  %v1363 = vld [vmem:[#allocation2 + $0x70] sm:$0xff]
  %v1364 = vld [vmem:[#allocation2 + $0x78] sm:$0xff]
  %v1365 = vld [vmem:[%s3] sm:$0xff]
  %v1366 = vld [vmem:[%s3 + $0x8] sm:$0xff]
  %v1367 = vld [vmem:[%s3 + $0x10] sm:$0xff]
  %v1368 = vld [vmem:[%s3 + $0x18] sm:$0xff]
  %v1369 = vld [vmem:[%s3 + $0x20] sm:$0xff]
  %v1370 = vld [vmem:[%s3 + $0x28] sm:$0xff]
  %v1371 = vld [vmem:[%s3 + $0x30] sm:$0xff]
  %v1372 = vld [vmem:[%s3 + $0x38] sm:$0xff]
  %v1373 = vld [vmem:[%s3 + $0x40] sm:$0xff]
  %v1374 = vld [vmem:[%s3 + $0x48] sm:$0xff]
  %v1375 = vld [vmem:[%s3 + $0x50] sm:$0xff]
  %v1376 = vld [vmem:[%s3 + $0x58] sm:$0xff]
  %v1377 = vld [vmem:[%s3 + $0x60] sm:$0xff]
  %v1378 = vld [vmem:[%s3 + $0x68] sm:$0xff]
  %v1379 = vld [vmem:[%s3 + $0x70] sm:$0xff]
  %v1380 = vld [vmem:[%s3 + $0x78] sm:$0xff]
  %v1381 = vld [vmem:[%s3 + $0x80] sm:$0xff]
  %v1382 = vld [vmem:[%s3 + $0x88] sm:$0xff]
  %v1383 = vld [vmem:[%s3 + $0x90] sm:$0xff]
  %v1384 = vld [vmem:[%s3 + $0x98] sm:$0xff]
  %v1385 = vld [vmem:[%s3 + $0xa0] sm:$0xff]
  %v1386 = vld [vmem:[%s3 + $0xa8] sm:$0xff]
  %v1387 = vld [vmem:[%s3 + $0xb0] sm:$0xff]
  %v1388 = vld [vmem:[%s3 + $0xb8] sm:$0xff]
  %v1389 = vld [vmem:[%s3 + $0xc0] sm:$0xff]
  %v1390 = vld [vmem:[%s3 + $0xc8] sm:$0xff]
  %v1391 = vld [vmem:[%s3 + $0xd0] sm:$0xff]
  %v1392 = vld [vmem:[%s3 + $0xd8] sm:$0xff]
  %v1393 = vld [vmem:[%s3 + $0xe0] sm:$0xff]
  %v1394 = vld [vmem:[%s3 + $0xe8] sm:$0xff]
  %v1395 = vld [vmem:[%s3 + $0xf0] sm:$0xff]
  %v1396 = vld [vmem:[%s3 + $0xf8] sm:$0xff]
  %v1429 = vunpack.c.l.b16 %v1365
  %v1430 = vunpack.c.h.b16 %v1365
  %v1431 = vunpack.c.l.b16 %v1366
  %v1432 = vunpack.c.h.b16 %v1366
  %v1433 = vunpack.c.l.b16 %v1367
  %v1434 = vunpack.c.h.b16 %v1367
  %v1435 = vunpack.c.l.b16 %v1368
  %v1436 = vunpack.c.h.b16 %v1368
  %v1437 = vunpack.c.l.b16 %v1369
  %v1438 = vunpack.c.h.b16 %v1369
  %v1439 = vunpack.c.l.b16 %v1370
  %v1440 = vunpack.c.h.b16 %v1370
  %v1441 = vunpack.c.l.b16 %v1371
  %v1442 = vunpack.c.h.b16 %v1371
  %v1443 = vunpack.c.l.b16 %v1372
  %v1444 = vunpack.c.h.b16 %v1372
  %v1445 = vunpack.c.l.b16 %v1373
  %v1446 = vunpack.c.h.b16 %v1373
  %v1447 = vunpack.c.l.b16 %v1374
  %v1448 = vunpack.c.h.b16 %v1374
  %v1449 = vunpack.c.l.b16 %v1375
  %v1450 = vunpack.c.h.b16 %v1375
  %v1451 = vunpack.c.l.b16 %v1376
  %v1452 = vunpack.c.h.b16 %v1376
  %v1453 = vunpack.c.l.b16 %v1377
  %v1454 = vunpack.c.h.b16 %v1377
  %v1455 = vunpack.c.l.b16 %v1378
  %v1456 = vunpack.c.h.b16 %v1378
  %v1457 = vunpack.c.l.b16 %v1379
  %v1458 = vunpack.c.h.b16 %v1379
  %v1459 = vunpack.c.l.b16 %v1380
  %v1460 = vunpack.c.h.b16 %v1380
  %v1461 = vunpack.c.l.b16 %v1381
  %v1462 = vunpack.c.h.b16 %v1381
  %v1463 = vunpack.c.l.b16 %v1382
  %v1464 = vunpack.c.h.b16 %v1382
  %v1465 = vunpack.c.l.b16 %v1383
  %v1466 = vunpack.c.h.b16 %v1383
  %v1467 = vunpack.c.l.b16 %v1384
  %v1468 = vunpack.c.h.b16 %v1384
  %v1469 = vunpack.c.l.b16 %v1385
  %v1470 = vunpack.c.h.b16 %v1385
  %v1471 = vunpack.c.l.b16 %v1386
  %v1472 = vunpack.c.h.b16 %v1386
  %v1473 = vunpack.c.l.b16 %v1387
  %v1474 = vunpack.c.h.b16 %v1387
  %v1475 = vunpack.c.l.b16 %v1388
  %v1476 = vunpack.c.h.b16 %v1388
  %v1477 = vunpack.c.l.b16 %v1389
  %v1478 = vunpack.c.h.b16 %v1389
  %v1479 = vunpack.c.l.b16 %v1390
  %v1480 = vunpack.c.h.b16 %v1390
  %v1481 = vunpack.c.l.b16 %v1391
  %v1482 = vunpack.c.h.b16 %v1391
  %v1483 = vunpack.c.l.b16 %v1392
  %v1484 = vunpack.c.h.b16 %v1392
  %v1485 = vunpack.c.l.b16 %v1393
  %v1486 = vunpack.c.h.b16 %v1393
  %v1487 = vunpack.c.l.b16 %v1394
  %v1488 = vunpack.c.h.b16 %v1394
  %v1489 = vunpack.c.l.b16 %v1395
  %v1490 = vunpack.c.h.b16 %v1395
  %v1491 = vunpack.c.l.b16 %v1396
  %v1492 = vunpack.c.h.b16 %v1396
  %v1493 = vpack.c.b16 %v1433, %v1429
  %v1494 = vpack.c.b16 %v1434, %v1430
  %v1495 = vpack.c.b16 %v1435, %v1431
  %v1496 = vpack.c.b16 %v1436, %v1432
  %v1497 = vpack.c.b16 %v1441, %v1437
  %v1498 = vpack.c.b16 %v1442, %v1438
  %v1499 = vpack.c.b16 %v1443, %v1439
  %v1500 = vpack.c.b16 %v1444, %v1440
  %v1501 = vpack.c.b16 %v1449, %v1445
  %v1502 = vpack.c.b16 %v1450, %v1446
  %v1503 = vpack.c.b16 %v1451, %v1447
  %v1504 = vpack.c.b16 %v1452, %v1448
  %v1505 = vpack.c.b16 %v1457, %v1453
  %v1506 = vpack.c.b16 %v1458, %v1454
  %v1507 = vpack.c.b16 %v1459, %v1455
  %v1508 = vpack.c.b16 %v1460, %v1456
  %v1509 = vpack.c.b16 %v1465, %v1461
  %v1510 = vpack.c.b16 %v1466, %v1462
  %v1511 = vpack.c.b16 %v1467, %v1463
  %v1512 = vpack.c.b16 %v1468, %v1464
  %v1513 = vpack.c.b16 %v1473, %v1469
  %v1514 = vpack.c.b16 %v1474, %v1470
  %v1515 = vpack.c.b16 %v1475, %v1471
  %v1516 = vpack.c.b16 %v1476, %v1472
  %v1517 = vpack.c.b16 %v1481, %v1477
  %v1518 = vpack.c.b16 %v1482, %v1478
  %v1519 = vpack.c.b16 %v1483, %v1479
  %v1520 = vpack.c.b16 %v1484, %v1480
  %v1521 = vpack.c.b16 %v1489, %v1485
  %v1522 = vpack.c.b16 %v1490, %v1486
  %v1523 = vpack.c.b16 %v1491, %v1487
  %v1524 = vpack.c.b16 %v1492, %v1488
  %1557 = vmatprep.subr.bf16.mxu0 %v1494
  %1558 = vmatpush1.bf16.msra.mxu0 %v1493
  %1559 = vmatprep.subr.bf16.mxu0 %v1498
  %1560 = vmatpush1.bf16.msra.mxu0 %v1497
  %1561 = vmatprep.subr.bf16.mxu0 %v1502
  %1562 = vmatpush1.bf16.msra.mxu0 %v1501
  %1563 = vmatprep.subr.bf16.mxu0 %v1506
  %1564 = vmatpush1.bf16.msra.mxu0 %v1505
  %1565 = vmatprep.subr.bf16.mxu0 %v1510
  %1566 = vmatpush1.bf16.msra.mxu0 %v1509
  %1567 = vmatprep.subr.bf16.mxu0 %v1514
  %1568 = vmatpush1.bf16.msra.mxu0 %v1513
  %1569 = vmatprep.subr.bf16.mxu0 %v1518
  %1570 = vmatpush1.bf16.msra.mxu0 %v1517
  %1571 = vmatprep.subr.bf16.mxu0 %v1522
  %1572 = vmatpush1.bf16.msra.mxu0 %v1521
  %1573 = vmatprep.subr.bf16.mxu0 0
  %1574 = vmatpush1.bf16.msra.mxu0 0
  %1575 = vmatprep.subr.bf16.mxu0 0
  %1576 = vmatpush1.bf16.msra.mxu0 0
  %1577 = vmatprep.subr.bf16.mxu0 0
  %1578 = vmatpush1.bf16.msra.mxu0 0
  %1579 = vmatprep.subr.bf16.mxu0 0
  %1580 = vmatpush1.bf16.msra.mxu0 0
  %1581 = vmatprep.subr.bf16.mxu0 0
  %1582 = vmatpush1.bf16.msra.mxu0 0
  %1583 = vmatprep.subr.bf16.mxu0 0
  %1584 = vmatpush1.bf16.msra.mxu0 0
  %1585 = vmatprep.subr.bf16.mxu0 0
  %1586 = vmatpush1.bf16.msra.mxu0 0
  %1587 = vmatprep.subr.bf16.mxu0 0
  %1588 = vmatpush1.bf16.msra.mxu0 0
  %1589 = vmatprep.mubr.bf16.mxu0 0
  %1590 = vmatmul.mubr.bf16.gmra.mrb[0].mxu0 %v1359
  %v1591 = vpop.f32.mrb[0].mxu0
  %v1592 = vadd.f32 0.0, %v1591
  %v1593 = vpop.f32.mrb[0].mxu0
  %v1594 = vadd.f32 0.0, %v1593
  %v1595 = vpop.f32.mrb[0].mxu0
  %v1596 = vpop.f32.mrb[0].mxu0
  %1597 = vdwg.mxu0
  %1598 = vmatprep.subr.bf16.mxu0 %v1496
  %1599 = vmatpush1.bf16.msra.mxu0 %v1495
  %1600 = vmatprep.subr.bf16.mxu0 %v1500
  %1601 = vmatpush1.bf16.msra.mxu0 %v1499
  %1602 = vmatprep.subr.bf16.mxu0 %v1504
  %1603 = vmatpush1.bf16.msra.mxu0 %v1503
  %1604 = vmatprep.subr.bf16.mxu0 %v1508
  %1605 = vmatpush1.bf16.msra.mxu0 %v1507
  %1606 = vmatprep.subr.bf16.mxu0 %v1512
  %1607 = vmatpush1.bf16.msra.mxu0 %v1511
  %1608 = vmatprep.subr.bf16.mxu0 %v1516
  %1609 = vmatpush1.bf16.msra.mxu0 %v1515
  %1610 = vmatprep.subr.bf16.mxu0 %v1520
  %1611 = vmatpush1.bf16.msra.mxu0 %v1519
  %1612 = vmatprep.subr.bf16.mxu0 %v1524
  %1613 = vmatpush1.bf16.msra.mxu0 %v1523
  %1614 = vmatprep.subr.bf16.mxu0 0
  %1615 = vmatpush1.bf16.msra.mxu0 0
  %1616 = vmatprep.subr.bf16.mxu0 0
  %1617 = vmatpush1.bf16.msra.mxu0 0
  %1618 = vmatprep.subr.bf16.mxu0 0
  %1619 = vmatpush1.bf16.msra.mxu0 0
  %1620 = vmatprep.subr.bf16.mxu0 0
  %1621 = vmatpush1.bf16.msra.mxu0 0
  %1622 = vmatprep.subr.bf16.mxu0 0
  %1623 = vmatpush1.bf16.msra.mxu0 0
  %1624 = vmatprep.subr.bf16.mxu0 0
  %1625 = vmatpush1.bf16.msra.mxu0 0
  %1626 = vmatprep.subr.bf16.mxu0 0
  %1627 = vmatpush1.bf16.msra.mxu0 0
  %1628 = vmatprep.subr.bf16.mxu0 0
  %1629 = vmatpush1.bf16.msra.mxu0 0
  %1630 = vmatprep.mubr.bf16.mxu0 0
  %1631 = vmatmul.mubr.bf16.gmra.mrb[0].mxu0 %v1359
  %v1632 = vpop.f32.mrb[0].mxu0
  %v1633 = vadd.f32 0.0, %v1632
  %v1634 = vpop.f32.mrb[0].mxu0
  %v1635 = vadd.f32 0.0, %v1634
  %v1636 = vpop.f32.mrb[0].mxu0
  %v1637 = vpop.f32.mrb[0].mxu0
  %1638 = vdwg.mxu0
  %v1639 = vadd.f32 %v1361, %v1592
  %v1640 = vadd.f32 %v1362, %v1594
  %v1641 = vadd.f32 %v1363, %v1633
  %v1642 = vadd.f32 %v1364, %v1635
  %v1643 = vxor.u32 %v1639, 2147483648
  %v1644 = vmul.f32 %v1643, 1.442695
  %v1645 = vpow.pop %v1644
  %v1646 = vadd.f32 %v1645, 1.0
  %v1647 = vrcp.pop %v1646
  %v1648 = vmul.f32 1.0, %v1647
  %v1649 = vxor.u32 %v1640, 2147483648
  %v1650 = vmul.f32 %v1649, 1.442695
  %v1651 = vpow.pop %v1650
  %v1652 = vadd.f32 %v1651, 1.0
  %v1653 = vrcp.pop %v1652
  %v1654 = vmul.f32 1.0, %v1653
  %v1655 = vtanh.pop %v1641
  %v1656 = vxor.u32 %v1642, 2147483648
  %v1657 = vmul.f32 %v1656, 1.442695
  %v1658 = vpow.pop %v1657
  %v1659 = vadd.f32 %v1658, 1.0
  %v1660 = vrcp.pop %v1659
  %v1661 = vmul.f32 1.0, %v1660
  %v1662 = vmul.f32 %v1654, %v1356
  %v1663 = vmul.f32 %v1648, %v1655
  %v1664 = vadd.f32 %v1662, %v1663
  %v1665 = vtanh.pop %v1664
  %v1666 = vmul.f32 %v1661, %v1665
  %v1667 = vpack.c.bf16 %v1666, %v1666
  %1668 = vst [vmem:[%s5 + $0x10] sm:$0xf] %v1667
  %v1669 = vld [vmem:[#allocation2 + $0x80] sm:$0xff]
  %v1670 = vld [vmem:[#allocation2 + $0x88] sm:$0xff]
  %v1671 = vld [vmem:[#allocation2 + $0x90] sm:$0xff]
  %v1672 = vld [vmem:[#allocation2 + $0x98] sm:$0xff]
  %v1673 = vld [vmem:[%s3] sm:$0xff]
  %v1674 = vld [vmem:[%s3 + $0x8] sm:$0xff]
  %v1675 = vld [vmem:[%s3 + $0x10] sm:$0xff]
  %v1676 = vld [vmem:[%s3 + $0x18] sm:$0xff]
  %v1677 = vld [vmem:[%s3 + $0x20] sm:$0xff]
  %v1678 = vld [vmem:[%s3 + $0x28] sm:$0xff]
  %v1679 = vld [vmem:[%s3 + $0x30] sm:$0xff]
  %v1680 = vld [vmem:[%s3 + $0x38] sm:$0xff]
  %v1681 = vld [vmem:[%s3 + $0x40] sm:$0xff]
  %v1682 = vld [vmem:[%s3 + $0x48] sm:$0xff]
  %v1683 = vld [vmem:[%s3 + $0x50] sm:$0xff]
  %v1684 = vld [vmem:[%s3 + $0x58] sm:$0xff]
  %v1685 = vld [vmem:[%s3 + $0x60] sm:$0xff]
  %v1686 = vld [vmem:[%s3 + $0x68] sm:$0xff]
  %v1687 = vld [vmem:[%s3 + $0x70] sm:$0xff]
  %v1688 = vld [vmem:[%s3 + $0x78] sm:$0xff]
  %v1689 = vld [vmem:[%s3 + $0x80] sm:$0xff]
  %v1690 = vld [vmem:[%s3 + $0x88] sm:$0xff]
  %v1691 = vld [vmem:[%s3 + $0x90] sm:$0xff]
  %v1692 = vld [vmem:[%s3 + $0x98] sm:$0xff]
  %v1693 = vld [vmem:[%s3 + $0xa0] sm:$0xff]
  %v1694 = vld [vmem:[%s3 + $0xa8] sm:$0xff]
  %v1695 = vld [vmem:[%s3 + $0xb0] sm:$0xff]
  %v1696 = vld [vmem:[%s3 + $0xb8] sm:$0xff]
  %v1697 = vld [vmem:[%s3 + $0xc0] sm:$0xff]
  %v1698 = vld [vmem:[%s3 + $0xc8] sm:$0xff]
  %v1699 = vld [vmem:[%s3 + $0xd0] sm:$0xff]
  %v1700 = vld [vmem:[%s3 + $0xd8] sm:$0xff]
  %v1701 = vld [vmem:[%s3 + $0xe0] sm:$0xff]
  %v1702 = vld [vmem:[%s3 + $0xe8] sm:$0xff]
  %v1703 = vld [vmem:[%s3 + $0xf0] sm:$0xff]
  %v1704 = vld [vmem:[%s3 + $0xf8] sm:$0xff]
  %v1737 = vunpack.c.l.b16 %v1673
  %v1738 = vunpack.c.h.b16 %v1673
  %v1739 = vunpack.c.l.b16 %v1674
  %v1740 = vunpack.c.h.b16 %v1674
  %v1741 = vunpack.c.l.b16 %v1675
  %v1742 = vunpack.c.h.b16 %v1675
  %v1743 = vunpack.c.l.b16 %v1676
  %v1744 = vunpack.c.h.b16 %v1676
  %v1745 = vunpack.c.l.b16 %v1677
  %v1746 = vunpack.c.h.b16 %v1677
  %v1747 = vunpack.c.l.b16 %v1678
  %v1748 = vunpack.c.h.b16 %v1678
  %v1749 = vunpack.c.l.b16 %v1679
  %v1750 = vunpack.c.h.b16 %v1679
  %v1751 = vunpack.c.l.b16 %v1680
  %v1752 = vunpack.c.h.b16 %v1680
  %v1753 = vunpack.c.l.b16 %v1681
  %v1754 = vunpack.c.h.b16 %v1681
  %v1755 = vunpack.c.l.b16 %v1682
  %v1756 = vunpack.c.h.b16 %v1682
  %v1757 = vunpack.c.l.b16 %v1683
  %v1758 = vunpack.c.h.b16 %v1683
  %v1759 = vunpack.c.l.b16 %v1684
  %v1760 = vunpack.c.h.b16 %v1684
  %v1761 = vunpack.c.l.b16 %v1685
  %v1762 = vunpack.c.h.b16 %v1685
  %v1763 = vunpack.c.l.b16 %v1686
  %v1764 = vunpack.c.h.b16 %v1686
  %v1765 = vunpack.c.l.b16 %v1687
  %v1766 = vunpack.c.h.b16 %v1687
  %v1767 = vunpack.c.l.b16 %v1688
  %v1768 = vunpack.c.h.b16 %v1688
  %v1769 = vunpack.c.l.b16 %v1689
  %v1770 = vunpack.c.h.b16 %v1689
  %v1771 = vunpack.c.l.b16 %v1690
  %v1772 = vunpack.c.h.b16 %v1690
  %v1773 = vunpack.c.l.b16 %v1691
  %v1774 = vunpack.c.h.b16 %v1691
  %v1775 = vunpack.c.l.b16 %v1692
  %v1776 = vunpack.c.h.b16 %v1692
  %v1777 = vunpack.c.l.b16 %v1693
  %v1778 = vunpack.c.h.b16 %v1693
  %v1779 = vunpack.c.l.b16 %v1694
  %v1780 = vunpack.c.h.b16 %v1694
  %v1781 = vunpack.c.l.b16 %v1695
  %v1782 = vunpack.c.h.b16 %v1695
  %v1783 = vunpack.c.l.b16 %v1696
  %v1784 = vunpack.c.h.b16 %v1696
  %v1785 = vunpack.c.l.b16 %v1697
  %v1786 = vunpack.c.h.b16 %v1697
  %v1787 = vunpack.c.l.b16 %v1698
  %v1788 = vunpack.c.h.b16 %v1698
  %v1789 = vunpack.c.l.b16 %v1699
  %v1790 = vunpack.c.h.b16 %v1699
  %v1791 = vunpack.c.l.b16 %v1700
  %v1792 = vunpack.c.h.b16 %v1700
  %v1793 = vunpack.c.l.b16 %v1701
  %v1794 = vunpack.c.h.b16 %v1701
  %v1795 = vunpack.c.l.b16 %v1702
  %v1796 = vunpack.c.h.b16 %v1702
  %v1797 = vunpack.c.l.b16 %v1703
  %v1798 = vunpack.c.h.b16 %v1703
  %v1799 = vunpack.c.l.b16 %v1704
  %v1800 = vunpack.c.h.b16 %v1704
  %v1801 = vpack.c.b16 %v1741, %v1737
  %v1802 = vpack.c.b16 %v1742, %v1738
  %v1803 = vpack.c.b16 %v1743, %v1739
  %v1804 = vpack.c.b16 %v1744, %v1740
  %v1805 = vpack.c.b16 %v1749, %v1745
  %v1806 = vpack.c.b16 %v1750, %v1746
  %v1807 = vpack.c.b16 %v1751, %v1747
  %v1808 = vpack.c.b16 %v1752, %v1748
  %v1809 = vpack.c.b16 %v1757, %v1753
  %v1810 = vpack.c.b16 %v1758, %v1754
  %v1811 = vpack.c.b16 %v1759, %v1755
  %v1812 = vpack.c.b16 %v1760, %v1756
  %v1813 = vpack.c.b16 %v1765, %v1761
  %v1814 = vpack.c.b16 %v1766, %v1762
  %v1815 = vpack.c.b16 %v1767, %v1763
  %v1816 = vpack.c.b16 %v1768, %v1764
  %v1817 = vpack.c.b16 %v1773, %v1769
  %v1818 = vpack.c.b16 %v1774, %v1770
  %v1819 = vpack.c.b16 %v1775, %v1771
  %v1820 = vpack.c.b16 %v1776, %v1772
  %v1821 = vpack.c.b16 %v1781, %v1777
  %v1822 = vpack.c.b16 %v1782, %v1778
  %v1823 = vpack.c.b16 %v1783, %v1779
  %v1824 = vpack.c.b16 %v1784, %v1780
  %v1825 = vpack.c.b16 %v1789, %v1785
  %v1826 = vpack.c.b16 %v1790, %v1786
  %v1827 = vpack.c.b16 %v1791, %v1787
  %v1828 = vpack.c.b16 %v1792, %v1788
  %v1829 = vpack.c.b16 %v1797, %v1793
  %v1830 = vpack.c.b16 %v1798, %v1794
  %v1831 = vpack.c.b16 %v1799, %v1795
  %v1832 = vpack.c.b16 %v1800, %v1796
  %1865 = vmatprep.subr.bf16.mxu0 %v1802
  %1866 = vmatpush1.bf16.msra.mxu0 %v1801
  %1867 = vmatprep.subr.bf16.mxu0 %v1806
  %1868 = vmatpush1.bf16.msra.mxu0 %v1805
  %1869 = vmatprep.subr.bf16.mxu0 %v1810
  %1870 = vmatpush1.bf16.msra.mxu0 %v1809
  %1871 = vmatprep.subr.bf16.mxu0 %v1814
  %1872 = vmatpush1.bf16.msra.mxu0 %v1813
  %1873 = vmatprep.subr.bf16.mxu0 %v1818
  %1874 = vmatpush1.bf16.msra.mxu0 %v1817
  %1875 = vmatprep.subr.bf16.mxu0 %v1822
  %1876 = vmatpush1.bf16.msra.mxu0 %v1821
  %1877 = vmatprep.subr.bf16.mxu0 %v1826
  %1878 = vmatpush1.bf16.msra.mxu0 %v1825
  %1879 = vmatprep.subr.bf16.mxu0 %v1830
  %1880 = vmatpush1.bf16.msra.mxu0 %v1829
  %1881 = vmatprep.subr.bf16.mxu0 0
  %1882 = vmatpush1.bf16.msra.mxu0 0
  %1883 = vmatprep.subr.bf16.mxu0 0
  %1884 = vmatpush1.bf16.msra.mxu0 0
  %1885 = vmatprep.subr.bf16.mxu0 0
  %1886 = vmatpush1.bf16.msra.mxu0 0
  %1887 = vmatprep.subr.bf16.mxu0 0
  %1888 = vmatpush1.bf16.msra.mxu0 0
  %1889 = vmatprep.subr.bf16.mxu0 0
  %1890 = vmatpush1.bf16.msra.mxu0 0
  %1891 = vmatprep.subr.bf16.mxu0 0
  %1892 = vmatpush1.bf16.msra.mxu0 0
  %1893 = vmatprep.subr.bf16.mxu0 0
  %1894 = vmatpush1.bf16.msra.mxu0 0
  %1895 = vmatprep.subr.bf16.mxu0 0
  %1896 = vmatpush1.bf16.msra.mxu0 0
  %1897 = vmatprep.mubr.bf16.mxu0 0
  %1898 = vmatmul.mubr.bf16.gmra.mrb[0].mxu0 %v1667
  %v1899 = vpop.f32.mrb[0].mxu0
  %v1900 = vadd.f32 0.0, %v1899
  %v1901 = vpop.f32.mrb[0].mxu0
  %v1902 = vadd.f32 0.0, %v1901
  %v1903 = vpop.f32.mrb[0].mxu0
  %v1904 = vpop.f32.mrb[0].mxu0
  %1905 = vdwg.mxu0
  %1906 = vmatprep.subr.bf16.mxu0 %v1804
  %1907 = vmatpush1.bf16.msra.mxu0 %v1803
  %1908 = vmatprep.subr.bf16.mxu0 %v1808
  %1909 = vmatpush1.bf16.msra.mxu0 %v1807
  %1910 = vmatprep.subr.bf16.mxu0 %v1812
  %1911 = vmatpush1.bf16.msra.mxu0 %v1811
  %1912 = vmatprep.subr.bf16.mxu0 %v1816
  %1913 = vmatpush1.bf16.msra.mxu0 %v1815
  %1914 = vmatprep.subr.bf16.mxu0 %v1820
  %1915 = vmatpush1.bf16.msra.mxu0 %v1819
  %1916 = vmatprep.subr.bf16.mxu0 %v1824
  %1917 = vmatpush1.bf16.msra.mxu0 %v1823
  %1918 = vmatprep.subr.bf16.mxu0 %v1828
  %1919 = vmatpush1.bf16.msra.mxu0 %v1827
  %1920 = vmatprep.subr.bf16.mxu0 %v1832
  %1921 = vmatpush1.bf16.msra.mxu0 %v1831
  %1922 = vmatprep.subr.bf16.mxu0 0
  %1923 = vmatpush1.bf16.msra.mxu0 0
  %1924 = vmatprep.subr.bf16.mxu0 0
  %1925 = vmatpush1.bf16.msra.mxu0 0
  %1926 = vmatprep.subr.bf16.mxu0 0
  %1927 = vmatpush1.bf16.msra.mxu0 0
  %1928 = vmatprep.subr.bf16.mxu0 0
  %1929 = vmatpush1.bf16.msra.mxu0 0
  %1930 = vmatprep.subr.bf16.mxu0 0
  %1931 = vmatpush1.bf16.msra.mxu0 0
  %1932 = vmatprep.subr.bf16.mxu0 0
  %1933 = vmatpush1.bf16.msra.mxu0 0
  %1934 = vmatprep.subr.bf16.mxu0 0
  %1935 = vmatpush1.bf16.msra.mxu0 0
  %1936 = vmatprep.subr.bf16.mxu0 0
  %1937 = vmatpush1.bf16.msra.mxu0 0
  %1938 = vmatprep.mubr.bf16.mxu0 0
  %1939 = vmatmul.mubr.bf16.gmra.mrb[0].mxu0 %v1667
  %v1940 = vpop.f32.mrb[0].mxu0
  %v1941 = vadd.f32 0.0, %v1940
  %v1942 = vpop.f32.mrb[0].mxu0
  %v1943 = vadd.f32 0.0, %v1942
  %v1944 = vpop.f32.mrb[0].mxu0
  %v1945 = vpop.f32.mrb[0].mxu0
  %1946 = vdwg.mxu0
  %v1947 = vadd.f32 %v1669, %v1900
  %v1948 = vadd.f32 %v1670, %v1902
  %v1949 = vadd.f32 %v1671, %v1941
  %v1950 = vadd.f32 %v1672, %v1943
  %v1951 = vxor.u32 %v1947, 2147483648
  %v1952 = vmul.f32 %v1951, 1.442695
  %v1953 = vpow.pop %v1952
  %v1954 = vadd.f32 %v1953, 1.0
  %v1955 = vrcp.pop %v1954
  %v1956 = vmul.f32 1.0, %v1955
  %v1957 = vxor.u32 %v1948, 2147483648
  %v1958 = vmul.f32 %v1957, 1.442695
  %v1959 = vpow.pop %v1958
  %v1960 = vadd.f32 %v1959, 1.0
  %v1961 = vrcp.pop %v1960
  %v1962 = vmul.f32 1.0, %v1961
  %v1963 = vtanh.pop %v1949
  %v1964 = vxor.u32 %v1950, 2147483648
  %v1965 = vmul.f32 %v1964, 1.442695
  %v1966 = vpow.pop %v1965
  %v1967 = vadd.f32 %v1966, 1.0
  %v1968 = vrcp.pop %v1967
  %v1969 = vmul.f32 1.0, %v1968
  %v1970 = vmul.f32 %v1962, %v1664
  %v1971 = vmul.f32 %v1956, %v1963
  %v1972 = vadd.f32 %v1970, %v1971
  %v1973 = vtanh.pop %v1972
  %v1974 = vmul.f32 %v1969, %v1973
  %v1975 = vpack.c.bf16 %v1974, %v1974
  %1976 = vst [vmem:[%s5 + $0x14] sm:$0xf] %v1975
  %v1977 = vld [vmem:[#allocation2 + $0xa0] sm:$0xff]
  %v1978 = vld [vmem:[#allocation2 + $0xa8] sm:$0xff]
  %v1979 = vld [vmem:[#allocation2 + $0xb0] sm:$0xff]
  %v1980 = vld [vmem:[#allocation2 + $0xb8] sm:$0xff]
  %v1981 = vld [vmem:[%s3] sm:$0xff]
  %v1982 = vld [vmem:[%s3 + $0x8] sm:$0xff]
  %v1983 = vld [vmem:[%s3 + $0x10] sm:$0xff]
  %v1984 = vld [vmem:[%s3 + $0x18] sm:$0xff]
  %v1985 = vld [vmem:[%s3 + $0x20] sm:$0xff]
  %v1986 = vld [vmem:[%s3 + $0x28] sm:$0xff]
  %v1987 = vld [vmem:[%s3 + $0x30] sm:$0xff]
  %v1988 = vld [vmem:[%s3 + $0x38] sm:$0xff]
  %v1989 = vld [vmem:[%s3 + $0x40] sm:$0xff]
  %v1990 = vld [vmem:[%s3 + $0x48] sm:$0xff]
  %v1991 = vld [vmem:[%s3 + $0x50] sm:$0xff]
  %v1992 = vld [vmem:[%s3 + $0x58] sm:$0xff]
  %v1993 = vld [vmem:[%s3 + $0x60] sm:$0xff]
  %v1994 = vld [vmem:[%s3 + $0x68] sm:$0xff]
  %v1995 = vld [vmem:[%s3 + $0x70] sm:$0xff]
  %v1996 = vld [vmem:[%s3 + $0x78] sm:$0xff]
  %v1997 = vld [vmem:[%s3 + $0x80] sm:$0xff]
  %v1998 = vld [vmem:[%s3 + $0x88] sm:$0xff]
  %v1999 = vld [vmem:[%s3 + $0x90] sm:$0xff]
  %v2000 = vld [vmem:[%s3 + $0x98] sm:$0xff]
  %v2001 = vld [vmem:[%s3 + $0xa0] sm:$0xff]
  %v2002 = vld [vmem:[%s3 + $0xa8] sm:$0xff]
  %v2003 = vld [vmem:[%s3 + $0xb0] sm:$0xff]
  %v2004 = vld [vmem:[%s3 + $0xb8] sm:$0xff]
  %v2005 = vld [vmem:[%s3 + $0xc0] sm:$0xff]
  %v2006 = vld [vmem:[%s3 + $0xc8] sm:$0xff]
  %v2007 = vld [vmem:[%s3 + $0xd0] sm:$0xff]
  %v2008 = vld [vmem:[%s3 + $0xd8] sm:$0xff]
  %v2009 = vld [vmem:[%s3 + $0xe0] sm:$0xff]
  %v2010 = vld [vmem:[%s3 + $0xe8] sm:$0xff]
  %v2011 = vld [vmem:[%s3 + $0xf0] sm:$0xff]
  %v2012 = vld [vmem:[%s3 + $0xf8] sm:$0xff]
  %v2045 = vunpack.c.l.b16 %v1981
  %v2046 = vunpack.c.h.b16 %v1981
  %v2047 = vunpack.c.l.b16 %v1982
  %v2048 = vunpack.c.h.b16 %v1982
  %v2049 = vunpack.c.l.b16 %v1983
  %v2050 = vunpack.c.h.b16 %v1983
  %v2051 = vunpack.c.l.b16 %v1984
  %v2052 = vunpack.c.h.b16 %v1984
  %v2053 = vunpack.c.l.b16 %v1985
  %v2054 = vunpack.c.h.b16 %v1985
  %v2055 = vunpack.c.l.b16 %v1986
  %v2056 = vunpack.c.h.b16 %v1986
  %v2057 = vunpack.c.l.b16 %v1987
  %v2058 = vunpack.c.h.b16 %v1987
  %v2059 = vunpack.c.l.b16 %v1988
  %v2060 = vunpack.c.h.b16 %v1988
  %v2061 = vunpack.c.l.b16 %v1989
  %v2062 = vunpack.c.h.b16 %v1989
  %v2063 = vunpack.c.l.b16 %v1990
  %v2064 = vunpack.c.h.b16 %v1990
  %v2065 = vunpack.c.l.b16 %v1991
  %v2066 = vunpack.c.h.b16 %v1991
  %v2067 = vunpack.c.l.b16 %v1992
  %v2068 = vunpack.c.h.b16 %v1992
  %v2069 = vunpack.c.l.b16 %v1993
  %v2070 = vunpack.c.h.b16 %v1993
  %v2071 = vunpack.c.l.b16 %v1994
  %v2072 = vunpack.c.h.b16 %v1994
  %v2073 = vunpack.c.l.b16 %v1995
  %v2074 = vunpack.c.h.b16 %v1995
  %v2075 = vunpack.c.l.b16 %v1996
  %v2076 = vunpack.c.h.b16 %v1996
  %v2077 = vunpack.c.l.b16 %v1997
  %v2078 = vunpack.c.h.b16 %v1997
  %v2079 = vunpack.c.l.b16 %v1998
  %v2080 = vunpack.c.h.b16 %v1998
  %v2081 = vunpack.c.l.b16 %v1999
  %v2082 = vunpack.c.h.b16 %v1999
  %v2083 = vunpack.c.l.b16 %v2000
  %v2084 = vunpack.c.h.b16 %v2000
  %v2085 = vunpack.c.l.b16 %v2001
  %v2086 = vunpack.c.h.b16 %v2001
  %v2087 = vunpack.c.l.b16 %v2002
  %v2088 = vunpack.c.h.b16 %v2002
  %v2089 = vunpack.c.l.b16 %v2003
  %v2090 = vunpack.c.h.b16 %v2003
  %v2091 = vunpack.c.l.b16 %v2004
  %v2092 = vunpack.c.h.b16 %v2004
  %v2093 = vunpack.c.l.b16 %v2005
  %v2094 = vunpack.c.h.b16 %v2005
  %v2095 = vunpack.c.l.b16 %v2006
  %v2096 = vunpack.c.h.b16 %v2006
  %v2097 = vunpack.c.l.b16 %v2007
  %v2098 = vunpack.c.h.b16 %v2007
  %v2099 = vunpack.c.l.b16 %v2008
  %v2100 = vunpack.c.h.b16 %v2008
  %v2101 = vunpack.c.l.b16 %v2009
  %v2102 = vunpack.c.h.b16 %v2009
  %v2103 = vunpack.c.l.b16 %v2010
  %v2104 = vunpack.c.h.b16 %v2010
  %v2105 = vunpack.c.l.b16 %v2011
  %v2106 = vunpack.c.h.b16 %v2011
  %v2107 = vunpack.c.l.b16 %v2012
  %v2108 = vunpack.c.h.b16 %v2012
  %v2109 = vpack.c.b16 %v2049, %v2045
  %v2110 = vpack.c.b16 %v2050, %v2046
  %v2111 = vpack.c.b16 %v2051, %v2047
  %v2112 = vpack.c.b16 %v2052, %v2048
  %v2113 = vpack.c.b16 %v2057, %v2053
  %v2114 = vpack.c.b16 %v2058, %v2054
  %v2115 = vpack.c.b16 %v2059, %v2055
  %v2116 = vpack.c.b16 %v2060, %v2056
  %v2117 = vpack.c.b16 %v2065, %v2061
  %v2118 = vpack.c.b16 %v2066, %v2062
  %v2119 = vpack.c.b16 %v2067, %v2063
  %v2120 = vpack.c.b16 %v2068, %v2064
  %v2121 = vpack.c.b16 %v2073, %v2069
  %v2122 = vpack.c.b16 %v2074, %v2070
  %v2123 = vpack.c.b16 %v2075, %v2071
  %v2124 = vpack.c.b16 %v2076, %v2072
  %v2125 = vpack.c.b16 %v2081, %v2077
  %v2126 = vpack.c.b16 %v2082, %v2078
  %v2127 = vpack.c.b16 %v2083, %v2079
  %v2128 = vpack.c.b16 %v2084, %v2080
  %v2129 = vpack.c.b16 %v2089, %v2085
  %v2130 = vpack.c.b16 %v2090, %v2086
  %v2131 = vpack.c.b16 %v2091, %v2087
  %v2132 = vpack.c.b16 %v2092, %v2088
  %v2133 = vpack.c.b16 %v2097, %v2093
  %v2134 = vpack.c.b16 %v2098, %v2094
  %v2135 = vpack.c.b16 %v2099, %v2095
  %v2136 = vpack.c.b16 %v2100, %v2096
  %v2137 = vpack.c.b16 %v2105, %v2101
  %v2138 = vpack.c.b16 %v2106, %v2102
  %v2139 = vpack.c.b16 %v2107, %v2103
  %v2140 = vpack.c.b16 %v2108, %v2104
  %2173 = vmatprep.subr.bf16.mxu0 %v2110
  %2174 = vmatpush1.bf16.msra.mxu0 %v2109
  %2175 = vmatprep.subr.bf16.mxu0 %v2114
  %2176 = vmatpush1.bf16.msra.mxu0 %v2113
  %2177 = vmatprep.subr.bf16.mxu0 %v2118
  %2178 = vmatpush1.bf16.msra.mxu0 %v2117
  %2179 = vmatprep.subr.bf16.mxu0 %v2122
  %2180 = vmatpush1.bf16.msra.mxu0 %v2121
  %2181 = vmatprep.subr.bf16.mxu0 %v2126
  %2182 = vmatpush1.bf16.msra.mxu0 %v2125
  %2183 = vmatprep.subr.bf16.mxu0 %v2130
  %2184 = vmatpush1.bf16.msra.mxu0 %v2129
  %2185 = vmatprep.subr.bf16.mxu0 %v2134
  %2186 = vmatpush1.bf16.msra.mxu0 %v2133
  %2187 = vmatprep.subr.bf16.mxu0 %v2138
  %2188 = vmatpush1.bf16.msra.mxu0 %v2137
  %2189 = vmatprep.subr.bf16.mxu0 0
  %2190 = vmatpush1.bf16.msra.mxu0 0
  %2191 = vmatprep.subr.bf16.mxu0 0
  %2192 = vmatpush1.bf16.msra.mxu0 0
  %2193 = vmatprep.subr.bf16.mxu0 0
  %2194 = vmatpush1.bf16.msra.mxu0 0
  %2195 = vmatprep.subr.bf16.mxu0 0
  %2196 = vmatpush1.bf16.msra.mxu0 0
  %2197 = vmatprep.subr.bf16.mxu0 0
  %2198 = vmatpush1.bf16.msra.mxu0 0
  %2199 = vmatprep.subr.bf16.mxu0 0
  %2200 = vmatpush1.bf16.msra.mxu0 0
  %2201 = vmatprep.subr.bf16.mxu0 0
  %2202 = vmatpush1.bf16.msra.mxu0 0
  %2203 = vmatprep.subr.bf16.mxu0 0
  %2204 = vmatpush1.bf16.msra.mxu0 0
  %2205 = vmatprep.mubr.bf16.mxu0 0
  %2206 = vmatmul.mubr.bf16.gmra.mrb[0].mxu0 %v1975
  %v2207 = vpop.f32.mrb[0].mxu0
  %v2208 = vadd.f32 0.0, %v2207
  %v2209 = vpop.f32.mrb[0].mxu0
  %v2210 = vadd.f32 0.0, %v2209
  %v2211 = vpop.f32.mrb[0].mxu0
  %v2212 = vpop.f32.mrb[0].mxu0
  %2213 = vdwg.mxu0
  %2214 = vmatprep.subr.bf16.mxu0 %v2112
  %2215 = vmatpush1.bf16.msra.mxu0 %v2111
  %2216 = vmatprep.subr.bf16.mxu0 %v2116
  %2217 = vmatpush1.bf16.msra.mxu0 %v2115
  %2218 = vmatprep.subr.bf16.mxu0 %v2120
  %2219 = vmatpush1.bf16.msra.mxu0 %v2119
  %2220 = vmatprep.subr.bf16.mxu0 %v2124
  %2221 = vmatpush1.bf16.msra.mxu0 %v2123
  %2222 = vmatprep.subr.bf16.mxu0 %v2128
  %2223 = vmatpush1.bf16.msra.mxu0 %v2127
  %2224 = vmatprep.subr.bf16.mxu0 %v2132
  %2225 = vmatpush1.bf16.msra.mxu0 %v2131
  %2226 = vmatprep.subr.bf16.mxu0 %v2136
  %2227 = vmatpush1.bf16.msra.mxu0 %v2135
  %2228 = vmatprep.subr.bf16.mxu0 %v2140
  %2229 = vmatpush1.bf16.msra.mxu0 %v2139
  %2230 = vmatprep.subr.bf16.mxu0 0
  %2231 = vmatpush1.bf16.msra.mxu0 0
  %2232 = vmatprep.subr.bf16.mxu0 0
  %2233 = vmatpush1.bf16.msra.mxu0 0
  %2234 = vmatprep.subr.bf16.mxu0 0
  %2235 = vmatpush1.bf16.msra.mxu0 0
  %2236 = vmatprep.subr.bf16.mxu0 0
  %2237 = vmatpush1.bf16.msra.mxu0 0
  %2238 = vmatprep.subr.bf16.mxu0 0
  %2239 = vmatpush1.bf16.msra.mxu0 0
  %2240 = vmatprep.subr.bf16.mxu0 0
  %2241 = vmatpush1.bf16.msra.mxu0 0
  %2242 = vmatprep.subr.bf16.mxu0 0
  %2243 = vmatpush1.bf16.msra.mxu0 0
  %2244 = vmatprep.subr.bf16.mxu0 0
  %2245 = vmatpush1.bf16.msra.mxu0 0
  %2246 = vmatprep.mubr.bf16.mxu0 0
  %2247 = vmatmul.mubr.bf16.gmra.mrb[0].mxu0 %v1975
  %v2248 = vpop.f32.mrb[0].mxu0
  %v2249 = vadd.f32 0.0, %v2248
  %v2250 = vpop.f32.mrb[0].mxu0
  %v2251 = vadd.f32 0.0, %v2250
  %v2252 = vpop.f32.mrb[0].mxu0
  %v2253 = vpop.f32.mrb[0].mxu0
  %2254 = vdwg.mxu0
  %v2255 = vadd.f32 %v1977, %v2208
  %v2256 = vadd.f32 %v1978, %v2210
  %v2257 = vadd.f32 %v1979, %v2249
  %v2258 = vadd.f32 %v1980, %v2251
  %v2259 = vxor.u32 %v2255, 2147483648
  %v2260 = vmul.f32 %v2259, 1.442695
  %v2261 = vpow.pop %v2260
  %v2262 = vadd.f32 %v2261, 1.0
  %v2263 = vrcp.pop %v2262
  %v2264 = vmul.f32 1.0, %v2263
  %v2265 = vxor.u32 %v2256, 2147483648
  %v2266 = vmul.f32 %v2265, 1.442695
  %v2267 = vpow.pop %v2266
  %v2268 = vadd.f32 %v2267, 1.0
  %v2269 = vrcp.pop %v2268
  %v2270 = vmul.f32 1.0, %v2269
  %v2271 = vtanh.pop %v2257
  %v2272 = vxor.u32 %v2258, 2147483648
  %v2273 = vmul.f32 %v2272, 1.442695
  %v2274 = vpow.pop %v2273
  %v2275 = vadd.f32 %v2274, 1.0
  %v2276 = vrcp.pop %v2275
  %v2277 = vmul.f32 1.0, %v2276
  %v2278 = vmul.f32 %v2270, %v1972
  %v2279 = vmul.f32 %v2264, %v2271
  %v2280 = vadd.f32 %v2278, %v2279
  %v2281 = vtanh.pop %v2280
  %v2282 = vmul.f32 %v2277, %v2281
  %v2283 = vpack.c.bf16 %v2282, %v2282
  %2284 = vst [vmem:[%s5 + $0x18] sm:$0xf] %v2283
  %v2285 = vld [vmem:[#allocation2 + $0xc0] sm:$0xff]
  %v2286 = vld [vmem:[#allocation2 + $0xc8] sm:$0xff]
  %v2287 = vld [vmem:[#allocation2 + $0xd0] sm:$0xff]
  %v2288 = vld [vmem:[#allocation2 + $0xd8] sm:$0xff]
  %v2289 = vld [vmem:[%s3] sm:$0xff]
  %v2290 = vld [vmem:[%s3 + $0x8] sm:$0xff]
  %v2291 = vld [vmem:[%s3 + $0x10] sm:$0xff]
  %v2292 = vld [vmem:[%s3 + $0x18] sm:$0xff]
  %v2293 = vld [vmem:[%s3 + $0x20] sm:$0xff]
  %v2294 = vld [vmem:[%s3 + $0x28] sm:$0xff]
  %v2295 = vld [vmem:[%s3 + $0x30] sm:$0xff]
  %v2296 = vld [vmem:[%s3 + $0x38] sm:$0xff]
  %v2297 = vld [vmem:[%s3 + $0x40] sm:$0xff]
  %v2298 = vld [vmem:[%s3 + $0x48] sm:$0xff]
  %v2299 = vld [vmem:[%s3 + $0x50] sm:$0xff]
  %v2300 = vld [vmem:[%s3 + $0x58] sm:$0xff]
  %v2301 = vld [vmem:[%s3 + $0x60] sm:$0xff]
  %v2302 = vld [vmem:[%s3 + $0x68] sm:$0xff]
  %v2303 = vld [vmem:[%s3 + $0x70] sm:$0xff]
  %v2304 = vld [vmem:[%s3 + $0x78] sm:$0xff]
  %v2305 = vld [vmem:[%s3 + $0x80] sm:$0xff]
  %v2306 = vld [vmem:[%s3 + $0x88] sm:$0xff]
  %v2307 = vld [vmem:[%s3 + $0x90] sm:$0xff]
  %v2308 = vld [vmem:[%s3 + $0x98] sm:$0xff]
  %v2309 = vld [vmem:[%s3 + $0xa0] sm:$0xff]
  %v2310 = vld [vmem:[%s3 + $0xa8] sm:$0xff]
  %v2311 = vld [vmem:[%s3 + $0xb0] sm:$0xff]
  %v2312 = vld [vmem:[%s3 + $0xb8] sm:$0xff]
  %v2313 = vld [vmem:[%s3 + $0xc0] sm:$0xff]
  %v2314 = vld [vmem:[%s3 + $0xc8] sm:$0xff]
  %v2315 = vld [vmem:[%s3 + $0xd0] sm:$0xff]
  %v2316 = vld [vmem:[%s3 + $0xd8] sm:$0xff]
  %v2317 = vld [vmem:[%s3 + $0xe0] sm:$0xff]
  %v2318 = vld [vmem:[%s3 + $0xe8] sm:$0xff]
  %v2319 = vld [vmem:[%s3 + $0xf0] sm:$0xff]
  %v2320 = vld [vmem:[%s3 + $0xf8] sm:$0xff]
  %v2353 = vunpack.c.l.b16 %v2289
  %v2354 = vunpack.c.h.b16 %v2289
  %v2355 = vunpack.c.l.b16 %v2290
  %v2356 = vunpack.c.h.b16 %v2290
  %v2357 = vunpack.c.l.b16 %v2291
  %v2358 = vunpack.c.h.b16 %v2291
  %v2359 = vunpack.c.l.b16 %v2292
  %v2360 = vunpack.c.h.b16 %v2292
  %v2361 = vunpack.c.l.b16 %v2293
  %v2362 = vunpack.c.h.b16 %v2293
  %v2363 = vunpack.c.l.b16 %v2294
  %v2364 = vunpack.c.h.b16 %v2294
  %v2365 = vunpack.c.l.b16 %v2295
  %v2366 = vunpack.c.h.b16 %v2295
  %v2367 = vunpack.c.l.b16 %v2296
  %v2368 = vunpack.c.h.b16 %v2296
  %v2369 = vunpack.c.l.b16 %v2297
  %v2370 = vunpack.c.h.b16 %v2297
  %v2371 = vunpack.c.l.b16 %v2298
  %v2372 = vunpack.c.h.b16 %v2298
  %v2373 = vunpack.c.l.b16 %v2299
  %v2374 = vunpack.c.h.b16 %v2299
  %v2375 = vunpack.c.l.b16 %v2300
  %v2376 = vunpack.c.h.b16 %v2300
  %v2377 = vunpack.c.l.b16 %v2301
  %v2378 = vunpack.c.h.b16 %v2301
  %v2379 = vunpack.c.l.b16 %v2302
  %v2380 = vunpack.c.h.b16 %v2302
  %v2381 = vunpack.c.l.b16 %v2303
  %v2382 = vunpack.c.h.b16 %v2303
  %v2383 = vunpack.c.l.b16 %v2304
  %v2384 = vunpack.c.h.b16 %v2304
  %v2385 = vunpack.c.l.b16 %v2305
  %v2386 = vunpack.c.h.b16 %v2305
  %v2387 = vunpack.c.l.b16 %v2306
  %v2388 = vunpack.c.h.b16 %v2306
  %v2389 = vunpack.c.l.b16 %v2307
  %v2390 = vunpack.c.h.b16 %v2307
  %v2391 = vunpack.c.l.b16 %v2308
  %v2392 = vunpack.c.h.b16 %v2308
  %v2393 = vunpack.c.l.b16 %v2309
  %v2394 = vunpack.c.h.b16 %v2309
  %v2395 = vunpack.c.l.b16 %v2310
  %v2396 = vunpack.c.h.b16 %v2310
  %v2397 = vunpack.c.l.b16 %v2311
  %v2398 = vunpack.c.h.b16 %v2311
  %v2399 = vunpack.c.l.b16 %v2312
  %v2400 = vunpack.c.h.b16 %v2312
  %v2401 = vunpack.c.l.b16 %v2313
  %v2402 = vunpack.c.h.b16 %v2313
  %v2403 = vunpack.c.l.b16 %v2314
  %v2404 = vunpack.c.h.b16 %v2314
  %v2405 = vunpack.c.l.b16 %v2315
  %v2406 = vunpack.c.h.b16 %v2315
  %v2407 = vunpack.c.l.b16 %v2316
  %v2408 = vunpack.c.h.b16 %v2316
  %v2409 = vunpack.c.l.b16 %v2317
  %v2410 = vunpack.c.h.b16 %v2317
  %v2411 = vunpack.c.l.b16 %v2318
  %v2412 = vunpack.c.h.b16 %v2318
  %v2413 = vunpack.c.l.b16 %v2319
  %v2414 = vunpack.c.h.b16 %v2319
  %v2415 = vunpack.c.l.b16 %v2320
  %v2416 = vunpack.c.h.b16 %v2320
  %v2417 = vpack.c.b16 %v2357, %v2353
  %v2418 = vpack.c.b16 %v2358, %v2354
  %v2419 = vpack.c.b16 %v2359, %v2355
  %v2420 = vpack.c.b16 %v2360, %v2356
  %v2421 = vpack.c.b16 %v2365, %v2361
  %v2422 = vpack.c.b16 %v2366, %v2362
  %v2423 = vpack.c.b16 %v2367, %v2363
  %v2424 = vpack.c.b16 %v2368, %v2364
  %v2425 = vpack.c.b16 %v2373, %v2369
  %v2426 = vpack.c.b16 %v2374, %v2370
  %v2427 = vpack.c.b16 %v2375, %v2371
  %v2428 = vpack.c.b16 %v2376, %v2372
  %v2429 = vpack.c.b16 %v2381, %v2377
  %v2430 = vpack.c.b16 %v2382, %v2378
  %v2431 = vpack.c.b16 %v2383, %v2379
  %v2432 = vpack.c.b16 %v2384, %v2380
  %v2433 = vpack.c.b16 %v2389, %v2385
  %v2434 = vpack.c.b16 %v2390, %v2386
  %v2435 = vpack.c.b16 %v2391, %v2387
  %v2436 = vpack.c.b16 %v2392, %v2388
  %v2437 = vpack.c.b16 %v2397, %v2393
  %v2438 = vpack.c.b16 %v2398, %v2394
  %v2439 = vpack.c.b16 %v2399, %v2395
  %v2440 = vpack.c.b16 %v2400, %v2396
  %v2441 = vpack.c.b16 %v2405, %v2401
  %v2442 = vpack.c.b16 %v2406, %v2402
  %v2443 = vpack.c.b16 %v2407, %v2403
  %v2444 = vpack.c.b16 %v2408, %v2404
  %v2445 = vpack.c.b16 %v2413, %v2409
  %v2446 = vpack.c.b16 %v2414, %v2410
  %v2447 = vpack.c.b16 %v2415, %v2411
  %v2448 = vpack.c.b16 %v2416, %v2412
  %2481 = vmatprep.subr.bf16.mxu0 %v2418
  %2482 = vmatpush1.bf16.msra.mxu0 %v2417
  %2483 = vmatprep.subr.bf16.mxu0 %v2422
  %2484 = vmatpush1.bf16.msra.mxu0 %v2421
  %2485 = vmatprep.subr.bf16.mxu0 %v2426
  %2486 = vmatpush1.bf16.msra.mxu0 %v2425
  %2487 = vmatprep.subr.bf16.mxu0 %v2430
  %2488 = vmatpush1.bf16.msra.mxu0 %v2429
  %2489 = vmatprep.subr.bf16.mxu0 %v2434
  %2490 = vmatpush1.bf16.msra.mxu0 %v2433
  %2491 = vmatprep.subr.bf16.mxu0 %v2438
  %2492 = vmatpush1.bf16.msra.mxu0 %v2437
  %2493 = vmatprep.subr.bf16.mxu0 %v2442
  %2494 = vmatpush1.bf16.msra.mxu0 %v2441
  %2495 = vmatprep.subr.bf16.mxu0 %v2446
  %2496 = vmatpush1.bf16.msra.mxu0 %v2445
  %2497 = vmatprep.subr.bf16.mxu0 0
  %2498 = vmatpush1.bf16.msra.mxu0 0
  %2499 = vmatprep.subr.bf16.mxu0 0
  %2500 = vmatpush1.bf16.msra.mxu0 0
  %2501 = vmatprep.subr.bf16.mxu0 0
  %2502 = vmatpush1.bf16.msra.mxu0 0
  %2503 = vmatprep.subr.bf16.mxu0 0
  %2504 = vmatpush1.bf16.msra.mxu0 0
  %2505 = vmatprep.subr.bf16.mxu0 0
  %2506 = vmatpush1.bf16.msra.mxu0 0
  %2507 = vmatprep.subr.bf16.mxu0 0
  %2508 = vmatpush1.bf16.msra.mxu0 0
  %2509 = vmatprep.subr.bf16.mxu0 0
  %2510 = vmatpush1.bf16.msra.mxu0 0
  %2511 = vmatprep.subr.bf16.mxu0 0
  %2512 = vmatpush1.bf16.msra.mxu0 0
  %2513 = vmatprep.mubr.bf16.mxu0 0
  %2514 = vmatmul.mubr.bf16.gmra.mrb[0].mxu0 %v2283
  %v2515 = vpop.f32.mrb[0].mxu0
  %v2516 = vadd.f32 0.0, %v2515
  %v2517 = vpop.f32.mrb[0].mxu0
  %v2518 = vadd.f32 0.0, %v2517
  %v2519 = vpop.f32.mrb[0].mxu0
  %v2520 = vpop.f32.mrb[0].mxu0
  %2521 = vdwg.mxu0
  %2522 = vmatprep.subr.bf16.mxu0 %v2420
  %2523 = vmatpush1.bf16.msra.mxu0 %v2419
  %2524 = vmatprep.subr.bf16.mxu0 %v2424
  %2525 = vmatpush1.bf16.msra.mxu0 %v2423
  %2526 = vmatprep.subr.bf16.mxu0 %v2428
  %2527 = vmatpush1.bf16.msra.mxu0 %v2427
  %2528 = vmatprep.subr.bf16.mxu0 %v2432
  %2529 = vmatpush1.bf16.msra.mxu0 %v2431
  %2530 = vmatprep.subr.bf16.mxu0 %v2436
  %2531 = vmatpush1.bf16.msra.mxu0 %v2435
  %2532 = vmatprep.subr.bf16.mxu0 %v2440
  %2533 = vmatpush1.bf16.msra.mxu0 %v2439
  %2534 = vmatprep.subr.bf16.mxu0 %v2444
  %2535 = vmatpush1.bf16.msra.mxu0 %v2443
  %2536 = vmatprep.subr.bf16.mxu0 %v2448
  %2537 = vmatpush1.bf16.msra.mxu0 %v2447
  %2538 = vmatprep.subr.bf16.mxu0 0
  %2539 = vmatpush1.bf16.msra.mxu0 0
  %2540 = vmatprep.subr.bf16.mxu0 0
  %2541 = vmatpush1.bf16.msra.mxu0 0
  %2542 = vmatprep.subr.bf16.mxu0 0
  %2543 = vmatpush1.bf16.msra.mxu0 0
  %2544 = vmatprep.subr.bf16.mxu0 0
  %2545 = vmatpush1.bf16.msra.mxu0 0
  %2546 = vmatprep.subr.bf16.mxu0 0
  %2547 = vmatpush1.bf16.msra.mxu0 0
  %2548 = vmatprep.subr.bf16.mxu0 0
  %2549 = vmatpush1.bf16.msra.mxu0 0
  %2550 = vmatprep.subr.bf16.mxu0 0
  %2551 = vmatpush1.bf16.msra.mxu0 0
  %2552 = vmatprep.subr.bf16.mxu0 0
  %2553 = vmatpush1.bf16.msra.mxu0 0
  %2554 = vmatprep.mubr.bf16.mxu0 0
  %2555 = vmatmul.mubr.bf16.gmra.mrb[0].mxu0 %v2283
  %v2556 = vpop.f32.mrb[0].mxu0
  %v2557 = vadd.f32 0.0, %v2556
  %v2558 = vpop.f32.mrb[0].mxu0
  %v2559 = vadd.f32 0.0, %v2558
  %v2560 = vpop.f32.mrb[0].mxu0
  %v2561 = vpop.f32.mrb[0].mxu0
  %2562 = vdwg.mxu0
  %v2563 = vadd.f32 %v2285, %v2516
  %v2564 = vadd.f32 %v2286, %v2518
  %v2565 = vadd.f32 %v2287, %v2557
  %v2566 = vadd.f32 %v2288, %v2559
  %v2567 = vxor.u32 %v2563, 2147483648
  %v2568 = vmul.f32 %v2567, 1.442695
  %v2569 = vpow.pop %v2568
  %v2570 = vadd.f32 %v2569, 1.0
  %v2571 = vrcp.pop %v2570
  %v2572 = vmul.f32 1.0, %v2571
  %v2573 = vxor.u32 %v2564, 2147483648
  %v2574 = vmul.f32 %v2573, 1.442695
  %v2575 = vpow.pop %v2574
  %v2576 = vadd.f32 %v2575, 1.0
  %v2577 = vrcp.pop %v2576
  %v2578 = vmul.f32 1.0, %v2577
  %v2579 = vtanh.pop %v2565
  %v2580 = vxor.u32 %v2566, 2147483648
  %v2581 = vmul.f32 %v2580, 1.442695
  %v2582 = vpow.pop %v2581
  %v2583 = vadd.f32 %v2582, 1.0
  %v2584 = vrcp.pop %v2583
  %v2585 = vmul.f32 1.0, %v2584
  %v2586 = vmul.f32 %v2578, %v2280
  %v2587 = vmul.f32 %v2572, %v2579
  %v2588 = vadd.f32 %v2586, %v2587
  %v2589 = vtanh.pop %v2588
  %v2590 = vmul.f32 %v2585, %v2589
  %v2591 = vpack.c.bf16 %v2590, %v2590
  %2592 = vst [vmem:[%s5 + $0x1c] sm:$0xf] %v2591
  // Predicated region
  $region22: #{decoder_forward.2} parent=0 // pred_check
    _
  $region23: #{decoder_forward.2} parent=0 // pred_check_branch
    %2594 = sbr.rel (0) target = $region25
  $region24: #{decoder_forward.2} parent=0 // pred_region
    _
  $region25: #{decoder_forward.2} parent=0 // pred_fallthru
    _
  // Predicated region
  $region26: #{decoder_forward.2} parent=0 // pred_check
    _
  $region27: #{decoder_forward.2} parent=0 // pred_check_branch
    %2596 = sbr.rel (0) target = $region29
  $region28: #{decoder_forward.2} parent=0 // pred_region
    _
  $region29: #{decoder_forward.2} parent=0 // pred_fallthru
    _

</llo_original>
